<compile_context>
chip_gen: v7x
topology: tpu7x:2x2x1
jax: 0.10.0
libtpu: 0.0.40
codegen_flags: <defaults>
</compile_context>

<pallas_src>
import functools

import jax
import jax.numpy as jnp
import numpy as np
from jax.experimental import pallas as pl
from jax.experimental.pallas import tpu as pltpu

_LAYER_PADS = (0, 0, 0, 1, 3)   # conv1..conv5 spatial zero padding


def _fused_model_kernel(x_ref, m1_ref, b1_ref, m2_ref, b2_ref, m3_ref, b3_ref,
                        b4_ref, b5_ref, mask4_ref, mask5_ref,
                        m4_hbm, m5_hbm,
                        o_ref,
                        m4_vmem, m5_vmem, dma_sem,
                        *, seg, n_batch, out_h):
    """Whole conv/tanh chain for the whole batch (packed as one 2-D row strip)."""
    # Kick off HBM->VMEM copies of the two largest weight tensors; they are consumed
    # only by layers 4/5, so the transfer hides behind layers 1-3 compute.
    cp4 = pltpu.make_async_copy(m4_hbm, m4_vmem, dma_sem.at[0])
    cp5 = pltpu.make_async_copy(m5_hbm, m5_vmem, dma_sem.at[1])
    cp4.start()
    cp5.start()

    def conv(a, m_ref, b_ref):
        # One "valid" conv along strip rows for the whole batch:
        #   out[r, :] = sum_kh a[r + kh, :] @ M[kh]  + bias
        # M[kh] folds kw taps, Cin->Cout contraction and W zero padding into one dot.
        kh_taps, _, d_out = m_ref.shape
        rows = a.shape[0] - kh_taps + 1
        acc = jnp.zeros((rows, d_out), jnp.float32)
        for kh in range(kh_taps):          # one batched dot per tap; RHS reused whole
            acc = acc + jnp.dot(a[kh:kh + rows, :], m_ref[kh],
                                preferred_element_type=jnp.float32)
        return acc + b_ref[...]

    a = x_ref[...]                                   # (73, 21)   whole batch strip
    a = jnp.tanh(conv(a, m1_ref, b1_ref))            # (67, 45)
    a = jnp.tanh(conv(a, m2_ref, b2_ref))            # (65, 65)
    a = jnp.tanh(conv(a, m3_ref, b3_ref))            # (64, 84)

    a = a * mask4_ref[...]                           # re-zero guard rows (conv4 H-pad)
    cp4.wait()
    a = jnp.tanh(conv(a, m4_vmem, b4_ref))           # (62, 108)

    a = a * mask5_ref[...]                           # re-zero guard rows (conv5 H-pad)
    cp5.wait()
    a = conv(a, m5_vmem, b5_ref)                     # (56, 132)   no tanh on conv5

    for i in range(n_batch):                         # unpack per-image segments
        o_ref[i] = a[i * seg: i * seg + out_h]


def _make_row_matrix(w_hwio, win, pad):
    """Banded block-Toeplitz matrix for one conv kernel row (built in the wrapper).

    Returns M of shape (KH, Win*Cin, Wout*Cout) with
      M[kh, w*Cin + ci, wo*Cout + co] = w[kh, w - wo + pad, ci, co]
    when 0 <= w - wo + pad < KW, else 0.
    """
    kh_, kw_, cin, cout = w_hwio.shape
    wout = win + 2 * pad - kw_ + 1
    w_idx = jnp.arange(win)[:, None]
    wo_idx = jnp.arange(wout)[None, :]
    kw = w_idx - wo_idx + pad                               # (Win, Wout)
    valid = ((kw >= 0) & (kw < kw_)).astype(w_hwio.dtype)
    kw_clipped = jnp.clip(kw, 0, kw_ - 1)
    t = w_hwio[:, kw_clipped, :, :]                         # (KH, Win, Wout, Cin, Cout)
    t = t * valid[None, :, :, None, None]
    t = jnp.transpose(t, (0, 1, 3, 2, 4))                   # (KH, Win, Cin, Wout, Cout)
    return t.reshape(kh_, win * cin, wout * cout)


def init_params(key):
    # Conv layer specs: (Cin, Cout, kernel_size) -- matches the PyTorch module.
    specs = [(1, 3, 7), (3, 5, 3), (5, 7, 2), (7, 9, 3), (9, 11, 7)]
    params = {}
    for i, (cin, cout, k) in enumerate(specs, start=1):
        key, kw_key, kb_key = jax.random.split(key, 3)
        bound = 1.0 / np.sqrt(cin * k * k)  # PyTorch-style uniform init bound
        params[f"w{i}"] = jax.random.uniform(
            kw_key, (k, k, cin, cout), jnp.float32, -bound, bound)   # HWIO
        params[f"b{i}"] = jax.random.uniform(
            kb_key, (1, cout), jnp.float32, -bound, bound)
    return params


def model_tanh_forward(x_nchw, params):
    n, _, h_in, w_in = x_nchw.shape
    # NCHW -> NHWC, ReflectionPad2d(2); Cin == 1 so (H, W*C) == (H, W).
    xt = jnp.transpose(x_nchw, (0, 2, 3, 1))
    xt = jnp.pad(xt, ((0, 0), (2, 2), (2, 2), (0, 0)), mode="reflect")
    h0, w0 = h_in + 4, w_in + 4
    xt = xt.reshape(n, h0, w0)

    khs = tuple(int(params[f"w{i}"].shape[0]) for i in range(1, 6))
    n_layers = len(khs)

    # ---- static strip geometry -------------------------------------------------
    hh = [h0]                           # per-layer input heights
    off = [sum(_LAYER_PADS)]            # per-layer valid-row offset inside a segment
    for kh_, pd in zip(khs, _LAYER_PADS):
        hh.append(hh[-1] + 2 * pd - kh_ + 1)
        off.append(off[-1] - pd)
    seg = max(off[l] + hh[l] + _LAYER_PADS[l] for l in range(n_layers))
    seg = ((seg + 7) // 8) * 8          # sublane-aligned segments
    rows_in = [0] * n_layers            # strip rows feeding each layer
    r = (n - 1) * seg + hh[-1]          # rows needed from the last layer
    for l in range(n_layers - 1, -1, -1):
        r += khs[l] - 1
        rows_in[l] = r

    # Batch strip: each image in its own `seg`-row segment; the zero guard rows around
    # it realize conv4/conv5's spatial H zero-padding without any in-kernel concat.
    x_strip = jnp.zeros((rows_in[0], w0), jnp.float32)
    for i in range(n):
        x_strip = x_strip.at[i * seg + off[0]: i * seg + off[0] + h0, :].set(xt[i])

    # Row masks that re-zero the guard rows right before the H-padded layers.
    masks = {}
    for l, pd in enumerate(_LAYER_PADS):
        if pd:
            m = np.zeros((rows_in[l], 1), np.float32)
            for i in range(n):
                m[i * seg + off[l]: i * seg + off[l] + hh[l]] = 1.0
            masks[l] = jnp.asarray(m)

    # Lower conv weights to per-kernel-row block-Toeplitz matrices + Wout-tiled biases.
    ms, bs = [], []
    w_cur, cout = w0, 1
    for i, pd in enumerate(_LAYER_PADS, start=1):
        wgt = params[f"w{i}"]                     # (KH, KW, Cin, Cout)
        bias = params[f"b{i}"]                    # (1, Cout)
        _, kw_, _, cout = wgt.shape
        ms.append(_make_row_matrix(wgt, w_cur, pd))
        w_cur = w_cur + 2 * pd - kw_ + 1
        bs.append(jnp.tile(bias.reshape(-1), w_cur).reshape(1, w_cur * cout))

    kernel = functools.partial(_fused_model_kernel,
                               seg=seg, n_batch=n, out_h=hh[-1])
    vmem = pl.BlockSpec(memory_space=pltpu.MemorySpace.VMEM)
    hbm = pl.BlockSpec(memory_space=pl.ANY)

    out_flat = pl.pallas_call(
        kernel,
        out_shape=jax.ShapeDtypeStruct((n, hh[-1], w_cur * cout), jnp.float32),
        in_specs=[vmem] * 11 + [hbm, hbm],
        out_specs=vmem,
        scratch_shapes=[pltpu.VMEM(ms[3].shape, jnp.float32),
                        pltpu.VMEM(ms[4].shape, jnp.float32),
                        pltpu.SemaphoreType.DMA((2,))],
    )(x_strip, ms[0], bs[0], ms[1], bs[1], ms[2], bs[2], bs[3], bs[4],
      masks[3], masks[4], ms[3], ms[4])

    # (N, Hout, Wout*Cout) -> NHWC -> NCHW
    out = out_flat.reshape(n, hh[-1], w_cur, cout)
    return jnp.transpose(out, (0, 3, 1, 2))


def _ref_forward(x_nchw, params):
    """Pure-JAX reference (XLA conv, full f32 precision) for correctness checking."""
    def conv(x, wgt, b, pad):
        y = jax.lax.conv_general_dilated(
            x, wgt, (1, 1), [(pad, pad), (pad, pad)],
            dimension_numbers=("NHWC", "HWIO", "NHWC"),
            precision=jax.lax.Precision.HIGHEST)
        return y + b.reshape(1, 1, 1, -1)

    x = jnp.transpose(x_nchw, (0, 2, 3, 1))
    x = jnp.pad(x, ((0, 0), (2, 2), (2, 2), (0, 0)), mode="reflect")
    x = jnp.tanh(conv(x, params["w1"], params["b1"], 0))
    x = jnp.tanh(conv(x, params["w2"], params["b2"], 0))
    x = jnp.tanh(conv(x, params["w3"], params["b3"], 0))
    x = jnp.tanh(conv(x, params["w4"], params["b4"], 1))
    x = conv(x, params["w5"], params["b5"], 3)
    return jnp.transpose(x, (0, 3, 1, 2))


if __name__ == "__main__":
    key = jax.random.PRNGKey(0)
    kx, kp = jax.random.split(key)
    x = jax.random.normal(kx, (3, 1, 13, 17), jnp.float32)  # torch.randn(3, 1, 13, 17)
    params = init_params(kp)

    out = jax.block_until_ready(jax.jit(model_tanh_forward)(x, params))
    assert out.shape == (3, 11, 8, 12), out.shape

    ref = jax.block_until_ready(jax.jit(_ref_forward)(x, params))
    # Tolerance accommodates default (single-pass) MXU f32 matmul precision vs the
    # exact-f32 XLA conv reference; genuine structural errors would be >1e-1.
    np.testing.assert_allclose(np.asarray(out), np.asarray(ref), rtol=1e-2, atol=3e-3)

    print("KERNEL_OK")
</pallas_src>

<mosaic_0001>
module attributes {stable_mosaic.version = 11 : i64} {
  func.func @_fused_model_kernel(%arg0: memref<73x21xf32, #tpu.memory_space<vmem>>, %arg1: memref<7x21x45xf32, #tpu.memory_space<vmem>>, %arg2: memref<1x45xf32, #tpu.memory_space<vmem>>, %arg3: memref<3x45x65xf32, #tpu.memory_space<vmem>>, %arg4: memref<1x65xf32, #tpu.memory_space<vmem>>, %arg5: memref<2x65x84xf32, #tpu.memory_space<vmem>>, %arg6: memref<1x84xf32, #tpu.memory_space<vmem>>, %arg7: memref<1x108xf32, #tpu.memory_space<vmem>>, %arg8: memref<1x132xf32, #tpu.memory_space<vmem>>, %arg9: memref<64x1xf32, #tpu.memory_space<vmem>>, %arg10: memref<62x1xf32, #tpu.memory_space<vmem>>, %arg11: memref<3x84x108xf32, #tpu.memory_space<any>>, %arg12: memref<7x108x132xf32, #tpu.memory_space<any>>, %arg13: memref<3x8x132xf32, #tpu.memory_space<vmem>>, %arg14: memref<3x84x108xf32, #tpu.memory_space<vmem>>, %arg15: memref<7x108x132xf32, #tpu.memory_space<vmem>>, %arg16: memref<2x!tpu.dma_semaphore, #tpu.memory_space<semaphore_mem>>) attributes {dimension_semantics = [], scalar_prefetch = 0 : i64, scratch_operands = 3 : i64, tpu.core_type = #tpu.core_type<tc>} {
    %c0_i32 = arith.constant 0 : i32
    %0 = tpu.memref_slice %arg16[%c0_i32] : memref<2x!tpu.dma_semaphore, #tpu.memory_space<semaphore_mem>> -> memref<1x!tpu.dma_semaphore, #tpu.memory_space<semaphore_mem>>
    %1 = tpu.memref_squeeze %0 : memref<1x!tpu.dma_semaphore, #tpu.memory_space<semaphore_mem>> -> memref<!tpu.dma_semaphore, #tpu.memory_space<semaphore_mem>>
    tpu.enqueue_dma source(%arg11 : memref<3x84x108xf32, #tpu.memory_space<any>>) target(%arg14 : memref<3x84x108xf32, #tpu.memory_space<vmem>>) target_semaphore(%1 : memref<!tpu.dma_semaphore, #tpu.memory_space<semaphore_mem>>)
    %c1_i32 = arith.constant 1 : i32
    %2 = tpu.memref_slice %arg16[%c1_i32] : memref<2x!tpu.dma_semaphore, #tpu.memory_space<semaphore_mem>> -> memref<1x!tpu.dma_semaphore, #tpu.memory_space<semaphore_mem>>
    %3 = tpu.memref_squeeze %2 : memref<1x!tpu.dma_semaphore, #tpu.memory_space<semaphore_mem>> -> memref<!tpu.dma_semaphore, #tpu.memory_space<semaphore_mem>>
    tpu.enqueue_dma source(%arg12 : memref<7x108x132xf32, #tpu.memory_space<any>>) target(%arg15 : memref<7x108x132xf32, #tpu.memory_space<vmem>>) target_semaphore(%3 : memref<!tpu.dma_semaphore, #tpu.memory_space<semaphore_mem>>)
    %c0 = arith.constant 0 : index
    %c0_0 = arith.constant 0 : index
    %4 = vector.load %arg0[%c0, %c0_0] : memref<73x21xf32, #tpu.memory_space<vmem>>, vector<73x21xf32>
    %cst = arith.constant 0.000000e+00 : f32
    %5 = vector.broadcast %cst : f32 to vector<67x45xf32>
    %6 = vector.extract_strided_slice %4 {offsets = [0, 0], sizes = [67, 21], strides = [1, 1]} : vector<73x21xf32> to vector<67x21xf32>
    %c0_1 = arith.constant 0 : index
    %c0_2 = arith.constant 0 : index
    %c0_3 = arith.constant 0 : index
    %7 = vector.load %arg1[%c0_1, %c0_2, %c0_3] : memref<7x21x45xf32, #tpu.memory_space<vmem>>, vector<1x21x45xf32>
    %8 = vector.shape_cast %7 : vector<1x21x45xf32> to vector<21x45xf32>
    %cst_4 = arith.constant dense<0.000000e+00> : vector<67x45xf32>
    %9 = tpu.matmul %6, %8, %cst_4 {dimension_numbers = #tpu.dot_dimension_numbers<[1], [0], [0], [1], [0, 0, 1, 1], [], []>} : vector<67x21xf32>, vector<21x45xf32>, vector<67x45xf32> -> vector<67x45xf32>
    %10 = arith.addf %5, %9 : vector<67x45xf32>
    %11 = vector.extract_strided_slice %4 {offsets = [1, 0], sizes = [67, 21], strides = [1, 1]} : vector<73x21xf32> to vector<67x21xf32>
    %c1 = arith.constant 1 : index
    %c0_5 = arith.constant 0 : index
    %c0_6 = arith.constant 0 : index
    %12 = vector.load %arg1[%c1, %c0_5, %c0_6] : memref<7x21x45xf32, #tpu.memory_space<vmem>>, vector<1x21x45xf32>
    %13 = vector.shape_cast %12 : vector<1x21x45xf32> to vector<21x45xf32>
    %cst_7 = arith.constant dense<0.000000e+00> : vector<67x45xf32>
    %14 = tpu.matmul %11, %13, %cst_7 {dimension_numbers = #tpu.dot_dimension_numbers<[1], [0], [0], [1], [0, 0, 1, 1], [], []>} : vector<67x21xf32>, vector<21x45xf32>, vector<67x45xf32> -> vector<67x45xf32>
    %15 = arith.addf %10, %14 : vector<67x45xf32>
    %16 = vector.extract_strided_slice %4 {offsets = [2, 0], sizes = [67, 21], strides = [1, 1]} : vector<73x21xf32> to vector<67x21xf32>
    %c2 = arith.constant 2 : index
    %c0_8 = arith.constant 0 : index
    %c0_9 = arith.constant 0 : index
    %17 = vector.load %arg1[%c2, %c0_8, %c0_9] : memref<7x21x45xf32, #tpu.memory_space<vmem>>, vector<1x21x45xf32>
    %18 = vector.shape_cast %17 : vector<1x21x45xf32> to vector<21x45xf32>
    %cst_10 = arith.constant dense<0.000000e+00> : vector<67x45xf32>
    %19 = tpu.matmul %16, %18, %cst_10 {dimension_numbers = #tpu.dot_dimension_numbers<[1], [0], [0], [1], [0, 0, 1, 1], [], []>} : vector<67x21xf32>, vector<21x45xf32>, vector<67x45xf32> -> vector<67x45xf32>
    %20 = arith.addf %15, %19 : vector<67x45xf32>
    %21 = vector.extract_strided_slice %4 {offsets = [3, 0], sizes = [67, 21], strides = [1, 1]} : vector<73x21xf32> to vector<67x21xf32>
    %c3 = arith.constant 3 : index
    %c0_11 = arith.constant 0 : index
    %c0_12 = arith.constant 0 : index
    %22 = vector.load %arg1[%c3, %c0_11, %c0_12] : memref<7x21x45xf32, #tpu.memory_space<vmem>>, vector<1x21x45xf32>
    %23 = vector.shape_cast %22 : vector<1x21x45xf32> to vector<21x45xf32>
    %cst_13 = arith.constant dense<0.000000e+00> : vector<67x45xf32>
    %24 = tpu.matmul %21, %23, %cst_13 {dimension_numbers = #tpu.dot_dimension_numbers<[1], [0], [0], [1], [0, 0, 1, 1], [], []>} : vector<67x21xf32>, vector<21x45xf32>, vector<67x45xf32> -> vector<67x45xf32>
    %25 = arith.addf %20, %24 : vector<67x45xf32>
    %26 = vector.extract_strided_slice %4 {offsets = [4, 0], sizes = [67, 21], strides = [1, 1]} : vector<73x21xf32> to vector<67x21xf32>
    %c4 = arith.constant 4 : index
    %c0_14 = arith.constant 0 : index
    %c0_15 = arith.constant 0 : index
    %27 = vector.load %arg1[%c4, %c0_14, %c0_15] : memref<7x21x45xf32, #tpu.memory_space<vmem>>, vector<1x21x45xf32>
    %28 = vector.shape_cast %27 : vector<1x21x45xf32> to vector<21x45xf32>
    %cst_16 = arith.constant dense<0.000000e+00> : vector<67x45xf32>
    %29 = tpu.matmul %26, %28, %cst_16 {dimension_numbers = #tpu.dot_dimension_numbers<[1], [0], [0], [1], [0, 0, 1, 1], [], []>} : vector<67x21xf32>, vector<21x45xf32>, vector<67x45xf32> -> vector<67x45xf32>
    %30 = arith.addf %25, %29 : vector<67x45xf32>
    %31 = vector.extract_strided_slice %4 {offsets = [5, 0], sizes = [67, 21], strides = [1, 1]} : vector<73x21xf32> to vector<67x21xf32>
    %c5 = arith.constant 5 : index
    %c0_17 = arith.constant 0 : index
    %c0_18 = arith.constant 0 : index
    %32 = vector.load %arg1[%c5, %c0_17, %c0_18] : memref<7x21x45xf32, #tpu.memory_space<vmem>>, vector<1x21x45xf32>
    %33 = vector.shape_cast %32 : vector<1x21x45xf32> to vector<21x45xf32>
    %cst_19 = arith.constant dense<0.000000e+00> : vector<67x45xf32>
    %34 = tpu.matmul %31, %33, %cst_19 {dimension_numbers = #tpu.dot_dimension_numbers<[1], [0], [0], [1], [0, 0, 1, 1], [], []>} : vector<67x21xf32>, vector<21x45xf32>, vector<67x45xf32> -> vector<67x45xf32>
    %35 = arith.addf %30, %34 : vector<67x45xf32>
    %36 = vector.extract_strided_slice %4 {offsets = [6, 0], sizes = [67, 21], strides = [1, 1]} : vector<73x21xf32> to vector<67x21xf32>
    %c6 = arith.constant 6 : index
    %c0_20 = arith.constant 0 : index
    %c0_21 = arith.constant 0 : index
    %37 = vector.load %arg1[%c6, %c0_20, %c0_21] : memref<7x21x45xf32, #tpu.memory_space<vmem>>, vector<1x21x45xf32>
    %38 = vector.shape_cast %37 : vector<1x21x45xf32> to vector<21x45xf32>
    %cst_22 = arith.constant dense<0.000000e+00> : vector<67x45xf32>
    %39 = tpu.matmul %36, %38, %cst_22 {dimension_numbers = #tpu.dot_dimension_numbers<[1], [0], [0], [1], [0, 0, 1, 1], [], []>} : vector<67x21xf32>, vector<21x45xf32>, vector<67x45xf32> -> vector<67x45xf32>
    %40 = arith.addf %35, %39 : vector<67x45xf32>
    %c0_23 = arith.constant 0 : index
    %c0_24 = arith.constant 0 : index
    %41 = vector.load %arg2[%c0_23, %c0_24] : memref<1x45xf32, #tpu.memory_space<vmem>>, vector<1x45xf32>
    %42 = vector.broadcast %41 : vector<1x45xf32> to vector<67x45xf32>
    %43 = arith.addf %40, %42 : vector<67x45xf32>
    %44 = math.tanh %43 : vector<67x45xf32>
    %cst_25 = arith.constant 0.000000e+00 : f32
    %45 = vector.broadcast %cst_25 : f32 to vector<65x65xf32>
    %46 = vector.extract_strided_slice %44 {offsets = [0, 0], sizes = [65, 45], strides = [1, 1]} : vector<67x45xf32> to vector<65x45xf32>
    %c0_26 = arith.constant 0 : index
    %c0_27 = arith.constant 0 : index
    %c0_28 = arith.constant 0 : index
    %47 = vector.load %arg3[%c0_26, %c0_27, %c0_28] : memref<3x45x65xf32, #tpu.memory_space<vmem>>, vector<1x45x65xf32>
    %48 = vector.shape_cast %47 : vector<1x45x65xf32> to vector<45x65xf32>
    %cst_29 = arith.constant dense<0.000000e+00> : vector<65x65xf32>
    %49 = tpu.matmul %46, %48, %cst_29 {dimension_numbers = #tpu.dot_dimension_numbers<[1], [0], [0], [1], [0, 0, 1, 1], [], []>} : vector<65x45xf32>, vector<45x65xf32>, vector<65x65xf32> -> vector<65x65xf32>
    %50 = arith.addf %45, %49 : vector<65x65xf32>
    %51 = vector.extract_strided_slice %44 {offsets = [1, 0], sizes = [65, 45], strides = [1, 1]} : vector<67x45xf32> to vector<65x45xf32>
    %c1_30 = arith.constant 1 : index
    %c0_31 = arith.constant 0 : index
    %c0_32 = arith.constant 0 : index
    %52 = vector.load %arg3[%c1_30, %c0_31, %c0_32] : memref<3x45x65xf32, #tpu.memory_space<vmem>>, vector<1x45x65xf32>
    %53 = vector.shape_cast %52 : vector<1x45x65xf32> to vector<45x65xf32>
    %cst_33 = arith.constant dense<0.000000e+00> : vector<65x65xf32>
    %54 = tpu.matmul %51, %53, %cst_33 {dimension_numbers = #tpu.dot_dimension_numbers<[1], [0], [0], [1], [0, 0, 1, 1], [], []>} : vector<65x45xf32>, vector<45x65xf32>, vector<65x65xf32> -> vector<65x65xf32>
    %55 = arith.addf %50, %54 : vector<65x65xf32>
    %56 = vector.extract_strided_slice %44 {offsets = [2, 0], sizes = [65, 45], strides = [1, 1]} : vector<67x45xf32> to vector<65x45xf32>
    %c2_34 = arith.constant 2 : index
    %c0_35 = arith.constant 0 : index
    %c0_36 = arith.constant 0 : index
    %57 = vector.load %arg3[%c2_34, %c0_35, %c0_36] : memref<3x45x65xf32, #tpu.memory_space<vmem>>, vector<1x45x65xf32>
    %58 = vector.shape_cast %57 : vector<1x45x65xf32> to vector<45x65xf32>
    %cst_37 = arith.constant dense<0.000000e+00> : vector<65x65xf32>
    %59 = tpu.matmul %56, %58, %cst_37 {dimension_numbers = #tpu.dot_dimension_numbers<[1], [0], [0], [1], [0, 0, 1, 1], [], []>} : vector<65x45xf32>, vector<45x65xf32>, vector<65x65xf32> -> vector<65x65xf32>
    %60 = arith.addf %55, %59 : vector<65x65xf32>
    %c0_38 = arith.constant 0 : index
    %c0_39 = arith.constant 0 : index
    %61 = vector.load %arg4[%c0_38, %c0_39] : memref<1x65xf32, #tpu.memory_space<vmem>>, vector<1x65xf32>
    %62 = vector.broadcast %61 : vector<1x65xf32> to vector<65x65xf32>
    %63 = arith.addf %60, %62 : vector<65x65xf32>
    %64 = math.tanh %63 : vector<65x65xf32>
    %cst_40 = arith.constant 0.000000e+00 : f32
    %65 = vector.broadcast %cst_40 : f32 to vector<64x84xf32>
    %66 = vector.extract_strided_slice %64 {offsets = [0, 0], sizes = [64, 65], strides = [1, 1]} : vector<65x65xf32> to vector<64x65xf32>
    %c0_41 = arith.constant 0 : index
    %c0_42 = arith.constant 0 : index
    %c0_43 = arith.constant 0 : index
    %67 = vector.load %arg5[%c0_41, %c0_42, %c0_43] : memref<2x65x84xf32, #tpu.memory_space<vmem>>, vector<1x65x84xf32>
    %68 = vector.shape_cast %67 : vector<1x65x84xf32> to vector<65x84xf32>
    %cst_44 = arith.constant dense<0.000000e+00> : vector<64x84xf32>
    %69 = tpu.matmul %66, %68, %cst_44 {dimension_numbers = #tpu.dot_dimension_numbers<[1], [0], [0], [1], [0, 0, 1, 1], [], []>} : vector<64x65xf32>, vector<65x84xf32>, vector<64x84xf32> -> vector<64x84xf32>
    %70 = arith.addf %65, %69 : vector<64x84xf32>
    %71 = vector.extract_strided_slice %64 {offsets = [1, 0], sizes = [64, 65], strides = [1, 1]} : vector<65x65xf32> to vector<64x65xf32>
    %c1_45 = arith.constant 1 : index
    %c0_46 = arith.constant 0 : index
    %c0_47 = arith.constant 0 : index
    %72 = vector.load %arg5[%c1_45, %c0_46, %c0_47] : memref<2x65x84xf32, #tpu.memory_space<vmem>>, vector<1x65x84xf32>
    %73 = vector.shape_cast %72 : vector<1x65x84xf32> to vector<65x84xf32>
    %cst_48 = arith.constant dense<0.000000e+00> : vector<64x84xf32>
    %74 = tpu.matmul %71, %73, %cst_48 {dimension_numbers = #tpu.dot_dimension_numbers<[1], [0], [0], [1], [0, 0, 1, 1], [], []>} : vector<64x65xf32>, vector<65x84xf32>, vector<64x84xf32> -> vector<64x84xf32>
    %75 = arith.addf %70, %74 : vector<64x84xf32>
    %c0_49 = arith.constant 0 : index
    %c0_50 = arith.constant 0 : index
    %76 = vector.load %arg6[%c0_49, %c0_50] : memref<1x84xf32, #tpu.memory_space<vmem>>, vector<1x84xf32>
    %77 = vector.broadcast %76 : vector<1x84xf32> to vector<64x84xf32>
    %78 = arith.addf %75, %77 : vector<64x84xf32>
    %79 = math.tanh %78 : vector<64x84xf32>
    %c0_51 = arith.constant 0 : index
    %c0_52 = arith.constant 0 : index
    %80 = vector.load %arg9[%c0_51, %c0_52] : memref<64x1xf32, #tpu.memory_space<vmem>>, vector<64x1xf32>
    %81 = vector.broadcast %80 : vector<64x1xf32> to vector<64x84xf32>
    %82 = arith.mulf %79, %81 : vector<64x84xf32>
    %c0_i32_53 = arith.constant 0 : i32
    %83 = tpu.memref_slice %arg16[%c0_i32_53] : memref<2x!tpu.dma_semaphore, #tpu.memory_space<semaphore_mem>> -> memref<1x!tpu.dma_semaphore, #tpu.memory_space<semaphore_mem>>
    %84 = tpu.memref_squeeze %83 : memref<1x!tpu.dma_semaphore, #tpu.memory_space<semaphore_mem>> -> memref<!tpu.dma_semaphore, #tpu.memory_space<semaphore_mem>>
    tpu.wait_dma2 semaphore(%84 : memref<!tpu.dma_semaphore, #tpu.memory_space<semaphore_mem>>) src(%arg11 : memref<3x84x108xf32, #tpu.memory_space<any>>) dst(%arg14 : memref<3x84x108xf32, #tpu.memory_space<vmem>>)
    %cst_54 = arith.constant 0.000000e+00 : f32
    %85 = vector.broadcast %cst_54 : f32 to vector<62x108xf32>
    %86 = vector.extract_strided_slice %82 {offsets = [0, 0], sizes = [62, 84], strides = [1, 1]} : vector<64x84xf32> to vector<62x84xf32>
    %c0_55 = arith.constant 0 : index
    %c0_56 = arith.constant 0 : index
    %c0_57 = arith.constant 0 : index
    %87 = vector.load %arg14[%c0_55, %c0_56, %c0_57] : memref<3x84x108xf32, #tpu.memory_space<vmem>>, vector<1x84x108xf32>
    %88 = vector.shape_cast %87 : vector<1x84x108xf32> to vector<84x108xf32>
    %cst_58 = arith.constant dense<0.000000e+00> : vector<62x108xf32>
    %89 = tpu.matmul %86, %88, %cst_58 {dimension_numbers = #tpu.dot_dimension_numbers<[1], [0], [0], [1], [0, 0, 1, 1], [], []>} : vector<62x84xf32>, vector<84x108xf32>, vector<62x108xf32> -> vector<62x108xf32>
    %90 = arith.addf %85, %89 : vector<62x108xf32>
    %91 = vector.extract_strided_slice %82 {offsets = [1, 0], sizes = [62, 84], strides = [1, 1]} : vector<64x84xf32> to vector<62x84xf32>
    %c1_59 = arith.constant 1 : index
    %c0_60 = arith.constant 0 : index
    %c0_61 = arith.constant 0 : index
    %92 = vector.load %arg14[%c1_59, %c0_60, %c0_61] : memref<3x84x108xf32, #tpu.memory_space<vmem>>, vector<1x84x108xf32>
    %93 = vector.shape_cast %92 : vector<1x84x108xf32> to vector<84x108xf32>
    %cst_62 = arith.constant dense<0.000000e+00> : vector<62x108xf32>
    %94 = tpu.matmul %91, %93, %cst_62 {dimension_numbers = #tpu.dot_dimension_numbers<[1], [0], [0], [1], [0, 0, 1, 1], [], []>} : vector<62x84xf32>, vector<84x108xf32>, vector<62x108xf32> -> vector<62x108xf32>
    %95 = arith.addf %90, %94 : vector<62x108xf32>
    %96 = vector.extract_strided_slice %82 {offsets = [2, 0], sizes = [62, 84], strides = [1, 1]} : vector<64x84xf32> to vector<62x84xf32>
    %c2_63 = arith.constant 2 : index
    %c0_64 = arith.constant 0 : index
    %c0_65 = arith.constant 0 : index
    %97 = vector.load %arg14[%c2_63, %c0_64, %c0_65] : memref<3x84x108xf32, #tpu.memory_space<vmem>>, vector<1x84x108xf32>
    %98 = vector.shape_cast %97 : vector<1x84x108xf32> to vector<84x108xf32>
    %cst_66 = arith.constant dense<0.000000e+00> : vector<62x108xf32>
    %99 = tpu.matmul %96, %98, %cst_66 {dimension_numbers = #tpu.dot_dimension_numbers<[1], [0], [0], [1], [0, 0, 1, 1], [], []>} : vector<62x84xf32>, vector<84x108xf32>, vector<62x108xf32> -> vector<62x108xf32>
    %100 = arith.addf %95, %99 : vector<62x108xf32>
    %c0_67 = arith.constant 0 : index
    %c0_68 = arith.constant 0 : index
    %101 = vector.load %arg7[%c0_67, %c0_68] : memref<1x108xf32, #tpu.memory_space<vmem>>, vector<1x108xf32>
    %102 = vector.broadcast %101 : vector<1x108xf32> to vector<62x108xf32>
    %103 = arith.addf %100, %102 : vector<62x108xf32>
    %104 = math.tanh %103 : vector<62x108xf32>
    %c0_69 = arith.constant 0 : index
    %c0_70 = arith.constant 0 : index
    %105 = vector.load %arg10[%c0_69, %c0_70] : memref<62x1xf32, #tpu.memory_space<vmem>>, vector<62x1xf32>
    %106 = vector.broadcast %105 : vector<62x1xf32> to vector<62x108xf32>
    %107 = arith.mulf %104, %106 : vector<62x108xf32>
    %c1_i32_71 = arith.constant 1 : i32
    %108 = tpu.memref_slice %arg16[%c1_i32_71] : memref<2x!tpu.dma_semaphore, #tpu.memory_space<semaphore_mem>> -> memref<1x!tpu.dma_semaphore, #tpu.memory_space<semaphore_mem>>
    %109 = tpu.memref_squeeze %108 : memref<1x!tpu.dma_semaphore, #tpu.memory_space<semaphore_mem>> -> memref<!tpu.dma_semaphore, #tpu.memory_space<semaphore_mem>>
    tpu.wait_dma2 semaphore(%109 : memref<!tpu.dma_semaphore, #tpu.memory_space<semaphore_mem>>) src(%arg12 : memref<7x108x132xf32, #tpu.memory_space<any>>) dst(%arg15 : memref<7x108x132xf32, #tpu.memory_space<vmem>>)
    %cst_72 = arith.constant 0.000000e+00 : f32
    %110 = vector.broadcast %cst_72 : f32 to vector<56x132xf32>
    %111 = vector.extract_strided_slice %107 {offsets = [0, 0], sizes = [56, 108], strides = [1, 1]} : vector<62x108xf32> to vector<56x108xf32>
    %c0_73 = arith.constant 0 : index
    %c0_74 = arith.constant 0 : index
    %c0_75 = arith.constant 0 : index
    %112 = vector.load %arg15[%c0_73, %c0_74, %c0_75] : memref<7x108x132xf32, #tpu.memory_space<vmem>>, vector<1x108x132xf32>
    %113 = vector.shape_cast %112 : vector<1x108x132xf32> to vector<108x132xf32>
    %cst_76 = arith.constant dense<0.000000e+00> : vector<56x132xf32>
    %114 = tpu.matmul %111, %113, %cst_76 {dimension_numbers = #tpu.dot_dimension_numbers<[1], [0], [0], [1], [0, 0, 1, 1], [], []>} : vector<56x108xf32>, vector<108x132xf32>, vector<56x132xf32> -> vector<56x132xf32>
    %115 = arith.addf %110, %114 : vector<56x132xf32>
    %116 = vector.extract_strided_slice %107 {offsets = [1, 0], sizes = [56, 108], strides = [1, 1]} : vector<62x108xf32> to vector<56x108xf32>
    %c1_77 = arith.constant 1 : index
    %c0_78 = arith.constant 0 : index
    %c0_79 = arith.constant 0 : index
    %117 = vector.load %arg15[%c1_77, %c0_78, %c0_79] : memref<7x108x132xf32, #tpu.memory_space<vmem>>, vector<1x108x132xf32>
    %118 = vector.shape_cast %117 : vector<1x108x132xf32> to vector<108x132xf32>
    %cst_80 = arith.constant dense<0.000000e+00> : vector<56x132xf32>
    %119 = tpu.matmul %116, %118, %cst_80 {dimension_numbers = #tpu.dot_dimension_numbers<[1], [0], [0], [1], [0, 0, 1, 1], [], []>} : vector<56x108xf32>, vector<108x132xf32>, vector<56x132xf32> -> vector<56x132xf32>
    %120 = arith.addf %115, %119 : vector<56x132xf32>
    %121 = vector.extract_strided_slice %107 {offsets = [2, 0], sizes = [56, 108], strides = [1, 1]} : vector<62x108xf32> to vector<56x108xf32>
    %c2_81 = arith.constant 2 : index
    %c0_82 = arith.constant 0 : index
    %c0_83 = arith.constant 0 : index
    %122 = vector.load %arg15[%c2_81, %c0_82, %c0_83] : memref<7x108x132xf32, #tpu.memory_space<vmem>>, vector<1x108x132xf32>
    %123 = vector.shape_cast %122 : vector<1x108x132xf32> to vector<108x132xf32>
    %cst_84 = arith.constant dense<0.000000e+00> : vector<56x132xf32>
    %124 = tpu.matmul %121, %123, %cst_84 {dimension_numbers = #tpu.dot_dimension_numbers<[1], [0], [0], [1], [0, 0, 1, 1], [], []>} : vector<56x108xf32>, vector<108x132xf32>, vector<56x132xf32> -> vector<56x132xf32>
    %125 = arith.addf %120, %124 : vector<56x132xf32>
    %126 = vector.extract_strided_slice %107 {offsets = [3, 0], sizes = [56, 108], strides = [1, 1]} : vector<62x108xf32> to vector<56x108xf32>
    %c3_85 = arith.constant 3 : index
    %c0_86 = arith.constant 0 : index
    %c0_87 = arith.constant 0 : index
    %127 = vector.load %arg15[%c3_85, %c0_86, %c0_87] : memref<7x108x132xf32, #tpu.memory_space<vmem>>, vector<1x108x132xf32>
    %128 = vector.shape_cast %127 : vector<1x108x132xf32> to vector<108x132xf32>
    %cst_88 = arith.constant dense<0.000000e+00> : vector<56x132xf32>
    %129 = tpu.matmul %126, %128, %cst_88 {dimension_numbers = #tpu.dot_dimension_numbers<[1], [0], [0], [1], [0, 0, 1, 1], [], []>} : vector<56x108xf32>, vector<108x132xf32>, vector<56x132xf32> -> vector<56x132xf32>
    %130 = arith.addf %125, %129 : vector<56x132xf32>
    %131 = vector.extract_strided_slice %107 {offsets = [4, 0], sizes = [56, 108], strides = [1, 1]} : vector<62x108xf32> to vector<56x108xf32>
    %c4_89 = arith.constant 4 : index
    %c0_90 = arith.constant 0 : index
    %c0_91 = arith.constant 0 : index
    %132 = vector.load %arg15[%c4_89, %c0_90, %c0_91] : memref<7x108x132xf32, #tpu.memory_space<vmem>>, vector<1x108x132xf32>
    %133 = vector.shape_cast %132 : vector<1x108x132xf32> to vector<108x132xf32>
    %cst_92 = arith.constant dense<0.000000e+00> : vector<56x132xf32>
    %134 = tpu.matmul %131, %133, %cst_92 {dimension_numbers = #tpu.dot_dimension_numbers<[1], [0], [0], [1], [0, 0, 1, 1], [], []>} : vector<56x108xf32>, vector<108x132xf32>, vector<56x132xf32> -> vector<56x132xf32>
    %135 = arith.addf %130, %134 : vector<56x132xf32>
    %136 = vector.extract_strided_slice %107 {offsets = [5, 0], sizes = [56, 108], strides = [1, 1]} : vector<62x108xf32> to vector<56x108xf32>
    %c5_93 = arith.constant 5 : index
    %c0_94 = arith.constant 0 : index
    %c0_95 = arith.constant 0 : index
    %137 = vector.load %arg15[%c5_93, %c0_94, %c0_95] : memref<7x108x132xf32, #tpu.memory_space<vmem>>, vector<1x108x132xf32>
    %138 = vector.shape_cast %137 : vector<1x108x132xf32> to vector<108x132xf32>
    %cst_96 = arith.constant dense<0.000000e+00> : vector<56x132xf32>
    %139 = tpu.matmul %136, %138, %cst_96 {dimension_numbers = #tpu.dot_dimension_numbers<[1], [0], [0], [1], [0, 0, 1, 1], [], []>} : vector<56x108xf32>, vector<108x132xf32>, vector<56x132xf32> -> vector<56x132xf32>
    %140 = arith.addf %135, %139 : vector<56x132xf32>
    %141 = vector.extract_strided_slice %107 {offsets = [6, 0], sizes = [56, 108], strides = [1, 1]} : vector<62x108xf32> to vector<56x108xf32>
    %c6_97 = arith.constant 6 : index
    %c0_98 = arith.constant 0 : index
    %c0_99 = arith.constant 0 : index
    %142 = vector.load %arg15[%c6_97, %c0_98, %c0_99] : memref<7x108x132xf32, #tpu.memory_space<vmem>>, vector<1x108x132xf32>
    %143 = vector.shape_cast %142 : vector<1x108x132xf32> to vector<108x132xf32>
    %cst_100 = arith.constant dense<0.000000e+00> : vector<56x132xf32>
    %144 = tpu.matmul %141, %143, %cst_100 {dimension_numbers = #tpu.dot_dimension_numbers<[1], [0], [0], [1], [0, 0, 1, 1], [], []>} : vector<56x108xf32>, vector<108x132xf32>, vector<56x132xf32> -> vector<56x132xf32>
    %145 = arith.addf %140, %144 : vector<56x132xf32>
    %c0_101 = arith.constant 0 : index
    %c0_102 = arith.constant 0 : index
    %146 = vector.load %arg8[%c0_101, %c0_102] : memref<1x132xf32, #tpu.memory_space<vmem>>, vector<1x132xf32>
    %147 = vector.broadcast %146 : vector<1x132xf32> to vector<56x132xf32>
    %148 = arith.addf %145, %147 : vector<56x132xf32>
    %149 = vector.extract_strided_slice %148 {offsets = [0, 0], sizes = [8, 132], strides = [1, 1]} : vector<56x132xf32> to vector<8x132xf32>
    %c0_103 = arith.constant 0 : index
    %c0_104 = arith.constant 0 : index
    %c0_105 = arith.constant 0 : index
    %150 = vector.load %arg13[%c0_103, %c0_104, %c0_105] : memref<3x8x132xf32, #tpu.memory_space<vmem>>, vector<1x8x132xf32>
    %151 = vector.shape_cast %150 : vector<1x8x132xf32> to vector<8x132xf32>
    %152 = vector.shape_cast %149 : vector<8x132xf32> to vector<1x8x132xf32>
    tpu.vector_store %arg13[%c0_103, %c0_104, %c0_105], %152 {strides = array<i32>} : memref<3x8x132xf32, #tpu.memory_space<vmem>>, vector<1x8x132xf32>,
    %153 = vector.extract_strided_slice %148 {offsets = [24, 0], sizes = [8, 132], strides = [1, 1]} : vector<56x132xf32> to vector<8x132xf32>
    %c1_106 = arith.constant 1 : index
    %c0_107 = arith.constant 0 : index
    %c0_108 = arith.constant 0 : index
    %154 = vector.load %arg13[%c1_106, %c0_107, %c0_108] : memref<3x8x132xf32, #tpu.memory_space<vmem>>, vector<1x8x132xf32>
    %155 = vector.shape_cast %154 : vector<1x8x132xf32> to vector<8x132xf32>
    %156 = vector.shape_cast %153 : vector<8x132xf32> to vector<1x8x132xf32>
    tpu.vector_store %arg13[%c1_106, %c0_107, %c0_108], %156 {strides = array<i32>} : memref<3x8x132xf32, #tpu.memory_space<vmem>>, vector<1x8x132xf32>,
    %157 = vector.extract_strided_slice %148 {offsets = [48, 0], sizes = [8, 132], strides = [1, 1]} : vector<56x132xf32> to vector<8x132xf32>
    %c2_109 = arith.constant 2 : index
    %c0_110 = arith.constant 0 : index
    %c0_111 = arith.constant 0 : index
    %158 = vector.load %arg13[%c2_109, %c0_110, %c0_111] : memref<3x8x132xf32, #tpu.memory_space<vmem>>, vector<1x8x132xf32>
    %159 = vector.shape_cast %158 : vector<1x8x132xf32> to vector<8x132xf32>
    %160 = vector.shape_cast %157 : vector<8x132xf32> to vector<1x8x132xf32>
    tpu.vector_store %arg13[%c2_109, %c0_110, %c0_111], %160 {strides = array<i32>} : memref<3x8x132xf32, #tpu.memory_space<vmem>>, vector<1x8x132xf32>,
    return
  }
}

</mosaic_0001>

<llo_original>
// kernel: tile.38
$region0: #{tile.38}
  #allocation0 [shape = 's32[1]{0}', space=sflag, size = 0x4, scoped, tag = 'scoped memory for tile.38']
  %s0 = inlined_call_operand.vmem [shape: f32[11], index: 0, kind: input, shape index: {}]
  %s1 = inlined_call_operand.vmem [shape: f32[12,11], index: 1, kind: output, shape index: {}]
  // Predicated region
  $region2: #{tile.38} parent=0 // pred_check
    _
  $region3: #{tile.38} parent=0 // pred_check_branch
    %3 = sbr.rel (0) target = $region5
  $region4: #{tile.38} parent=0 // pred_region
    _
  $region5: #{tile.38} parent=0 // pred_fallthru
    _
  %v4 = vld [vmem:[%s0] ss:$0 sm:$0xff]
  %5 = vst [vmem:[%s1] sm:$0xff] %v4
  %s6 = scalar_lea.vmem %s1, 8
  %7 = vst [vmem:[%s6] sm:$0xff] %v4

// kernel: tile.39
$region0: #{tile.39}
  %s0 = inlined_call_operand.vmem [shape: f32[12,11], index: 0, kind: input, shape index: {}]
  %s1 = inlined_call_operand.vmem [shape: f32[1,132], index: 1, kind: output, shape index: {}]
  $region1: #{tile.39} parent=0
    #allocation0 [shape = 'u8[8192]{0}', space=vmem, size = 0x2000, scoped, tag = 'scoped mem for output reshape']
    %v2 = vld [vmem:[%s0] sm:$0x1]
    %vm3 = vcmask 89088
    %4 = vst.msk [vmem:[#allocation0] sm:$0x1] %vm3, %v2
    %s5 = scalar_lea.vmem %s0, 11
    %v6 = vld [vmem:[%s5] sm:$0x1]
    %s7 = scalar_lea.vmem %s0, 11
    %v8 = vld [vmem:[%s7] sm:$0x1]
    %vm9 = vcmask 56320
    %v10 = vsel %vm9, %v8, %v6
    %11 = vrot.lane.b32.xlu0 %v10, 121
    %v12 = vpop.permute.xlu0 %11
    %vm13 = vcmask 31744
    %s14 = scalar_lea.vmem [#allocation0], 8
    %15 = vst.msk [vmem:[%s14] sm:$0x1] %vm13, %v12
    %vm16 = vcmask 1048520
    %17 = vst.msk [vmem:[#allocation0] sm:$0x1] %vm16, %v12
    %s18 = scalar_lea.vmem %s0, 10
    %v19 = vld [vmem:[%s18] sm:$0x1]
    %20 = vrot.lane.b32.xlu0 %v19, 110
    %v21 = vpop.permute.xlu0 %20
    %vm22 = vcmask 991088
    %23 = vst.msk [vmem:[#allocation0] sm:$0x1] %vm22, %v21
    %s24 = scalar_lea.vmem %s0, 9
    %v25 = vld [vmem:[%s24] sm:$0x1]
    %26 = vrot.lane.b32.xlu0 %v25, 99
    %v27 = vpop.permute.xlu0 %26
    %vm28 = vcmask 900888
    %29 = vst.msk [vmem:[#allocation0] sm:$0x1] %vm28, %v27
    %s30 = scalar_lea.vmem %s0, 8
    %v31 = vld [vmem:[%s30] sm:$0x1]
    %32 = vrot.lane.b32.xlu0 %v31, 88
    %v33 = vpop.permute.xlu0 %32
    %vm34 = vcmask 810688
    %35 = vst.msk [vmem:[#allocation0] sm:$0x1] %vm34, %v33
    %s36 = scalar_lea.vmem %s0, 7
    %v37 = vld [vmem:[%s36] sm:$0x1]
    %38 = vrot.lane.b32.xlu0 %v37, 77
    %v39 = vpop.permute.xlu0 %38
    %vm40 = vcmask 720488
    %41 = vst.msk [vmem:[#allocation0] sm:$0x1] %vm40, %v39
    %s42 = scalar_lea.vmem %s0, 6
    %v43 = vld [vmem:[%s42] sm:$0x1]
    %44 = vrot.lane.b32.xlu0 %v43, 66
    %v45 = vpop.permute.xlu0 %44
    %vm46 = vcmask 630288
    %47 = vst.msk [vmem:[#allocation0] sm:$0x1] %vm46, %v45
    %s48 = scalar_lea.vmem %s0, 5
    %v49 = vld [vmem:[%s48] sm:$0x1]
    %50 = vrot.lane.b32.xlu0 %v49, 55
    %v51 = vpop.permute.xlu0 %50
    %vm52 = vcmask 540088
    %53 = vst.msk [vmem:[#allocation0] sm:$0x1] %vm52, %v51
    %s54 = scalar_lea.vmem %s0, 4
    %v55 = vld [vmem:[%s54] sm:$0x1]
    %56 = vrot.lane.b32.xlu0 %v55, 44
    %v57 = vpop.permute.xlu0 %56
    %vm58 = vcmask 449888
    %59 = vst.msk [vmem:[#allocation0] sm:$0x1] %vm58, %v57
    %s60 = scalar_lea.vmem %s0, 3
    %v61 = vld [vmem:[%s60] sm:$0x1]
    %62 = vrot.lane.b32.xlu0 %v61, 33
    %v63 = vpop.permute.xlu0 %62
    %vm64 = vcmask 359688
    %65 = vst.msk [vmem:[#allocation0] sm:$0x1] %vm64, %v63
    %s66 = scalar_lea.vmem %s0, 2
    %v67 = vld [vmem:[%s66] sm:$0x1]
    %68 = vrot.lane.b32.xlu0 %v67, 22
    %v69 = vpop.permute.xlu0 %68
    %vm70 = vcmask 269488
    %71 = vst.msk [vmem:[#allocation0] sm:$0x1] %vm70, %v69
    %s72 = scalar_lea.vmem %s0, 1
    %v73 = vld [vmem:[%s72] sm:$0x1]
    %74 = vrot.lane.b32.xlu0 %v73, 11
    %v75 = vpop.permute.xlu0 %74
    %vm76 = vcmask 179288
    %77 = vst.msk [vmem:[#allocation0] sm:$0x1] %vm76, %v75
    %s79 = sshllo.u32 0, 1
    %v81 = vld [vmem:[#allocation0] sm:%s79]
    %s82 = sshllo.u32 0, 1
    %83 = vst [vmem:[%s1] sm:%s82] %v81
    %s84 = scalar_lea.vmem [#allocation0], 8
    %v85 = vld [vmem:[%s84] sm:%s79]
    %s86 = sshllo.u32 0, 1
    %s87 = scalar_lea.vmem %s1, 1
    %88 = vst [vmem:[%s87] sm:%s86] %v85

// kernel: tile.22
$region0: #{tile.22}
  #allocation0 [shape = 's32[1]{0}', space=sflag, size = 0x4, scoped, tag = 'scoped memory for tile.22']
  %s0 = inlined_call_operand.vmem [shape: f32[3], index: 0, kind: input, shape index: {}]
  %s1 = inlined_call_operand.vmem [shape: f32[15,3], index: 1, kind: output, shape index: {}]
  // Predicated region
  $region2: #{tile.22} parent=0 // pred_check
    _
  $region3: #{tile.22} parent=0 // pred_check_branch
    %3 = sbr.rel (0) target = $region5
  $region4: #{tile.22} parent=0 // pred_region
    _
  $region5: #{tile.22} parent=0 // pred_fallthru
    _
  %v4 = vld [vmem:[%s0] ss:$0 sm:$0xff]
  %5 = vst [vmem:[%s1] sm:$0xff] %v4
  %s6 = scalar_lea.vmem %s1, 8
  %7 = vst [vmem:[%s6] sm:$0xff] %v4

// kernel: tile.23
$region0: #{tile.23}
  %s0 = inlined_call_operand.vmem [shape: f32[15,3], index: 0, kind: input, shape index: {}]
  %s1 = inlined_call_operand.vmem [shape: f32[1,45], index: 1, kind: output, shape index: {}]
  $region1: #{tile.23} parent=0
    #allocation0 [shape = 'u8[4096]{0}', space=vmem, size = 0x1000, scoped, tag = 'scoped mem for output reshape']
    %v2 = vld [vmem:[%s0] sm:$0x1]
    %vm3 = vcmask 23552
    %4 = vst.msk [vmem:[#allocation0] sm:$0x1] %vm3, %v2
    %s5 = scalar_lea.vmem %s0, 14
    %v6 = vld [vmem:[%s5] sm:$0x1]
    %7 = vrot.lane.b32.xlu0 %v6, 42
    %v8 = vpop.permute.xlu0 %7
    %vm9 = vcmask 367952
    %10 = vst.msk [vmem:[#allocation0] sm:$0x1] %vm9, %v8
    %s11 = scalar_lea.vmem %s0, 13
    %v12 = vld [vmem:[%s11] sm:$0x1]
    %13 = vrot.lane.b32.xlu0 %v12, 39
    %v14 = vpop.permute.xlu0 %13
    %vm15 = vcmask 343352
    %16 = vst.msk [vmem:[#allocation0] sm:$0x1] %vm15, %v14
    %s17 = scalar_lea.vmem %s0, 12
    %v18 = vld [vmem:[%s17] sm:$0x1]
    %19 = vrot.lane.b32.xlu0 %v18, 36
    %v20 = vpop.permute.xlu0 %19
    %vm21 = vcmask 318752
    %22 = vst.msk [vmem:[#allocation0] sm:$0x1] %vm21, %v20
    %s23 = scalar_lea.vmem %s0, 11
    %v24 = vld [vmem:[%s23] sm:$0x1]
    %25 = vrot.lane.b32.xlu0 %v24, 33
    %v26 = vpop.permute.xlu0 %25
    %vm27 = vcmask 294152
    %28 = vst.msk [vmem:[#allocation0] sm:$0x1] %vm27, %v26
    %s29 = scalar_lea.vmem %s0, 10
    %v30 = vld [vmem:[%s29] sm:$0x1]
    %31 = vrot.lane.b32.xlu0 %v30, 30
    %v32 = vpop.permute.xlu0 %31
    %vm33 = vcmask 269552
    %34 = vst.msk [vmem:[#allocation0] sm:$0x1] %vm33, %v32
    %s35 = scalar_lea.vmem %s0, 9
    %v36 = vld [vmem:[%s35] sm:$0x1]
    %37 = vrot.lane.b32.xlu0 %v36, 27
    %v38 = vpop.permute.xlu0 %37
    %vm39 = vcmask 244952
    %40 = vst.msk [vmem:[#allocation0] sm:$0x1] %vm39, %v38
    %s41 = scalar_lea.vmem %s0, 8
    %v42 = vld [vmem:[%s41] sm:$0x1]
    %43 = vrot.lane.b32.xlu0 %v42, 24
    %v44 = vpop.permute.xlu0 %43
    %vm45 = vcmask 220352
    %46 = vst.msk [vmem:[#allocation0] sm:$0x1] %vm45, %v44
    %s47 = scalar_lea.vmem %s0, 7
    %v48 = vld [vmem:[%s47] sm:$0x1]
    %49 = vrot.lane.b32.xlu0 %v48, 21
    %v50 = vpop.permute.xlu0 %49
    %vm51 = vcmask 195752
    %52 = vst.msk [vmem:[#allocation0] sm:$0x1] %vm51, %v50
    %s53 = scalar_lea.vmem %s0, 6
    %v54 = vld [vmem:[%s53] sm:$0x1]
    %55 = vrot.lane.b32.xlu0 %v54, 18
    %v56 = vpop.permute.xlu0 %55
    %vm57 = vcmask 171152
    %58 = vst.msk [vmem:[#allocation0] sm:$0x1] %vm57, %v56
    %s59 = scalar_lea.vmem %s0, 5
    %v60 = vld [vmem:[%s59] sm:$0x1]
    %61 = vrot.lane.b32.xlu0 %v60, 15
    %v62 = vpop.permute.xlu0 %61
    %vm63 = vcmask 146552
    %64 = vst.msk [vmem:[#allocation0] sm:$0x1] %vm63, %v62
    %s65 = scalar_lea.vmem %s0, 4
    %v66 = vld [vmem:[%s65] sm:$0x1]
    %67 = vrot.lane.b32.xlu0 %v66, 12
    %v68 = vpop.permute.xlu0 %67
    %vm69 = vcmask 121952
    %70 = vst.msk [vmem:[#allocation0] sm:$0x1] %vm69, %v68
    %s71 = scalar_lea.vmem %s0, 3
    %v72 = vld [vmem:[%s71] sm:$0x1]
    %73 = vrot.lane.b32.xlu0 %v72, 9
    %v74 = vpop.permute.xlu0 %73
    %vm75 = vcmask 97352
    %76 = vst.msk [vmem:[#allocation0] sm:$0x1] %vm75, %v74
    %s77 = scalar_lea.vmem %s0, 2
    %v78 = vld [vmem:[%s77] sm:$0x1]
    %79 = vrot.lane.b32.xlu0 %v78, 6
    %v80 = vpop.permute.xlu0 %79
    %vm81 = vcmask 72752
    %82 = vst.msk [vmem:[#allocation0] sm:$0x1] %vm81, %v80
    %s83 = scalar_lea.vmem %s0, 1
    %v84 = vld [vmem:[%s83] sm:$0x1]
    %85 = vrot.lane.b32.xlu0 %v84, 3
    %v86 = vpop.permute.xlu0 %85
    %vm87 = vcmask 48152
    %88 = vst.msk [vmem:[#allocation0] sm:$0x1] %vm87, %v86
    %s90 = sshllo.u32 0, 1
    %v92 = vld [vmem:[#allocation0] sm:%s90]
    %s93 = sshllo.u32 0, 1
    %94 = vst [vmem:[%s1] sm:%s93] %v92

// kernel: tile.26
$region0: #{tile.26}
  #allocation0 [shape = 's32[1]{0}', space=sflag, size = 0x4, scoped, tag = 'scoped memory for tile.26']
  %s0 = inlined_call_operand.vmem [shape: f32[5], index: 0, kind: input, shape index: {}]
  %s1 = inlined_call_operand.vmem [shape: f32[13,5], index: 1, kind: output, shape index: {}]
  // Predicated region
  $region2: #{tile.26} parent=0 // pred_check
    _
  $region3: #{tile.26} parent=0 // pred_check_branch
    %3 = sbr.rel (0) target = $region5
  $region4: #{tile.26} parent=0 // pred_region
    _
  $region5: #{tile.26} parent=0 // pred_fallthru
    _
  %v4 = vld [vmem:[%s0] ss:$0 sm:$0xff]
  %5 = vst [vmem:[%s1] sm:$0xff] %v4
  %s6 = scalar_lea.vmem %s1, 8
  %7 = vst [vmem:[%s6] sm:$0xff] %v4

// kernel: tile.27
$region0: #{tile.27}
  %s0 = inlined_call_operand.vmem [shape: f32[13,5], index: 0, kind: input, shape index: {}]
  %s1 = inlined_call_operand.vmem [shape: f32[1,65], index: 1, kind: output, shape index: {}]
  $region1: #{tile.27} parent=0
    #allocation0 [shape = 'u8[4096]{0}', space=vmem, size = 0x1000, scoped, tag = 'scoped mem for output reshape']
    %v2 = vld [vmem:[%s0] sm:$0x1]
    %vm3 = vcmask 39936
    %4 = vst.msk [vmem:[#allocation0] sm:$0x1] %vm3, %v2
    %s5 = scalar_lea.vmem %s0, 12
    %v6 = vld [vmem:[%s5] sm:$0x1]
    %7 = vrot.lane.b32.xlu0 %v6, 60
    %v8 = vpop.permute.xlu0 %7
    %vm9 = vcmask 531936
    %10 = vst.msk [vmem:[#allocation0] sm:$0x1] %vm9, %v8
    %s11 = scalar_lea.vmem %s0, 11
    %v12 = vld [vmem:[%s11] sm:$0x1]
    %13 = vrot.lane.b32.xlu0 %v12, 55
    %v14 = vpop.permute.xlu0 %13
    %vm15 = vcmask 490936
    %16 = vst.msk [vmem:[#allocation0] sm:$0x1] %vm15, %v14
    %s17 = scalar_lea.vmem %s0, 10
    %v18 = vld [vmem:[%s17] sm:$0x1]
    %19 = vrot.lane.b32.xlu0 %v18, 50
    %v20 = vpop.permute.xlu0 %19
    %vm21 = vcmask 449936
    %22 = vst.msk [vmem:[#allocation0] sm:$0x1] %vm21, %v20
    %s23 = scalar_lea.vmem %s0, 9
    %v24 = vld [vmem:[%s23] sm:$0x1]
    %25 = vrot.lane.b32.xlu0 %v24, 45
    %v26 = vpop.permute.xlu0 %25
    %vm27 = vcmask 408936
    %28 = vst.msk [vmem:[#allocation0] sm:$0x1] %vm27, %v26
    %s29 = scalar_lea.vmem %s0, 8
    %v30 = vld [vmem:[%s29] sm:$0x1]
    %31 = vrot.lane.b32.xlu0 %v30, 40
    %v32 = vpop.permute.xlu0 %31
    %vm33 = vcmask 367936
    %34 = vst.msk [vmem:[#allocation0] sm:$0x1] %vm33, %v32
    %s35 = scalar_lea.vmem %s0, 7
    %v36 = vld [vmem:[%s35] sm:$0x1]
    %37 = vrot.lane.b32.xlu0 %v36, 35
    %v38 = vpop.permute.xlu0 %37
    %vm39 = vcmask 326936
    %40 = vst.msk [vmem:[#allocation0] sm:$0x1] %vm39, %v38
    %s41 = scalar_lea.vmem %s0, 6
    %v42 = vld [vmem:[%s41] sm:$0x1]
    %43 = vrot.lane.b32.xlu0 %v42, 30
    %v44 = vpop.permute.xlu0 %43
    %vm45 = vcmask 285936
    %46 = vst.msk [vmem:[#allocation0] sm:$0x1] %vm45, %v44
    %s47 = scalar_lea.vmem %s0, 5
    %v48 = vld [vmem:[%s47] sm:$0x1]
    %49 = vrot.lane.b32.xlu0 %v48, 25
    %v50 = vpop.permute.xlu0 %49
    %vm51 = vcmask 244936
    %52 = vst.msk [vmem:[#allocation0] sm:$0x1] %vm51, %v50
    %s53 = scalar_lea.vmem %s0, 4
    %v54 = vld [vmem:[%s53] sm:$0x1]
    %55 = vrot.lane.b32.xlu0 %v54, 20
    %v56 = vpop.permute.xlu0 %55
    %vm57 = vcmask 203936
    %58 = vst.msk [vmem:[#allocation0] sm:$0x1] %vm57, %v56
    %s59 = scalar_lea.vmem %s0, 3
    %v60 = vld [vmem:[%s59] sm:$0x1]
    %61 = vrot.lane.b32.xlu0 %v60, 15
    %v62 = vpop.permute.xlu0 %61
    %vm63 = vcmask 162936
    %64 = vst.msk [vmem:[#allocation0] sm:$0x1] %vm63, %v62
    %s65 = scalar_lea.vmem %s0, 2
    %v66 = vld [vmem:[%s65] sm:$0x1]
    %67 = vrot.lane.b32.xlu0 %v66, 10
    %v68 = vpop.permute.xlu0 %67
    %vm69 = vcmask 121936
    %70 = vst.msk [vmem:[#allocation0] sm:$0x1] %vm69, %v68
    %s71 = scalar_lea.vmem %s0, 1
    %v72 = vld [vmem:[%s71] sm:$0x1]
    %73 = vrot.lane.b32.xlu0 %v72, 5
    %v74 = vpop.permute.xlu0 %73
    %vm75 = vcmask 80936
    %76 = vst.msk [vmem:[#allocation0] sm:$0x1] %vm75, %v74
    %s78 = sshllo.u32 0, 1
    %v80 = vld [vmem:[#allocation0] sm:%s78]
    %s81 = sshllo.u32 0, 1
    %82 = vst [vmem:[%s1] sm:%s81] %v80

// kernel: tile.30
$region0: #{tile.30}
  #allocation0 [shape = 's32[1]{0}', space=sflag, size = 0x4, scoped, tag = 'scoped memory for tile.30']
  %s0 = inlined_call_operand.vmem [shape: f32[7], index: 0, kind: input, shape index: {}]
  %s1 = inlined_call_operand.vmem [shape: f32[12,7], index: 1, kind: output, shape index: {}]
  // Predicated region
  $region2: #{tile.30} parent=0 // pred_check
    _
  $region3: #{tile.30} parent=0 // pred_check_branch
    %3 = sbr.rel (0) target = $region5
  $region4: #{tile.30} parent=0 // pred_region
    _
  $region5: #{tile.30} parent=0 // pred_fallthru
    _
  %v4 = vld [vmem:[%s0] ss:$0 sm:$0xff]
  %5 = vst [vmem:[%s1] sm:$0xff] %v4
  %s6 = scalar_lea.vmem %s1, 8
  %7 = vst [vmem:[%s6] sm:$0xff] %v4

// kernel: tile.31
$region0: #{tile.31}
  %s0 = inlined_call_operand.vmem [shape: f32[12,7], index: 0, kind: input, shape index: {}]
  %s1 = inlined_call_operand.vmem [shape: f32[1,84], index: 1, kind: output, shape index: {}]
  $region1: #{tile.31} parent=0
    #allocation0 [shape = 'u8[4096]{0}', space=vmem, size = 0x1000, scoped, tag = 'scoped mem for output reshape']
    %v2 = vld [vmem:[%s0] sm:$0x1]
    %vm3 = vcmask 56320
    %4 = vst.msk [vmem:[#allocation0] sm:$0x1] %vm3, %v2
    %s5 = scalar_lea.vmem %s0, 11
    %v6 = vld [vmem:[%s5] sm:$0x1]
    %7 = vrot.lane.b32.xlu0 %v6, 77
    %v8 = vpop.permute.xlu0 %7
    %vm9 = vcmask 687720
    %10 = vst.msk [vmem:[#allocation0] sm:$0x1] %vm9, %v8
    %s11 = scalar_lea.vmem %s0, 10
    %v12 = vld [vmem:[%s11] sm:$0x1]
    %13 = vrot.lane.b32.xlu0 %v12, 70
    %v14 = vpop.permute.xlu0 %13
    %vm15 = vcmask 630320
    %16 = vst.msk [vmem:[#allocation0] sm:$0x1] %vm15, %v14
    %s17 = scalar_lea.vmem %s0, 9
    %v18 = vld [vmem:[%s17] sm:$0x1]
    %19 = vrot.lane.b32.xlu0 %v18, 63
    %v20 = vpop.permute.xlu0 %19
    %vm21 = vcmask 572920
    %22 = vst.msk [vmem:[#allocation0] sm:$0x1] %vm21, %v20
    %s23 = scalar_lea.vmem %s0, 8
    %v24 = vld [vmem:[%s23] sm:$0x1]
    %25 = vrot.lane.b32.xlu0 %v24, 56
    %v26 = vpop.permute.xlu0 %25
    %vm27 = vcmask 515520
    %28 = vst.msk [vmem:[#allocation0] sm:$0x1] %vm27, %v26
    %s29 = scalar_lea.vmem %s0, 7
    %v30 = vld [vmem:[%s29] sm:$0x1]
    %31 = vrot.lane.b32.xlu0 %v30, 49
    %v32 = vpop.permute.xlu0 %31
    %vm33 = vcmask 458120
    %34 = vst.msk [vmem:[#allocation0] sm:$0x1] %vm33, %v32
    %s35 = scalar_lea.vmem %s0, 6
    %v36 = vld [vmem:[%s35] sm:$0x1]
    %37 = vrot.lane.b32.xlu0 %v36, 42
    %v38 = vpop.permute.xlu0 %37
    %vm39 = vcmask 400720
    %40 = vst.msk [vmem:[#allocation0] sm:$0x1] %vm39, %v38
    %s41 = scalar_lea.vmem %s0, 5
    %v42 = vld [vmem:[%s41] sm:$0x1]
    %43 = vrot.lane.b32.xlu0 %v42, 35
    %v44 = vpop.permute.xlu0 %43
    %vm45 = vcmask 343320
    %46 = vst.msk [vmem:[#allocation0] sm:$0x1] %vm45, %v44
    %s47 = scalar_lea.vmem %s0, 4
    %v48 = vld [vmem:[%s47] sm:$0x1]
    %49 = vrot.lane.b32.xlu0 %v48, 28
    %v50 = vpop.permute.xlu0 %49
    %vm51 = vcmask 285920
    %52 = vst.msk [vmem:[#allocation0] sm:$0x1] %vm51, %v50
    %s53 = scalar_lea.vmem %s0, 3
    %v54 = vld [vmem:[%s53] sm:$0x1]
    %55 = vrot.lane.b32.xlu0 %v54, 21
    %v56 = vpop.permute.xlu0 %55
    %vm57 = vcmask 228520
    %58 = vst.msk [vmem:[#allocation0] sm:$0x1] %vm57, %v56
    %s59 = scalar_lea.vmem %s0, 2
    %v60 = vld [vmem:[%s59] sm:$0x1]
    %61 = vrot.lane.b32.xlu0 %v60, 14
    %v62 = vpop.permute.xlu0 %61
    %vm63 = vcmask 171120
    %64 = vst.msk [vmem:[#allocation0] sm:$0x1] %vm63, %v62
    %s65 = scalar_lea.vmem %s0, 1
    %v66 = vld [vmem:[%s65] sm:$0x1]
    %67 = vrot.lane.b32.xlu0 %v66, 7
    %v68 = vpop.permute.xlu0 %67
    %vm69 = vcmask 113720
    %70 = vst.msk [vmem:[#allocation0] sm:$0x1] %vm69, %v68
    %s72 = sshllo.u32 0, 1
    %v74 = vld [vmem:[#allocation0] sm:%s72]
    %s75 = sshllo.u32 0, 1
    %76 = vst [vmem:[%s1] sm:%s75] %v74

// kernel: tile.34
$region0: #{tile.34}
  #allocation0 [shape = 's32[1]{0}', space=sflag, size = 0x4, scoped, tag = 'scoped memory for tile.34']
  %s0 = inlined_call_operand.vmem [shape: f32[9], index: 0, kind: input, shape index: {}]
  %s1 = inlined_call_operand.vmem [shape: f32[12,9], index: 1, kind: output, shape index: {}]
  // Predicated region
  $region2: #{tile.34} parent=0 // pred_check
    _
  $region3: #{tile.34} parent=0 // pred_check_branch
    %3 = sbr.rel (0) target = $region5
  $region4: #{tile.34} parent=0 // pred_region
    _
  $region5: #{tile.34} parent=0 // pred_fallthru
    _
  %v4 = vld [vmem:[%s0] ss:$0 sm:$0xff]
  %5 = vst [vmem:[%s1] sm:$0xff] %v4
  %s6 = scalar_lea.vmem %s1, 8
  %7 = vst [vmem:[%s6] sm:$0xff] %v4

// kernel: tile.35
$region0: #{tile.35}
  %s0 = inlined_call_operand.vmem [shape: f32[12,9], index: 0, kind: input, shape index: {}]
  %s1 = inlined_call_operand.vmem [shape: f32[1,108], index: 1, kind: output, shape index: {}]
  $region1: #{tile.35} parent=0
    #allocation0 [shape = 'u8[4096]{0}', space=vmem, size = 0x1000, scoped, tag = 'scoped mem for output reshape']
    %v2 = vld [vmem:[%s0] sm:$0x1]
    %vm3 = vcmask 72704
    %4 = vst.msk [vmem:[#allocation0] sm:$0x1] %vm3, %v2
    %s5 = scalar_lea.vmem %s0, 11
    %v6 = vld [vmem:[%s5] sm:$0x1]
    %7 = vrot.lane.b32.xlu0 %v6, 99
    %v8 = vpop.permute.xlu0 %7
    %vm9 = vcmask 884504
    %10 = vst.msk [vmem:[#allocation0] sm:$0x1] %vm9, %v8
    %s11 = scalar_lea.vmem %s0, 10
    %v12 = vld [vmem:[%s11] sm:$0x1]
    %13 = vrot.lane.b32.xlu0 %v12, 90
    %v14 = vpop.permute.xlu0 %13
    %vm15 = vcmask 810704
    %16 = vst.msk [vmem:[#allocation0] sm:$0x1] %vm15, %v14
    %s17 = scalar_lea.vmem %s0, 9
    %v18 = vld [vmem:[%s17] sm:$0x1]
    %19 = vrot.lane.b32.xlu0 %v18, 81
    %v20 = vpop.permute.xlu0 %19
    %vm21 = vcmask 736904
    %22 = vst.msk [vmem:[#allocation0] sm:$0x1] %vm21, %v20
    %s23 = scalar_lea.vmem %s0, 8
    %v24 = vld [vmem:[%s23] sm:$0x1]
    %25 = vrot.lane.b32.xlu0 %v24, 72
    %v26 = vpop.permute.xlu0 %25
    %vm27 = vcmask 663104
    %28 = vst.msk [vmem:[#allocation0] sm:$0x1] %vm27, %v26
    %s29 = scalar_lea.vmem %s0, 7
    %v30 = vld [vmem:[%s29] sm:$0x1]
    %31 = vrot.lane.b32.xlu0 %v30, 63
    %v32 = vpop.permute.xlu0 %31
    %vm33 = vcmask 589304
    %34 = vst.msk [vmem:[#allocation0] sm:$0x1] %vm33, %v32
    %s35 = scalar_lea.vmem %s0, 6
    %v36 = vld [vmem:[%s35] sm:$0x1]
    %37 = vrot.lane.b32.xlu0 %v36, 54
    %v38 = vpop.permute.xlu0 %37
    %vm39 = vcmask 515504
    %40 = vst.msk [vmem:[#allocation0] sm:$0x1] %vm39, %v38
    %s41 = scalar_lea.vmem %s0, 5
    %v42 = vld [vmem:[%s41] sm:$0x1]
    %43 = vrot.lane.b32.xlu0 %v42, 45
    %v44 = vpop.permute.xlu0 %43
    %vm45 = vcmask 441704
    %46 = vst.msk [vmem:[#allocation0] sm:$0x1] %vm45, %v44
    %s47 = scalar_lea.vmem %s0, 4
    %v48 = vld [vmem:[%s47] sm:$0x1]
    %49 = vrot.lane.b32.xlu0 %v48, 36
    %v50 = vpop.permute.xlu0 %49
    %vm51 = vcmask 367904
    %52 = vst.msk [vmem:[#allocation0] sm:$0x1] %vm51, %v50
    %s53 = scalar_lea.vmem %s0, 3
    %v54 = vld [vmem:[%s53] sm:$0x1]
    %55 = vrot.lane.b32.xlu0 %v54, 27
    %v56 = vpop.permute.xlu0 %55
    %vm57 = vcmask 294104
    %58 = vst.msk [vmem:[#allocation0] sm:$0x1] %vm57, %v56
    %s59 = scalar_lea.vmem %s0, 2
    %v60 = vld [vmem:[%s59] sm:$0x1]
    %61 = vrot.lane.b32.xlu0 %v60, 18
    %v62 = vpop.permute.xlu0 %61
    %vm63 = vcmask 220304
    %64 = vst.msk [vmem:[#allocation0] sm:$0x1] %vm63, %v62
    %s65 = scalar_lea.vmem %s0, 1
    %v66 = vld [vmem:[%s65] sm:$0x1]
    %67 = vrot.lane.b32.xlu0 %v66, 9
    %v68 = vpop.permute.xlu0 %67
    %vm69 = vcmask 146504
    %70 = vst.msk [vmem:[#allocation0] sm:$0x1] %vm69, %v68
    %s72 = sshllo.u32 0, 1
    %v74 = vld [vmem:[#allocation0] sm:%s72]
    %s75 = sshllo.u32 0, 1
    %76 = vst [vmem:[%s1] sm:%s75] %v74

// kernel: model_tanh_forward.1
$region0: #{model_tanh_forward.1}
  #allocation0 [shape = 'u32[]', space=smem, size = 0x4, offset = 0x4, fixed_abs, tag = 'smem constant byte address 0x4 - core index']
  #allocation1 [shape = 'u32[144,128]{1,0:T(1,128)}', space=vmem, size = 0x12000, scoped, tag = 'internal scratch']
  #allocation2 [shape = 'f32[3,84,108]{2,1,0:T(8,128)}', space=vmem, size = 0x21000, scoped, tag = 'scratch operand']
  #allocation3 [shape = 'f32[7,108,132]{2,1,0:T(8,128)}', space=vmem, size = 0xc4000, scoped, tag = 'scratch operand']
  #allocation4 [shape = 's32[2]{0}', space=sflag, size = 0x8, scoped, tag = 'scratch operand']
  #allocation5 [shape = 's32[]', space=sflag, size = 0x4, offset = 0, fixed_abs, tag = 'sflag constant byte address 0x0 - dummy sync flag']
  #allocation6 [shape = 's32[]', space=sflag, size = 0x4, offset = 0, fixed_abs, tag = 'sflag constant byte address 0x0 - dummy sync flag']
  %s0 = inlined_call_operand.vmem [shape: f32[73,21], index: 0, kind: input, shape index: {}]
  %s1 = inlined_call_operand.vmem [shape: f32[7,21,45], index: 1, kind: input, shape index: {}]
  %s2 = inlined_call_operand.vmem [shape: f32[1,45], index: 2, kind: input, shape index: {}]
  %s3 = inlined_call_operand.vmem [shape: f32[3,45,65], index: 3, kind: input, shape index: {}]
  %s4 = inlined_call_operand.vmem [shape: f32[1,65], index: 4, kind: input, shape index: {}]
  %s5 = inlined_call_operand.vmem [shape: f32[2,65,84], index: 5, kind: input, shape index: {}]
  %s6 = inlined_call_operand.vmem [shape: f32[1,84], index: 6, kind: input, shape index: {}]
  %s7 = inlined_call_operand.vmem [shape: f32[1,108], index: 7, kind: input, shape index: {}]
  %s8 = inlined_call_operand.vmem [shape: f32[1,132], index: 8, kind: input, shape index: {}]
  %s9 = inlined_call_operand.vmem [shape: f32[64,1], index: 9, kind: input, shape index: {}]
  %s10 = inlined_call_operand.vmem [shape: f32[62,1], index: 10, kind: input, shape index: {}]
  %s11 = inlined_call_operand.vmem [shape: f32[3,84,108], index: 11, kind: input, shape index: {}]
  %s12 = inlined_call_operand.vmem [shape: f32[7,108,132], index: 12, kind: input, shape index: {}]
  %s13 = inlined_call_operand.vmem [shape: f32[3,8,132], index: 13, kind: output, shape index: {}]
  %s14 = sld [smem:[#allocation0]]
  $region125: #{model_tanh_forward.1} parent=0
    _
  %s16 = ssub.s32 1, %s14
  %s17 = scalar_select 0, %s16, %s14
  // Predicated region
  $region2: #{model_tanh_forward.1} parent=0 // pred_check
    _
  $region3: #{model_tanh_forward.1} parent=0 // pred_check_branch
    %19 = sbr.rel (0) target = $region5
  $region4: #{model_tanh_forward.1} parent=0 // pred_region
    _
  $region5: #{model_tanh_forward.1} parent=0 // pred_fallthru
    _
  // Predicated region
  $region6: #{model_tanh_forward.1} parent=0 // pred_check
    _
  $region7: #{model_tanh_forward.1} parent=0 // pred_check_branch
    %21 = sbr.rel (0) target = $region9
  $region8: #{model_tanh_forward.1} parent=0 // pred_region
    _
  $region9: #{model_tanh_forward.1} parent=0 // pred_fallthru
    _
  // Predicated region
  $region10: #{model_tanh_forward.1} parent=0 // pred_check
    _
  $region11: #{model_tanh_forward.1} parent=0 // pred_check_branch
    %23 = sbr.rel (0) target = $region13
  $region12: #{model_tanh_forward.1} parent=0 // pred_region
    _
  $region13: #{model_tanh_forward.1} parent=0 // pred_fallthru
    _
  // Predicated region
  $region14: #{model_tanh_forward.1} parent=0 // pred_check
    _
  $region15: #{model_tanh_forward.1} parent=0 // pred_check_branch
    %25 = sbr.rel (0) target = $region17
  $region16: #{model_tanh_forward.1} parent=0 // pred_region
    _
  $region17: #{model_tanh_forward.1} parent=0 // pred_fallthru
    _
  // Predicated region
  $region18: #{model_tanh_forward.1} parent=0 // pred_check
    _
  $region19: #{model_tanh_forward.1} parent=0 // pred_check_branch
    %27 = sbr.rel (0) target = $region21
  $region20: #{model_tanh_forward.1} parent=0 // pred_region
    _
  $region21: #{model_tanh_forward.1} parent=0 // pred_fallthru
    _
  // Predicated region
  $region22: #{model_tanh_forward.1} parent=0 // pred_check
    _
  $region23: #{model_tanh_forward.1} parent=0 // pred_check_branch
    %29 = sbr.rel (0) target = $region25
  $region24: #{model_tanh_forward.1} parent=0 // pred_region
    _
  $region25: #{model_tanh_forward.1} parent=0 // pred_fallthru
    _
  // Predicated region
  $region26: #{model_tanh_forward.1} parent=0 // pred_check
    _
  $region27: #{model_tanh_forward.1} parent=0 // pred_check_branch
    %31 = sbr.rel (0) target = $region29
  $region28: #{model_tanh_forward.1} parent=0 // pred_region
    _
  $region29: #{model_tanh_forward.1} parent=0 // pred_fallthru
    _
  // Predicated region
  $region30: #{model_tanh_forward.1} parent=0 // pred_check
    _
  $region31: #{model_tanh_forward.1} parent=0 // pred_check_branch
    %33 = sbr.rel (0) target = $region33
  $region32: #{model_tanh_forward.1} parent=0 // pred_region
    _
  $region33: #{model_tanh_forward.1} parent=0 // pred_fallthru
    _
  // Predicated region
  $region34: #{model_tanh_forward.1} parent=0 // pred_check
    _
  $region35: #{model_tanh_forward.1} parent=0 // pred_check_branch
    %35 = sbr.rel (0) target = $region37
  $region36: #{model_tanh_forward.1} parent=0 // pred_region
    _
  $region37: #{model_tanh_forward.1} parent=0 // pred_fallthru
    _
  // Predicated region
  $region38: #{model_tanh_forward.1} parent=0 // pred_check
    _
  $region39: #{model_tanh_forward.1} parent=0 // pred_check_branch
    %37 = sbr.rel (0) target = $region41
  $region40: #{model_tanh_forward.1} parent=0 // pred_region
    _
  $region41: #{model_tanh_forward.1} parent=0 // pred_fallthru
    _
  // Predicated region
  $region42: #{model_tanh_forward.1} parent=0 // pred_check
    _
  $region43: #{model_tanh_forward.1} parent=0 // pred_check_branch
    %39 = sbr.rel (0) target = $region45
  $region44: #{model_tanh_forward.1} parent=0 // pred_region
    _
  $region45: #{model_tanh_forward.1} parent=0 // pred_fallthru
    _
  %p41 = scmp.lt.u32.totalorder 84, 8
  %p42 = pneg %p41
  // Predicated region
  $region46: #{model_tanh_forward.1} parent=0 // pred_check
    _
  $region47: #{model_tanh_forward.1} parent=0 // pred_check_branch
    %44 = sbr.rel (%p41) target = $region49
  $region48: #{model_tanh_forward.1} parent=0 // pred_region
    %s63 = sand.u32 84, 7
    %p64 = scmp.eq.s32.totalorder %s63, 0
    %p65 = pneg %p64
    // Predicated region
    $region61: #{model_tanh_forward.1} parent=48 // pred_check
      _
    $region62: #{model_tanh_forward.1} parent=48 // pred_check_branch
      %67 = sbr.rel (%p64) target = $region64
    $region63: #{model_tanh_forward.1} parent=48 // pred_region
      %s68 = sand.u32 84, 7
      %s69 = ssub.s32 84, %s68
      %s70 = scalar_lea.vmem %s11, %s69
      %s71 = ssub.s32 84, %s68
      %s72 = scalar_lea.vmem [#allocation2], %s71
      loop: start=0, step=1, limit=1
      $region65: #{model_tanh_forward.1} parent=63 // loop_pre_header
        _
      $region66: #{model_tanh_forward.1} parent=63 // loop_header
        %s74 = sphi 0, %s78
        %p75 = scmp.ge.s32.totalorder %s74, 1
        %s79 = sphi %s11, %s11
        %s80 = sphi [#allocation2], [#allocation2]
      $region67: #{model_tanh_forward.1} parent=63 // loop_header_branch
        %77 = sbr.rel (%p75) target = $region71
      $region68: #{model_tanh_forward.1} parent=63 // loop_body
        %v81 = vld [vmem:[%s79] sm:$0xff]
        %82 = vst [vmem:[%s80] sm:$0xff] %v81
        %v83 = vld [vmem:[%s79 + $0x8] sm:$0xff]
        %84 = vst [vmem:[%s80 + $0x8] sm:$0xff] %v83
        %v85 = vld [vmem:[%s79 + $0x10] sm:$0xff]
        %86 = vst [vmem:[%s80 + $0x10] sm:$0xff] %v85
        %v87 = vld [vmem:[%s79 + $0x18] sm:$0xff]
        %88 = vst [vmem:[%s80 + $0x18] sm:$0xff] %v87
        %v89 = vld [vmem:[%s79 + $0x20] sm:$0xff]
        %90 = vst [vmem:[%s80 + $0x20] sm:$0xff] %v89
        %v91 = vld [vmem:[%s79 + $0x28] sm:$0xff]
        %92 = vst [vmem:[%s80 + $0x28] sm:$0xff] %v91
        %v93 = vld [vmem:[%s79 + $0x30] sm:$0xff]
        %94 = vst [vmem:[%s80 + $0x30] sm:$0xff] %v93
        %v95 = vld [vmem:[%s79 + $0x38] sm:$0xff]
        %96 = vst [vmem:[%s80 + $0x38] sm:$0xff] %v95
        %v97 = vld [vmem:[%s79 + $0x40] sm:$0xff]
        %98 = vst [vmem:[%s80 + $0x40] sm:$0xff] %v97
        %v99 = vld [vmem:[%s79 + $0x48] sm:$0xff]
        %100 = vst [vmem:[%s80 + $0x48] sm:$0xff] %v99
        %v101 = vld [vmem:[%s79 + $0x58] sm:$0xff]
        %102 = vst [vmem:[%s80 + $0x58] sm:$0xff] %v101
        %v103 = vld [vmem:[%s79 + $0x60] sm:$0xff]
        %104 = vst [vmem:[%s80 + $0x60] sm:$0xff] %v103
        %v105 = vld [vmem:[%s79 + $0x68] sm:$0xff]
        %106 = vst [vmem:[%s80 + $0x68] sm:$0xff] %v105
        %v107 = vld [vmem:[%s79 + $0x70] sm:$0xff]
        %108 = vst [vmem:[%s80 + $0x70] sm:$0xff] %v107
        %v109 = vld [vmem:[%s79 + $0x78] sm:$0xff]
        %110 = vst [vmem:[%s80 + $0x78] sm:$0xff] %v109
        %v111 = vld [vmem:[%s79 + $0x80] sm:$0xff]
        %112 = vst [vmem:[%s80 + $0x80] sm:$0xff] %v111
        %v113 = vld [vmem:[%s79 + $0x88] sm:$0xff]
        %114 = vst [vmem:[%s80 + $0x88] sm:$0xff] %v113
        %v115 = vld [vmem:[%s79 + $0x90] sm:$0xff]
        %116 = vst [vmem:[%s80 + $0x90] sm:$0xff] %v115
        %v117 = vld [vmem:[%s79 + $0x98] sm:$0xff]
        %118 = vst [vmem:[%s80 + $0x98] sm:$0xff] %v117
        %v119 = vld [vmem:[%s79 + $0xa0] sm:$0xff]
        %120 = vst [vmem:[%s80 + $0xa0] sm:$0xff] %v119
        %v121 = vld [vmem:[%s79 + $0xb0] sm:$0xff]
        %122 = vst [vmem:[%s80 + $0xb0] sm:$0xff] %v121
        %v123 = vld [vmem:[%s79 + $0xb8] sm:$0xff]
        %124 = vst [vmem:[%s80 + $0xb8] sm:$0xff] %v123
        %v125 = vld [vmem:[%s79 + $0xc0] sm:$0xff]
        %126 = vst [vmem:[%s80 + $0xc0] sm:$0xff] %v125
        %v127 = vld [vmem:[%s79 + $0xc8] sm:$0xff]
        %128 = vst [vmem:[%s80 + $0xc8] sm:$0xff] %v127
        %v129 = vld [vmem:[%s79 + $0xd0] sm:$0xff]
        %130 = vst [vmem:[%s80 + $0xd0] sm:$0xff] %v129
        %v131 = vld [vmem:[%s79 + $0xd8] sm:$0xff]
        %132 = vst [vmem:[%s80 + $0xd8] sm:$0xff] %v131
        %v133 = vld [vmem:[%s79 + $0xe0] sm:$0xff]
        %134 = vst [vmem:[%s80 + $0xe0] sm:$0xff] %v133
        %v135 = vld [vmem:[%s79 + $0xe8] sm:$0xff]
        %136 = vst [vmem:[%s80 + $0xe8] sm:$0xff] %v135
        %v137 = vld [vmem:[%s79 + $0xf0] sm:$0xff]
        %138 = vst [vmem:[%s80 + $0xf0] sm:$0xff] %v137
        %v139 = vld [vmem:[%s79 + $0xf8] sm:$0xff]
        %140 = vst [vmem:[%s80 + $0xf8] sm:$0xff] %v139
      $region69: #{model_tanh_forward.1} parent=63 // loop_footer
        %s78 = sadd.s32 1, %s74
      $region70: #{model_tanh_forward.1} parent=63 // loop_footer_branch
        %73 = sbr.rel target = $region66
      $region71: #{model_tanh_forward.1} parent=63 // loop_exit
        _
      %s141 = sshllo.u32 0, %s68
      loop: start=0, step=1, limit=1
      $region72: #{model_tanh_forward.1} parent=63 // loop_pre_header
        _
      $region73: #{model_tanh_forward.1} parent=63 // loop_header
        %s143 = sphi 0, %s147
        %p144 = scmp.ge.s32.totalorder %s143, 1
        %s148 = sphi %s70, %s70
        %s149 = sphi %s72, %s72
      $region74: #{model_tanh_forward.1} parent=63 // loop_header_branch
        %146 = sbr.rel (%p144) target = $region78
      $region75: #{model_tanh_forward.1} parent=63 // loop_body
        %v150 = vld [vmem:[%s148] sm:%s141]
        %151 = vst [vmem:[%s149] sm:%s141] %v150
        %v152 = vld [vmem:[%s148 + $0x58] sm:%s141]
        %153 = vst [vmem:[%s149 + $0x58] sm:%s141] %v152
        %v154 = vld [vmem:[%s148 + $0xb0] sm:%s141]
        %155 = vst [vmem:[%s149 + $0xb0] sm:%s141] %v154
      $region76: #{model_tanh_forward.1} parent=63 // loop_footer
        %s147 = sadd.s32 1, %s143
      $region77: #{model_tanh_forward.1} parent=63 // loop_footer_branch
        %142 = sbr.rel target = $region73
      $region78: #{model_tanh_forward.1} parent=63 // loop_exit
        _
    $region64: #{model_tanh_forward.1} parent=48 // pred_fallthru
      _
  $region49: #{model_tanh_forward.1} parent=0 // pred_fallthru
    _
  // Predicated region
  $region50: #{model_tanh_forward.1} parent=0 // pred_check
    %p45 = pneg %p41
  $region51: #{model_tanh_forward.1} parent=0 // pred_check_branch
    %47 = sbr.rel (%p45) target = $region53
  $region52: #{model_tanh_forward.1} parent=0 // pred_region
    %s48 = sshllo.u32 0, 84
    loop: start=0, step=1, limit=1
    $region54: #{model_tanh_forward.1} parent=52 // loop_pre_header
      _
    $region55: #{model_tanh_forward.1} parent=52 // loop_header
      %s50 = sphi 0, %s54
      %p51 = scmp.ge.s32.totalorder %s50, 1
      %s55 = sphi %s11, %s11
      %s56 = sphi [#allocation2], [#allocation2]
    $region56: #{model_tanh_forward.1} parent=52 // loop_header_branch
      %53 = sbr.rel (%p51) target = $region60
    $region57: #{model_tanh_forward.1} parent=52 // loop_body
      %v57 = vld [vmem:[%s55] sm:%s48]
      %58 = vst [vmem:[%s56] sm:%s48] %v57
      %v59 = vld [vmem:[%s55 + $0x58] sm:%s48]
      %60 = vst [vmem:[%s56 + $0x58] sm:%s48] %v59
      %v61 = vld [vmem:[%s55 + $0xb0] sm:%s48]
      %62 = vst [vmem:[%s56 + $0xb0] sm:%s48] %v61
    $region58: #{model_tanh_forward.1} parent=52 // loop_footer
      %s54 = sadd.s32 1, %s50
    $region59: #{model_tanh_forward.1} parent=52 // loop_footer_branch
      %49 = sbr.rel target = $region55
    $region60: #{model_tanh_forward.1} parent=52 // loop_exit
      _
  $region53: #{model_tanh_forward.1} parent=0 // pred_fallthru
    _
  // Predicated region
  $region79: #{model_tanh_forward.1} parent=0 // pred_check
    _
  $region80: #{model_tanh_forward.1} parent=0 // pred_check_branch
    %158 = sbr.rel (0) target = $region82
  $region81: #{model_tanh_forward.1} parent=0 // pred_region
    %159 = vsyncadd [#allocation4], 4032
  $region82: #{model_tanh_forward.1} parent=0 // pred_fallthru
    _
  %s160 = scalar_lea.sflag [#allocation4], 1
  %p162 = scmp.lt.u32.totalorder 1568, 8
  %p163 = pneg %p162
  // Predicated region
  $region83: #{model_tanh_forward.1} parent=0 // pred_check
    _
  $region84: #{model_tanh_forward.1} parent=0 // pred_check_branch
    %165 = sbr.rel (%p162) target = $region86
  $region85: #{model_tanh_forward.1} parent=0 // pred_region
    %s180 = sand.u32 1568, 7
    %p181 = scmp.eq.s32.totalorder %s180, 0
    // Predicated region
    $region98: #{model_tanh_forward.1} parent=85 // pred_check
      %p182 = pneg %p181
    $region99: #{model_tanh_forward.1} parent=85 // pred_check_branch
      %184 = sbr.rel (%p182) target = $region101
    $region100: #{model_tanh_forward.1} parent=85 // pred_region
      loop: start=0, step=1, limit=1
      $region102: #{model_tanh_forward.1} parent=100 // loop_pre_header
        _
      $region103: #{model_tanh_forward.1} parent=100 // loop_header
        %s186 = sphi 0, %s190
        %p187 = scmp.ge.s32.totalorder %s186, 1
        %s191 = sphi %s12, %s12
        %s192 = sphi [#allocation3], [#allocation3]
      $region104: #{model_tanh_forward.1} parent=100 // loop_header_branch
        %189 = sbr.rel (%p187) target = $region108
      $region105: #{model_tanh_forward.1} parent=100 // loop_body
        %v193 = vld [vmem:[%s191] sm:$0xff]
        %194 = vst [vmem:[%s192] sm:$0xff] %v193
        %v195 = vld [vmem:[%s191 + $0x8] sm:$0xff]
        %196 = vst [vmem:[%s192 + $0x8] sm:$0xff] %v195
        %v197 = vld [vmem:[%s191 + $0x10] sm:$0xff]
        %198 = vst [vmem:[%s192 + $0x10] sm:$0xff] %v197
        %v199 = vld [vmem:[%s191 + $0x18] sm:$0xff]
        %200 = vst [vmem:[%s192 + $0x18] sm:$0xff] %v199
        %v201 = vld [vmem:[%s191 + $0x20] sm:$0xff]
        %202 = vst [vmem:[%s192 + $0x20] sm:$0xff] %v201
        %v203 = vld [vmem:[%s191 + $0x28] sm:$0xff]
        %204 = vst [vmem:[%s192 + $0x28] sm:$0xff] %v203
        %v205 = vld [vmem:[%s191 + $0x30] sm:$0xff]
        %206 = vst [vmem:[%s192 + $0x30] sm:$0xff] %v205
        %v207 = vld [vmem:[%s191 + $0x38] sm:$0xff]
        %208 = vst [vmem:[%s192 + $0x38] sm:$0xff] %v207
        %v209 = vld [vmem:[%s191 + $0x40] sm:$0xff]
        %210 = vst [vmem:[%s192 + $0x40] sm:$0xff] %v209
        %v211 = vld [vmem:[%s191 + $0x48] sm:$0xff]
        %212 = vst [vmem:[%s192 + $0x48] sm:$0xff] %v211
        %v213 = vld [vmem:[%s191 + $0x50] sm:$0xff]
        %214 = vst [vmem:[%s192 + $0x50] sm:$0xff] %v213
        %v215 = vld [vmem:[%s191 + $0x58] sm:$0xff]
        %216 = vst [vmem:[%s192 + $0x58] sm:$0xff] %v215
        %v217 = vld [vmem:[%s191 + $0x60] sm:$0xff]
        %218 = vst [vmem:[%s192 + $0x60] sm:$0xff] %v217
        %v219 = vld [vmem:[%s191 + $0x68] sm:$0xff]
        %220 = vst [vmem:[%s192 + $0x68] sm:$0xff] %v219
        %v221 = vld [vmem:[%s191 + $0x70] sm:$0xff]
        %222 = vst [vmem:[%s192 + $0x70] sm:$0xff] %v221
        %v223 = vld [vmem:[%s191 + $0x78] sm:$0xff]
        %224 = vst [vmem:[%s192 + $0x78] sm:$0xff] %v223
        %v225 = vld [vmem:[%s191 + $0x80] sm:$0xff]
        %226 = vst [vmem:[%s192 + $0x80] sm:$0xff] %v225
        %v227 = vld [vmem:[%s191 + $0x88] sm:$0xff]
        %228 = vst [vmem:[%s192 + $0x88] sm:$0xff] %v227
        %v229 = vld [vmem:[%s191 + $0x90] sm:$0xff]
        %230 = vst [vmem:[%s192 + $0x90] sm:$0xff] %v229
        %v231 = vld [vmem:[%s191 + $0x98] sm:$0xff]
        %232 = vst [vmem:[%s192 + $0x98] sm:$0xff] %v231
        %v233 = vld [vmem:[%s191 + $0xa0] sm:$0xff]
        %234 = vst [vmem:[%s192 + $0xa0] sm:$0xff] %v233
        %v235 = vld [vmem:[%s191 + $0xa8] sm:$0xff]
        %236 = vst [vmem:[%s192 + $0xa8] sm:$0xff] %v235
        %v237 = vld [vmem:[%s191 + $0xb0] sm:$0xff]
        %238 = vst [vmem:[%s192 + $0xb0] sm:$0xff] %v237
        %v239 = vld [vmem:[%s191 + $0xb8] sm:$0xff]
        %240 = vst [vmem:[%s192 + $0xb8] sm:$0xff] %v239
        %v241 = vld [vmem:[%s191 + $0xc0] sm:$0xff]
        %242 = vst [vmem:[%s192 + $0xc0] sm:$0xff] %v241
        %v243 = vld [vmem:[%s191 + $0xc8] sm:$0xff]
        %244 = vst [vmem:[%s192 + $0xc8] sm:$0xff] %v243
        %v245 = vld [vmem:[%s191 + $0xd0] sm:$0xff]
        %246 = vst [vmem:[%s192 + $0xd0] sm:$0xff] %v245
        %v247 = vld [vmem:[%s191 + $0xd8] sm:$0xff]
        %248 = vst [vmem:[%s192 + $0xd8] sm:$0xff] %v247
        %v249 = vld [vmem:[%s191 + $0xe0] sm:$0xff]
        %250 = vst [vmem:[%s192 + $0xe0] sm:$0xff] %v249
        %v251 = vld [vmem:[%s191 + $0xe8] sm:$0xff]
        %252 = vst [vmem:[%s192 + $0xe8] sm:$0xff] %v251
        %v253 = vld [vmem:[%s191 + $0xf0] sm:$0xff]
        %254 = vst [vmem:[%s192 + $0xf0] sm:$0xff] %v253
        %v255 = vld [vmem:[%s191 + $0xf8] sm:$0xff]
        %256 = vst [vmem:[%s192 + $0xf8] sm:$0xff] %v255
        %v257 = vld [vmem:[%s191 + $0x100] sm:$0xff]
        %258 = vst [vmem:[%s192 + $0x100] sm:$0xff] %v257
        %v259 = vld [vmem:[%s191 + $0x108] sm:$0xff]
        %260 = vst [vmem:[%s192 + $0x108] sm:$0xff] %v259
        %v261 = vld [vmem:[%s191 + $0x110] sm:$0xff]
        %262 = vst [vmem:[%s192 + $0x110] sm:$0xff] %v261
        %v263 = vld [vmem:[%s191 + $0x118] sm:$0xff]
        %264 = vst [vmem:[%s192 + $0x118] sm:$0xff] %v263
        %v265 = vld [vmem:[%s191 + $0x120] sm:$0xff]
        %266 = vst [vmem:[%s192 + $0x120] sm:$0xff] %v265
        %v267 = vld [vmem:[%s191 + $0x128] sm:$0xff]
        %268 = vst [vmem:[%s192 + $0x128] sm:$0xff] %v267
        %v269 = vld [vmem:[%s191 + $0x130] sm:$0xff]
        %270 = vst [vmem:[%s192 + $0x130] sm:$0xff] %v269
        %v271 = vld [vmem:[%s191 + $0x138] sm:$0xff]
        %272 = vst [vmem:[%s192 + $0x138] sm:$0xff] %v271
        %v273 = vld [vmem:[%s191 + $0x140] sm:$0xff]
        %274 = vst [vmem:[%s192 + $0x140] sm:$0xff] %v273
        %v275 = vld [vmem:[%s191 + $0x148] sm:$0xff]
        %276 = vst [vmem:[%s192 + $0x148] sm:$0xff] %v275
        %v277 = vld [vmem:[%s191 + $0x150] sm:$0xff]
        %278 = vst [vmem:[%s192 + $0x150] sm:$0xff] %v277
        %v279 = vld [vmem:[%s191 + $0x158] sm:$0xff]
        %280 = vst [vmem:[%s192 + $0x158] sm:$0xff] %v279
        %v281 = vld [vmem:[%s191 + $0x160] sm:$0xff]
        %282 = vst [vmem:[%s192 + $0x160] sm:$0xff] %v281
        %v283 = vld [vmem:[%s191 + $0x168] sm:$0xff]
        %284 = vst [vmem:[%s192 + $0x168] sm:$0xff] %v283
        %v285 = vld [vmem:[%s191 + $0x170] sm:$0xff]
        %286 = vst [vmem:[%s192 + $0x170] sm:$0xff] %v285
        %v287 = vld [vmem:[%s191 + $0x178] sm:$0xff]
        %288 = vst [vmem:[%s192 + $0x178] sm:$0xff] %v287
        %v289 = vld [vmem:[%s191 + $0x180] sm:$0xff]
        %290 = vst [vmem:[%s192 + $0x180] sm:$0xff] %v289
        %v291 = vld [vmem:[%s191 + $0x188] sm:$0xff]
        %292 = vst [vmem:[%s192 + $0x188] sm:$0xff] %v291
        %v293 = vld [vmem:[%s191 + $0x190] sm:$0xff]
        %294 = vst [vmem:[%s192 + $0x190] sm:$0xff] %v293
        %v295 = vld [vmem:[%s191 + $0x198] sm:$0xff]
        %296 = vst [vmem:[%s192 + $0x198] sm:$0xff] %v295
        %v297 = vld [vmem:[%s191 + $0x1a0] sm:$0xff]
        %298 = vst [vmem:[%s192 + $0x1a0] sm:$0xff] %v297
        %v299 = vld [vmem:[%s191 + $0x1a8] sm:$0xff]
        %300 = vst [vmem:[%s192 + $0x1a8] sm:$0xff] %v299
        %v301 = vld [vmem:[%s191 + $0x1b0] sm:$0xff]
        %302 = vst [vmem:[%s192 + $0x1b0] sm:$0xff] %v301
        %v303 = vld [vmem:[%s191 + $0x1b8] sm:$0xff]
        %304 = vst [vmem:[%s192 + $0x1b8] sm:$0xff] %v303
        %v305 = vld [vmem:[%s191 + $0x1c0] sm:$0xff]
        %306 = vst [vmem:[%s192 + $0x1c0] sm:$0xff] %v305
        %v307 = vld [vmem:[%s191 + $0x1c8] sm:$0xff]
        %308 = vst [vmem:[%s192 + $0x1c8] sm:$0xff] %v307
        %v309 = vld [vmem:[%s191 + $0x1d0] sm:$0xff]
        %310 = vst [vmem:[%s192 + $0x1d0] sm:$0xff] %v309
        %v311 = vld [vmem:[%s191 + $0x1d8] sm:$0xff]
        %312 = vst [vmem:[%s192 + $0x1d8] sm:$0xff] %v311
        %v313 = vld [vmem:[%s191 + $0x1e0] sm:$0xff]
        %314 = vst [vmem:[%s192 + $0x1e0] sm:$0xff] %v313
        %v315 = vld [vmem:[%s191 + $0x1e8] sm:$0xff]
        %316 = vst [vmem:[%s192 + $0x1e8] sm:$0xff] %v315
        %v317 = vld [vmem:[%s191 + $0x1f0] sm:$0xff]
        %318 = vst [vmem:[%s192 + $0x1f0] sm:$0xff] %v317
        %v319 = vld [vmem:[%s191 + $0x1f8] sm:$0xff]
        %320 = vst [vmem:[%s192 + $0x1f8] sm:$0xff] %v319
        %v321 = vld [vmem:[%s191 + $0x200] sm:$0xff]
        %322 = vst [vmem:[%s192 + $0x200] sm:$0xff] %v321
        %v323 = vld [vmem:[%s191 + $0x208] sm:$0xff]
        %324 = vst [vmem:[%s192 + $0x208] sm:$0xff] %v323
        %v325 = vld [vmem:[%s191 + $0x210] sm:$0xff]
        %326 = vst [vmem:[%s192 + $0x210] sm:$0xff] %v325
        %v327 = vld [vmem:[%s191 + $0x218] sm:$0xff]
        %328 = vst [vmem:[%s192 + $0x218] sm:$0xff] %v327
        %v329 = vld [vmem:[%s191 + $0x220] sm:$0xff]
        %330 = vst [vmem:[%s192 + $0x220] sm:$0xff] %v329
        %v331 = vld [vmem:[%s191 + $0x228] sm:$0xff]
        %332 = vst [vmem:[%s192 + $0x228] sm:$0xff] %v331
        %v333 = vld [vmem:[%s191 + $0x230] sm:$0xff]
        %334 = vst [vmem:[%s192 + $0x230] sm:$0xff] %v333
        %v335 = vld [vmem:[%s191 + $0x238] sm:$0xff]
        %336 = vst [vmem:[%s192 + $0x238] sm:$0xff] %v335
        %v337 = vld [vmem:[%s191 + $0x240] sm:$0xff]
        %338 = vst [vmem:[%s192 + $0x240] sm:$0xff] %v337
        %v339 = vld [vmem:[%s191 + $0x248] sm:$0xff]
        %340 = vst [vmem:[%s192 + $0x248] sm:$0xff] %v339
        %v341 = vld [vmem:[%s191 + $0x250] sm:$0xff]
        %342 = vst [vmem:[%s192 + $0x250] sm:$0xff] %v341
        %v343 = vld [vmem:[%s191 + $0x258] sm:$0xff]
        %344 = vst [vmem:[%s192 + $0x258] sm:$0xff] %v343
        %v345 = vld [vmem:[%s191 + $0x260] sm:$0xff]
        %346 = vst [vmem:[%s192 + $0x260] sm:$0xff] %v345
        %v347 = vld [vmem:[%s191 + $0x268] sm:$0xff]
        %348 = vst [vmem:[%s192 + $0x268] sm:$0xff] %v347
        %v349 = vld [vmem:[%s191 + $0x270] sm:$0xff]
        %350 = vst [vmem:[%s192 + $0x270] sm:$0xff] %v349
        %v351 = vld [vmem:[%s191 + $0x278] sm:$0xff]
        %352 = vst [vmem:[%s192 + $0x278] sm:$0xff] %v351
        %v353 = vld [vmem:[%s191 + $0x280] sm:$0xff]
        %354 = vst [vmem:[%s192 + $0x280] sm:$0xff] %v353
        %v355 = vld [vmem:[%s191 + $0x288] sm:$0xff]
        %356 = vst [vmem:[%s192 + $0x288] sm:$0xff] %v355
        %v357 = vld [vmem:[%s191 + $0x290] sm:$0xff]
        %358 = vst [vmem:[%s192 + $0x290] sm:$0xff] %v357
        %v359 = vld [vmem:[%s191 + $0x298] sm:$0xff]
        %360 = vst [vmem:[%s192 + $0x298] sm:$0xff] %v359
        %v361 = vld [vmem:[%s191 + $0x2a0] sm:$0xff]
        %362 = vst [vmem:[%s192 + $0x2a0] sm:$0xff] %v361
        %v363 = vld [vmem:[%s191 + $0x2a8] sm:$0xff]
        %364 = vst [vmem:[%s192 + $0x2a8] sm:$0xff] %v363
        %v365 = vld [vmem:[%s191 + $0x2b0] sm:$0xff]
        %366 = vst [vmem:[%s192 + $0x2b0] sm:$0xff] %v365
        %v367 = vld [vmem:[%s191 + $0x2b8] sm:$0xff]
        %368 = vst [vmem:[%s192 + $0x2b8] sm:$0xff] %v367
        %v369 = vld [vmem:[%s191 + $0x2c0] sm:$0xff]
        %370 = vst [vmem:[%s192 + $0x2c0] sm:$0xff] %v369
        %v371 = vld [vmem:[%s191 + $0x2c8] sm:$0xff]
        %372 = vst [vmem:[%s192 + $0x2c8] sm:$0xff] %v371
        %v373 = vld [vmem:[%s191 + $0x2d0] sm:$0xff]
        %374 = vst [vmem:[%s192 + $0x2d0] sm:$0xff] %v373
        %v375 = vld [vmem:[%s191 + $0x2d8] sm:$0xff]
        %376 = vst [vmem:[%s192 + $0x2d8] sm:$0xff] %v375
        %v377 = vld [vmem:[%s191 + $0x2e0] sm:$0xff]
        %378 = vst [vmem:[%s192 + $0x2e0] sm:$0xff] %v377
        %v379 = vld [vmem:[%s191 + $0x2e8] sm:$0xff]
        %380 = vst [vmem:[%s192 + $0x2e8] sm:$0xff] %v379
        %v381 = vld [vmem:[%s191 + $0x2f0] sm:$0xff]
        %382 = vst [vmem:[%s192 + $0x2f0] sm:$0xff] %v381
        %v383 = vld [vmem:[%s191 + $0x2f8] sm:$0xff]
        %384 = vst [vmem:[%s192 + $0x2f8] sm:$0xff] %v383
        %v385 = vld [vmem:[%s191 + $0x300] sm:$0xff]
        %386 = vst [vmem:[%s192 + $0x300] sm:$0xff] %v385
        %v387 = vld [vmem:[%s191 + $0x308] sm:$0xff]
        %388 = vst [vmem:[%s192 + $0x308] sm:$0xff] %v387
        %v389 = vld [vmem:[%s191 + $0x310] sm:$0xff]
        %390 = vst [vmem:[%s192 + $0x310] sm:$0xff] %v389
        %v391 = vld [vmem:[%s191 + $0x318] sm:$0xff]
        %392 = vst [vmem:[%s192 + $0x318] sm:$0xff] %v391
        %v393 = vld [vmem:[%s191 + $0x320] sm:$0xff]
        %394 = vst [vmem:[%s192 + $0x320] sm:$0xff] %v393
        %v395 = vld [vmem:[%s191 + $0x328] sm:$0xff]
        %396 = vst [vmem:[%s192 + $0x328] sm:$0xff] %v395
        %v397 = vld [vmem:[%s191 + $0x330] sm:$0xff]
        %398 = vst [vmem:[%s192 + $0x330] sm:$0xff] %v397
        %v399 = vld [vmem:[%s191 + $0x338] sm:$0xff]
        %400 = vst [vmem:[%s192 + $0x338] sm:$0xff] %v399
        %v401 = vld [vmem:[%s191 + $0x340] sm:$0xff]
        %402 = vst [vmem:[%s192 + $0x340] sm:$0xff] %v401
        %v403 = vld [vmem:[%s191 + $0x348] sm:$0xff]
        %404 = vst [vmem:[%s192 + $0x348] sm:$0xff] %v403
        %v405 = vld [vmem:[%s191 + $0x350] sm:$0xff]
        %406 = vst [vmem:[%s192 + $0x350] sm:$0xff] %v405
        %v407 = vld [vmem:[%s191 + $0x358] sm:$0xff]
        %408 = vst [vmem:[%s192 + $0x358] sm:$0xff] %v407
        %v409 = vld [vmem:[%s191 + $0x360] sm:$0xff]
        %410 = vst [vmem:[%s192 + $0x360] sm:$0xff] %v409
        %v411 = vld [vmem:[%s191 + $0x368] sm:$0xff]
        %412 = vst [vmem:[%s192 + $0x368] sm:$0xff] %v411
        %v413 = vld [vmem:[%s191 + $0x370] sm:$0xff]
        %414 = vst [vmem:[%s192 + $0x370] sm:$0xff] %v413
        %v415 = vld [vmem:[%s191 + $0x378] sm:$0xff]
        %416 = vst [vmem:[%s192 + $0x378] sm:$0xff] %v415
        %v417 = vld [vmem:[%s191 + $0x380] sm:$0xff]
        %418 = vst [vmem:[%s192 + $0x380] sm:$0xff] %v417
        %v419 = vld [vmem:[%s191 + $0x388] sm:$0xff]
        %420 = vst [vmem:[%s192 + $0x388] sm:$0xff] %v419
        %v421 = vld [vmem:[%s191 + $0x390] sm:$0xff]
        %422 = vst [vmem:[%s192 + $0x390] sm:$0xff] %v421
        %v423 = vld [vmem:[%s191 + $0x398] sm:$0xff]
        %424 = vst [vmem:[%s192 + $0x398] sm:$0xff] %v423
        %v425 = vld [vmem:[%s191 + $0x3a0] sm:$0xff]
        %426 = vst [vmem:[%s192 + $0x3a0] sm:$0xff] %v425
        %v427 = vld [vmem:[%s191 + $0x3a8] sm:$0xff]
        %428 = vst [vmem:[%s192 + $0x3a8] sm:$0xff] %v427
        %v429 = vld [vmem:[%s191 + $0x3b0] sm:$0xff]
        %430 = vst [vmem:[%s192 + $0x3b0] sm:$0xff] %v429
        %v431 = vld [vmem:[%s191 + $0x3b8] sm:$0xff]
        %432 = vst [vmem:[%s192 + $0x3b8] sm:$0xff] %v431
        %v433 = vld [vmem:[%s191 + $0x3c0] sm:$0xff]
        %434 = vst [vmem:[%s192 + $0x3c0] sm:$0xff] %v433
        %v435 = vld [vmem:[%s191 + $0x3c8] sm:$0xff]
        %436 = vst [vmem:[%s192 + $0x3c8] sm:$0xff] %v435
        %v437 = vld [vmem:[%s191 + $0x3d0] sm:$0xff]
        %438 = vst [vmem:[%s192 + $0x3d0] sm:$0xff] %v437
        %v439 = vld [vmem:[%s191 + $0x3d8] sm:$0xff]
        %440 = vst [vmem:[%s192 + $0x3d8] sm:$0xff] %v439
        %v441 = vld [vmem:[%s191 + $0x3e0] sm:$0xff]
        %442 = vst [vmem:[%s192 + $0x3e0] sm:$0xff] %v441
        %v443 = vld [vmem:[%s191 + $0x3e8] sm:$0xff]
        %444 = vst [vmem:[%s192 + $0x3e8] sm:$0xff] %v443
        %v445 = vld [vmem:[%s191 + $0x3f0] sm:$0xff]
        %446 = vst [vmem:[%s192 + $0x3f0] sm:$0xff] %v445
        %v447 = vld [vmem:[%s191 + $0x3f8] sm:$0xff]
        %448 = vst [vmem:[%s192 + $0x3f8] sm:$0xff] %v447
        %v449 = vld [vmem:[%s191 + $0x400] sm:$0xff]
        %450 = vst [vmem:[%s192 + $0x400] sm:$0xff] %v449
        %v451 = vld [vmem:[%s191 + $0x408] sm:$0xff]
        %452 = vst [vmem:[%s192 + $0x408] sm:$0xff] %v451
        %v453 = vld [vmem:[%s191 + $0x410] sm:$0xff]
        %454 = vst [vmem:[%s192 + $0x410] sm:$0xff] %v453
        %v455 = vld [vmem:[%s191 + $0x418] sm:$0xff]
        %456 = vst [vmem:[%s192 + $0x418] sm:$0xff] %v455
        %v457 = vld [vmem:[%s191 + $0x420] sm:$0xff]
        %458 = vst [vmem:[%s192 + $0x420] sm:$0xff] %v457
        %v459 = vld [vmem:[%s191 + $0x428] sm:$0xff]
        %460 = vst [vmem:[%s192 + $0x428] sm:$0xff] %v459
        %v461 = vld [vmem:[%s191 + $0x430] sm:$0xff]
        %462 = vst [vmem:[%s192 + $0x430] sm:$0xff] %v461
        %v463 = vld [vmem:[%s191 + $0x438] sm:$0xff]
        %464 = vst [vmem:[%s192 + $0x438] sm:$0xff] %v463
        %v465 = vld [vmem:[%s191 + $0x440] sm:$0xff]
        %466 = vst [vmem:[%s192 + $0x440] sm:$0xff] %v465
        %v467 = vld [vmem:[%s191 + $0x448] sm:$0xff]
        %468 = vst [vmem:[%s192 + $0x448] sm:$0xff] %v467
        %v469 = vld [vmem:[%s191 + $0x450] sm:$0xff]
        %470 = vst [vmem:[%s192 + $0x450] sm:$0xff] %v469
        %v471 = vld [vmem:[%s191 + $0x458] sm:$0xff]
        %472 = vst [vmem:[%s192 + $0x458] sm:$0xff] %v471
        %v473 = vld [vmem:[%s191 + $0x460] sm:$0xff]
        %474 = vst [vmem:[%s192 + $0x460] sm:$0xff] %v473
        %v475 = vld [vmem:[%s191 + $0x468] sm:$0xff]
        %476 = vst [vmem:[%s192 + $0x468] sm:$0xff] %v475
        %v477 = vld [vmem:[%s191 + $0x470] sm:$0xff]
        %478 = vst [vmem:[%s192 + $0x470] sm:$0xff] %v477
        %v479 = vld [vmem:[%s191 + $0x478] sm:$0xff]
        %480 = vst [vmem:[%s192 + $0x478] sm:$0xff] %v479
        %v481 = vld [vmem:[%s191 + $0x480] sm:$0xff]
        %482 = vst [vmem:[%s192 + $0x480] sm:$0xff] %v481
        %v483 = vld [vmem:[%s191 + $0x488] sm:$0xff]
        %484 = vst [vmem:[%s192 + $0x488] sm:$0xff] %v483
        %v485 = vld [vmem:[%s191 + $0x490] sm:$0xff]
        %486 = vst [vmem:[%s192 + $0x490] sm:$0xff] %v485
        %v487 = vld [vmem:[%s191 + $0x498] sm:$0xff]
        %488 = vst [vmem:[%s192 + $0x498] sm:$0xff] %v487
        %v489 = vld [vmem:[%s191 + $0x4a0] sm:$0xff]
        %490 = vst [vmem:[%s192 + $0x4a0] sm:$0xff] %v489
        %v491 = vld [vmem:[%s191 + $0x4a8] sm:$0xff]
        %492 = vst [vmem:[%s192 + $0x4a8] sm:$0xff] %v491
        %v493 = vld [vmem:[%s191 + $0x4b0] sm:$0xff]
        %494 = vst [vmem:[%s192 + $0x4b0] sm:$0xff] %v493
        %v495 = vld [vmem:[%s191 + $0x4b8] sm:$0xff]
        %496 = vst [vmem:[%s192 + $0x4b8] sm:$0xff] %v495
        %v497 = vld [vmem:[%s191 + $0x4c0] sm:$0xff]
        %498 = vst [vmem:[%s192 + $0x4c0] sm:$0xff] %v497
        %v499 = vld [vmem:[%s191 + $0x4c8] sm:$0xff]
        %500 = vst [vmem:[%s192 + $0x4c8] sm:$0xff] %v499
        %v501 = vld [vmem:[%s191 + $0x4d0] sm:$0xff]
        %502 = vst [vmem:[%s192 + $0x4d0] sm:$0xff] %v501
        %v503 = vld [vmem:[%s191 + $0x4d8] sm:$0xff]
        %504 = vst [vmem:[%s192 + $0x4d8] sm:$0xff] %v503
        %v505 = vld [vmem:[%s191 + $0x4e0] sm:$0xff]
        %506 = vst [vmem:[%s192 + $0x4e0] sm:$0xff] %v505
        %v507 = vld [vmem:[%s191 + $0x4e8] sm:$0xff]
        %508 = vst [vmem:[%s192 + $0x4e8] sm:$0xff] %v507
        %v509 = vld [vmem:[%s191 + $0x4f0] sm:$0xff]
        %510 = vst [vmem:[%s192 + $0x4f0] sm:$0xff] %v509
        %v511 = vld [vmem:[%s191 + $0x4f8] sm:$0xff]
        %512 = vst [vmem:[%s192 + $0x4f8] sm:$0xff] %v511
        %v513 = vld [vmem:[%s191 + $0x500] sm:$0xff]
        %514 = vst [vmem:[%s192 + $0x500] sm:$0xff] %v513
        %v515 = vld [vmem:[%s191 + $0x508] sm:$0xff]
        %516 = vst [vmem:[%s192 + $0x508] sm:$0xff] %v515
        %v517 = vld [vmem:[%s191 + $0x510] sm:$0xff]
        %518 = vst [vmem:[%s192 + $0x510] sm:$0xff] %v517
        %v519 = vld [vmem:[%s191 + $0x518] sm:$0xff]
        %520 = vst [vmem:[%s192 + $0x518] sm:$0xff] %v519
        %v521 = vld [vmem:[%s191 + $0x520] sm:$0xff]
        %522 = vst [vmem:[%s192 + $0x520] sm:$0xff] %v521
        %v523 = vld [vmem:[%s191 + $0x528] sm:$0xff]
        %524 = vst [vmem:[%s192 + $0x528] sm:$0xff] %v523
        %v525 = vld [vmem:[%s191 + $0x530] sm:$0xff]
        %526 = vst [vmem:[%s192 + $0x530] sm:$0xff] %v525
        %v527 = vld [vmem:[%s191 + $0x538] sm:$0xff]
        %528 = vst [vmem:[%s192 + $0x538] sm:$0xff] %v527
        %v529 = vld [vmem:[%s191 + $0x540] sm:$0xff]
        %530 = vst [vmem:[%s192 + $0x540] sm:$0xff] %v529
        %v531 = vld [vmem:[%s191 + $0x548] sm:$0xff]
        %532 = vst [vmem:[%s192 + $0x548] sm:$0xff] %v531
        %v533 = vld [vmem:[%s191 + $0x550] sm:$0xff]
        %534 = vst [vmem:[%s192 + $0x550] sm:$0xff] %v533
        %v535 = vld [vmem:[%s191 + $0x558] sm:$0xff]
        %536 = vst [vmem:[%s192 + $0x558] sm:$0xff] %v535
        %v537 = vld [vmem:[%s191 + $0x560] sm:$0xff]
        %538 = vst [vmem:[%s192 + $0x560] sm:$0xff] %v537
        %v539 = vld [vmem:[%s191 + $0x568] sm:$0xff]
        %540 = vst [vmem:[%s192 + $0x568] sm:$0xff] %v539
        %v541 = vld [vmem:[%s191 + $0x570] sm:$0xff]
        %542 = vst [vmem:[%s192 + $0x570] sm:$0xff] %v541
        %v543 = vld [vmem:[%s191 + $0x578] sm:$0xff]
        %544 = vst [vmem:[%s192 + $0x578] sm:$0xff] %v543
        %v545 = vld [vmem:[%s191 + $0x580] sm:$0xff]
        %546 = vst [vmem:[%s192 + $0x580] sm:$0xff] %v545
        %v547 = vld [vmem:[%s191 + $0x588] sm:$0xff]
        %548 = vst [vmem:[%s192 + $0x588] sm:$0xff] %v547
        %v549 = vld [vmem:[%s191 + $0x590] sm:$0xff]
        %550 = vst [vmem:[%s192 + $0x590] sm:$0xff] %v549
        %v551 = vld [vmem:[%s191 + $0x598] sm:$0xff]
        %552 = vst [vmem:[%s192 + $0x598] sm:$0xff] %v551
        %v553 = vld [vmem:[%s191 + $0x5a0] sm:$0xff]
        %554 = vst [vmem:[%s192 + $0x5a0] sm:$0xff] %v553
        %v555 = vld [vmem:[%s191 + $0x5a8] sm:$0xff]
        %556 = vst [vmem:[%s192 + $0x5a8] sm:$0xff] %v555
        %v557 = vld [vmem:[%s191 + $0x5b0] sm:$0xff]
        %558 = vst [vmem:[%s192 + $0x5b0] sm:$0xff] %v557
        %v559 = vld [vmem:[%s191 + $0x5b8] sm:$0xff]
        %560 = vst [vmem:[%s192 + $0x5b8] sm:$0xff] %v559
        %v561 = vld [vmem:[%s191 + $0x5c0] sm:$0xff]
        %562 = vst [vmem:[%s192 + $0x5c0] sm:$0xff] %v561
        %v563 = vld [vmem:[%s191 + $0x5c8] sm:$0xff]
        %564 = vst [vmem:[%s192 + $0x5c8] sm:$0xff] %v563
        %v565 = vld [vmem:[%s191 + $0x5d0] sm:$0xff]
        %566 = vst [vmem:[%s192 + $0x5d0] sm:$0xff] %v565
        %v567 = vld [vmem:[%s191 + $0x5d8] sm:$0xff]
        %568 = vst [vmem:[%s192 + $0x5d8] sm:$0xff] %v567
        %v569 = vld [vmem:[%s191 + $0x5e0] sm:$0xff]
        %570 = vst [vmem:[%s192 + $0x5e0] sm:$0xff] %v569
        %v571 = vld [vmem:[%s191 + $0x5e8] sm:$0xff]
        %572 = vst [vmem:[%s192 + $0x5e8] sm:$0xff] %v571
        %v573 = vld [vmem:[%s191 + $0x5f0] sm:$0xff]
        %574 = vst [vmem:[%s192 + $0x5f0] sm:$0xff] %v573
        %v575 = vld [vmem:[%s191 + $0x5f8] sm:$0xff]
        %576 = vst [vmem:[%s192 + $0x5f8] sm:$0xff] %v575
        %v577 = vld [vmem:[%s191 + $0x600] sm:$0xff]
        %578 = vst [vmem:[%s192 + $0x600] sm:$0xff] %v577
        %v579 = vld [vmem:[%s191 + $0x608] sm:$0xff]
        %580 = vst [vmem:[%s192 + $0x608] sm:$0xff] %v579
        %v581 = vld [vmem:[%s191 + $0x610] sm:$0xff]
        %582 = vst [vmem:[%s192 + $0x610] sm:$0xff] %v581
        %v583 = vld [vmem:[%s191 + $0x618] sm:$0xff]
        %584 = vst [vmem:[%s192 + $0x618] sm:$0xff] %v583
      $region106: #{model_tanh_forward.1} parent=100 // loop_footer
        %s190 = sadd.s32 1, %s186
      $region107: #{model_tanh_forward.1} parent=100 // loop_footer_branch
        %185 = sbr.rel target = $region103
      $region108: #{model_tanh_forward.1} parent=100 // loop_exit
        _
    $region101: #{model_tanh_forward.1} parent=85 // pred_fallthru
      _
    %p585 = pneg %p181
    // Predicated region
    $region109: #{model_tanh_forward.1} parent=85 // pred_check
      _
    $region110: #{model_tanh_forward.1} parent=85 // pred_check_branch
      %587 = sbr.rel (%p181) target = $region112
    $region111: #{model_tanh_forward.1} parent=85 // pred_region
      %s588 = sand.u32 1568, 7
    $region112: #{model_tanh_forward.1} parent=85 // pred_fallthru
      _
  $region86: #{model_tanh_forward.1} parent=0 // pred_fallthru
    _
  // Predicated region
  $region87: #{model_tanh_forward.1} parent=0 // pred_check
    %p166 = pneg %p162
  $region88: #{model_tanh_forward.1} parent=0 // pred_check_branch
    %168 = sbr.rel (%p166) target = $region90
  $region89: #{model_tanh_forward.1} parent=0 // pred_region
    %s169 = sshllo.u32 0, 1568
    loop: start=0, step=1, limit=1
    $region91: #{model_tanh_forward.1} parent=89 // loop_pre_header
      _
    $region92: #{model_tanh_forward.1} parent=89 // loop_header
      %s171 = sphi 0, %s175
      %p172 = scmp.ge.s32.totalorder %s171, 1
      %s176 = sphi %s12, %s12
      %s177 = sphi [#allocation3], [#allocation3]
    $region93: #{model_tanh_forward.1} parent=89 // loop_header_branch
      %174 = sbr.rel (%p172) target = $region97
    $region94: #{model_tanh_forward.1} parent=89 // loop_body
      %v178 = vld [vmem:[%s176] sm:%s169]
      %179 = vst [vmem:[%s177] sm:%s169] %v178
    $region95: #{model_tanh_forward.1} parent=89 // loop_footer
      %s175 = sadd.s32 1, %s171
    $region96: #{model_tanh_forward.1} parent=89 // loop_footer_branch
      %170 = sbr.rel target = $region92
    $region97: #{model_tanh_forward.1} parent=89 // loop_exit
      _
  $region90: #{model_tanh_forward.1} parent=0 // pred_fallthru
    _
  // Predicated region
  $region113: #{model_tanh_forward.1} parent=0 // pred_check
    _
  $region114: #{model_tanh_forward.1} parent=0 // pred_check_branch
    %591 = sbr.rel (0) target = $region116
  $region115: #{model_tanh_forward.1} parent=0 // pred_region
    %592 = vsyncadd %s160, 25088
  $region116: #{model_tanh_forward.1} parent=0 // pred_fallthru
    _
  %v593 = vld [vmem:[%s0] sm:$0xff]
  %v594 = vld [vmem:[%s0 + $0x8] sm:$0xff]
  %v595 = vld [vmem:[%s0 + $0x10] sm:$0xff]
  %v596 = vld [vmem:[%s0 + $0x18] sm:$0xff]
  %v597 = vld [vmem:[%s0 + $0x20] sm:$0xff]
  %v598 = vld [vmem:[%s0 + $0x28] sm:$0xff]
  %v599 = vld [vmem:[%s0 + $0x30] sm:$0xff]
  %v600 = vld [vmem:[%s0 + $0x38] sm:$0xff]
  %v601 = vld [vmem:[%s0 + $0x40] sm:$0xff]
  %v602 = vld [vmem:[%s0 + $0x48] sm:$0x1]
  %v603 = vld [vmem:[%s1] sm:$0xff]
  %v604 = vld [vmem:[%s1 + $0x8] sm:$0xff]
  %v605 = vld [vmem:[%s1 + $0x10] sm:$0x1f]
  %s606 = scalar_lea.vmem %s1, 24
  %v607 = vld [vmem:[%s606] sm:$0xff]
  %v608 = vld [vmem:[%s606 + $0x8] sm:$0xff]
  %v609 = vld [vmem:[%s606 + $0x10] sm:$0x1f]
  %vm619 = vcmask 1046528
  %v620 = vrot.slane %v593, 1
  %v621 = vrot.slane %v594, 1
  %v622 = vsel %vm619, %v620, %v621
  %v623 = vrot.slane %v595, 1
  %v624 = vsel %vm619, %v621, %v623
  %v625 = vrot.slane %v596, 1
  %v626 = vsel %vm619, %v623, %v625
  %v627 = vrot.slane %v597, 1
  %v628 = vsel %vm619, %v625, %v627
  %v629 = vrot.slane %v598, 1
  %v630 = vsel %vm619, %v627, %v629
  %v631 = vrot.slane %v599, 1
  %v632 = vsel %vm619, %v629, %v631
  %v633 = vrot.slane %v600, 1
  %v634 = vsel %vm619, %v631, %v633
  %v635 = vrot.slane %v601, 1
  %v636 = vsel %vm619, %v633, %v635
  %vm637 = vcmask 171008
  %v638 = vsel %vm637, %v622, 0
  %v640 = vsel %vm637, %v624, 0
  %v642 = vsel %vm637, %v626, 0
  %v644 = vsel %vm637, %v628, 0
  %v646 = vsel %vm637, %v630, 0
  %v648 = vsel %vm637, %v632, 0
  %v650 = vsel %vm637, %v634, 0
  %v652 = vsel %vm637, %v636, 0
  %v654 = vsel %vm637, %v635, 0
  %vm656 = vcmask 1044480
  %v658 = vsel %vm656, %v609, 0
  %660 = vmatprep.subr.mxu0 0.0
  %661 = vmatpush1.msra.mxu0 %v607
  %662 = vmatprep.subr.mxu0 0.0
  %663 = vmatpush1.msra.mxu0 %v608
  %664 = vmatprep.subr.mxu0 0.0
  %665 = vmatpush1.msra.mxu0 %v658
  %666 = vmatprep.subr.mxu0 0.0
  %667 = vmatpush1.msra.mxu0 0.0
  %668 = vmatprep.subr.mxu0 0.0
  %669 = vmatpush1.msra.mxu0 0.0
  %670 = vmatprep.subr.mxu0 0.0
  %671 = vmatpush1.msra.mxu0 0.0
  %672 = vmatprep.subr.mxu0 0.0
  %673 = vmatpush1.msra.mxu0 0.0
  %674 = vmatprep.subr.mxu0 0.0
  %675 = vmatpush1.msra.mxu0 0.0
  %676 = vmatprep.subr.mxu0 0.0
  %677 = vmatpush1.msra.mxu0 0.0
  %678 = vmatprep.subr.mxu0 0.0
  %679 = vmatpush1.msra.mxu0 0.0
  %680 = vmatprep.subr.mxu0 0.0
  %681 = vmatpush1.msra.mxu0 0.0
  %682 = vmatprep.subr.mxu0 0.0
  %683 = vmatpush1.msra.mxu0 0.0
  %684 = vmatprep.subr.mxu0 0.0
  %685 = vmatpush1.msra.mxu0 0.0
  %686 = vmatprep.subr.mxu0 0.0
  %687 = vmatpush1.msra.mxu0 0.0
  %688 = vmatprep.subr.mxu0 0.0
  %689 = vmatpush1.msra.mxu0 0.0
  %690 = vmatprep.subr.mxu0 0.0
  %691 = vmatpush1.msra.mxu0 0.0
  %692 = vmatprep.subr.mxu0 0.0
  %693 = vmatpush1.msra.mxu0 0.0
  %694 = vmatprep.subr.mxu0 0.0
  %695 = vmatpush1.msra.mxu0 0.0
  %696 = vmatprep.subr.mxu0 0.0
  %697 = vmatpush1.msra.mxu0 0.0
  %698 = vmatprep.subr.mxu0 0.0
  %699 = vmatpush1.msra.mxu0 0.0
  %700 = vmatprep.subr.mxu0 0.0
  %701 = vmatpush1.msra.mxu0 0.0
  %702 = vmatprep.subr.mxu0 0.0
  %703 = vmatpush1.msra.mxu0 0.0
  %704 = vmatprep.subr.mxu0 0.0
  %705 = vmatpush1.msra.mxu0 0.0
  %706 = vmatprep.subr.mxu0 0.0
  %707 = vmatpush1.msra.mxu0 0.0
  %708 = vmatprep.subr.mxu0 0.0
  %709 = vmatpush1.msra.mxu0 0.0
  %710 = vmatprep.subr.mxu0 0.0
  %711 = vmatpush1.msra.mxu0 0.0
  %712 = vmatprep.subr.mxu0 0.0
  %713 = vmatpush1.msra.mxu0 0.0
  %714 = vmatprep.subr.mxu0 0.0
  %715 = vmatpush1.msra.mxu0 0.0
  %716 = vmatprep.subr.mxu0 0.0
  %717 = vmatpush1.msra.mxu0 0.0
  %718 = vmatprep.subr.mxu0 0.0
  %719 = vmatpush1.msra.mxu0 0.0
  %720 = vmatprep.subr.mxu0 0.0
  %721 = vmatpush1.msra.mxu0 0.0
  %722 = vmatprep.subr.mxu0 0.0
  %723 = vmatpush1.msra.mxu0 0.0
  %724 = vmatprep.mubr.f32.mxu0 0.0
  %725 = vmatmul.mubr.f32.gmra.mrb[0].mxu0 %v638
  %v726 = vpop.f32.mrb[0].mxu0
  %v727 = vadd.f32 0.0, %v726
  %v728 = vpop.f32.mrb[0].mxu0
  %729 = vmatprep.mubr.f32.mxu0 0.0
  %730 = vmatmul.mubr.f32.gmra.mrb[0].mxu0 %v640
  %v731 = vpop.f32.mrb[0].mxu0
  %v732 = vadd.f32 0.0, %v731
  %v733 = vpop.f32.mrb[0].mxu0
  %734 = vmatprep.mubr.f32.mxu0 0.0
  %735 = vmatmul.mubr.f32.gmra.mrb[0].mxu0 %v642
  %v736 = vpop.f32.mrb[0].mxu0
  %v737 = vadd.f32 0.0, %v736
  %v738 = vpop.f32.mrb[0].mxu0
  %739 = vmatprep.mubr.f32.mxu0 0.0
  %740 = vmatmul.mubr.f32.gmra.mrb[0].mxu0 %v644
  %v741 = vpop.f32.mrb[0].mxu0
  %v742 = vadd.f32 0.0, %v741
  %v743 = vpop.f32.mrb[0].mxu0
  %744 = vmatprep.mubr.f32.mxu0 0.0
  %745 = vmatmul.mubr.f32.gmra.mrb[0].mxu0 %v646
  %v746 = vpop.f32.mrb[0].mxu0
  %v747 = vadd.f32 0.0, %v746
  %v748 = vpop.f32.mrb[0].mxu0
  %749 = vmatprep.mubr.f32.mxu0 0.0
  %750 = vmatmul.mubr.f32.gmra.mrb[0].mxu0 %v648
  %v751 = vpop.f32.mrb[0].mxu0
  %v752 = vadd.f32 0.0, %v751
  %v753 = vpop.f32.mrb[0].mxu0
  %754 = vmatprep.mubr.f32.mxu0 0.0
  %755 = vmatmul.mubr.f32.gmra.mrb[0].mxu0 %v650
  %v756 = vpop.f32.mrb[0].mxu0
  %v757 = vadd.f32 0.0, %v756
  %v758 = vpop.f32.mrb[0].mxu0
  %759 = vmatprep.mubr.f32.mxu0 0.0
  %760 = vmatmul.mubr.f32.gmra.mrb[0].mxu0 %v652
  %v761 = vpop.f32.mrb[0].mxu0
  %v762 = vadd.f32 0.0, %v761
  %v763 = vpop.f32.mrb[0].mxu0
  %764 = vmatprep.mubr.f32.mxu0 0.0
  %765 = vmatmul.mubr.f32.gmra.mrb[0].mxu0 %v654
  %v766 = vpop.f32.mrb[0].mxu0
  %v767 = vadd.f32 0.0, %v766
  %v768 = vpop.f32.mrb[0].mxu0
  %769 = vdwg.mxu0
  %v770 = vsel %vm637, %v593, 0
  %v772 = vsel %vm637, %v594, 0
  %v774 = vsel %vm637, %v595, 0
  %v776 = vsel %vm637, %v596, 0
  %v778 = vsel %vm637, %v597, 0
  %v780 = vsel %vm637, %v598, 0
  %v782 = vsel %vm637, %v599, 0
  %v784 = vsel %vm637, %v600, 0
  %v786 = vsel %vm637, %v601, 0
  %v789 = vsel %vm656, %v605, 0
  %791 = vmatprep.subr.mxu0 0.0
  %792 = vmatpush1.msra.mxu0 %v603
  %793 = vmatprep.subr.mxu0 0.0
  %794 = vmatpush1.msra.mxu0 %v604
  %795 = vmatprep.subr.mxu0 0.0
  %796 = vmatpush1.msra.mxu0 %v789
  %797 = vmatprep.subr.mxu0 0.0
  %798 = vmatpush1.msra.mxu0 0.0
  %799 = vmatprep.subr.mxu0 0.0
  %800 = vmatpush1.msra.mxu0 0.0
  %801 = vmatprep.subr.mxu0 0.0
  %802 = vmatpush1.msra.mxu0 0.0
  %803 = vmatprep.subr.mxu0 0.0
  %804 = vmatpush1.msra.mxu0 0.0
  %805 = vmatprep.subr.mxu0 0.0
  %806 = vmatpush1.msra.mxu0 0.0
  %807 = vmatprep.subr.mxu0 0.0
  %808 = vmatpush1.msra.mxu0 0.0
  %809 = vmatprep.subr.mxu0 0.0
  %810 = vmatpush1.msra.mxu0 0.0
  %811 = vmatprep.subr.mxu0 0.0
  %812 = vmatpush1.msra.mxu0 0.0
  %813 = vmatprep.subr.mxu0 0.0
  %814 = vmatpush1.msra.mxu0 0.0
  %815 = vmatprep.subr.mxu0 0.0
  %816 = vmatpush1.msra.mxu0 0.0
  %817 = vmatprep.subr.mxu0 0.0
  %818 = vmatpush1.msra.mxu0 0.0
  %819 = vmatprep.subr.mxu0 0.0
  %820 = vmatpush1.msra.mxu0 0.0
  %821 = vmatprep.subr.mxu0 0.0
  %822 = vmatpush1.msra.mxu0 0.0
  %823 = vmatprep.subr.mxu0 0.0
  %824 = vmatpush1.msra.mxu0 0.0
  %825 = vmatprep.subr.mxu0 0.0
  %826 = vmatpush1.msra.mxu0 0.0
  %827 = vmatprep.subr.mxu0 0.0
  %828 = vmatpush1.msra.mxu0 0.0
  %829 = vmatprep.subr.mxu0 0.0
  %830 = vmatpush1.msra.mxu0 0.0
  %831 = vmatprep.subr.mxu0 0.0
  %832 = vmatpush1.msra.mxu0 0.0
  %833 = vmatprep.subr.mxu0 0.0
  %834 = vmatpush1.msra.mxu0 0.0
  %835 = vmatprep.subr.mxu0 0.0
  %836 = vmatpush1.msra.mxu0 0.0
  %837 = vmatprep.subr.mxu0 0.0
  %838 = vmatpush1.msra.mxu0 0.0
  %839 = vmatprep.subr.mxu0 0.0
  %840 = vmatpush1.msra.mxu0 0.0
  %841 = vmatprep.subr.mxu0 0.0
  %842 = vmatpush1.msra.mxu0 0.0
  %843 = vmatprep.subr.mxu0 0.0
  %844 = vmatpush1.msra.mxu0 0.0
  %845 = vmatprep.subr.mxu0 0.0
  %846 = vmatpush1.msra.mxu0 0.0
  %847 = vmatprep.subr.mxu0 0.0
  %848 = vmatpush1.msra.mxu0 0.0
  %849 = vmatprep.subr.mxu0 0.0
  %850 = vmatpush1.msra.mxu0 0.0
  %851 = vmatprep.subr.mxu0 0.0
  %852 = vmatpush1.msra.mxu0 0.0
  %853 = vmatprep.subr.mxu0 0.0
  %854 = vmatpush1.msra.mxu0 0.0
  %855 = vmatprep.mubr.f32.mxu0 0.0
  %856 = vmatmul.mubr.f32.gmra.mrb[0].mxu0 %v770
  %v857 = vpop.f32.mrb[0].mxu0
  %v858 = vadd.f32 %v727, %v857
  %v859 = vpop.f32.mrb[0].mxu0
  %860 = vmatprep.mubr.f32.mxu0 0.0
  %861 = vmatmul.mubr.f32.gmra.mrb[0].mxu0 %v772
  %v862 = vpop.f32.mrb[0].mxu0
  %v863 = vadd.f32 %v732, %v862
  %v864 = vpop.f32.mrb[0].mxu0
  %865 = vmatprep.mubr.f32.mxu0 0.0
  %866 = vmatmul.mubr.f32.gmra.mrb[0].mxu0 %v774
  %v867 = vpop.f32.mrb[0].mxu0
  %v868 = vadd.f32 %v737, %v867
  %v869 = vpop.f32.mrb[0].mxu0
  %870 = vmatprep.mubr.f32.mxu0 0.0
  %871 = vmatmul.mubr.f32.gmra.mrb[0].mxu0 %v776
  %v872 = vpop.f32.mrb[0].mxu0
  %v873 = vadd.f32 %v742, %v872
  %v874 = vpop.f32.mrb[0].mxu0
  %875 = vmatprep.mubr.f32.mxu0 0.0
  %876 = vmatmul.mubr.f32.gmra.mrb[0].mxu0 %v778
  %v877 = vpop.f32.mrb[0].mxu0
  %v878 = vadd.f32 %v747, %v877
  %v879 = vpop.f32.mrb[0].mxu0
  %880 = vmatprep.mubr.f32.mxu0 0.0
  %881 = vmatmul.mubr.f32.gmra.mrb[0].mxu0 %v780
  %v882 = vpop.f32.mrb[0].mxu0
  %v883 = vadd.f32 %v752, %v882
  %v884 = vpop.f32.mrb[0].mxu0
  %885 = vmatprep.mubr.f32.mxu0 0.0
  %886 = vmatmul.mubr.f32.gmra.mrb[0].mxu0 %v782
  %v887 = vpop.f32.mrb[0].mxu0
  %v888 = vadd.f32 %v757, %v887
  %v889 = vpop.f32.mrb[0].mxu0
  %890 = vmatprep.mubr.f32.mxu0 0.0
  %891 = vmatmul.mubr.f32.gmra.mrb[0].mxu0 %v784
  %v892 = vpop.f32.mrb[0].mxu0
  %v893 = vadd.f32 %v762, %v892
  %v894 = vpop.f32.mrb[0].mxu0
  %895 = vmatprep.mubr.f32.mxu0 0.0
  %896 = vmatmul.mubr.f32.gmra.mrb[0].mxu0 %v786
  %v897 = vpop.f32.mrb[0].mxu0
  %v898 = vadd.f32 %v767, %v897
  %v899 = vpop.f32.mrb[0].mxu0
  %900 = vdwg.mxu0
  %s901 = scalar_lea.vmem %s1, 48
  %v902 = vld [vmem:[%s901] sm:$0xff]
  %v903 = vld [vmem:[%s901 + $0x8] sm:$0xff]
  %v904 = vld [vmem:[%s901 + $0x10] sm:$0x1f]
  %vm905 = vcmask 1045504
  %v906 = vrot.slane %v593, 2
  %v907 = vrot.slane %v594, 2
  %v908 = vsel %vm905, %v906, %v907
  %v909 = vrot.slane %v595, 2
  %v910 = vsel %vm905, %v907, %v909
  %v911 = vrot.slane %v596, 2
  %v912 = vsel %vm905, %v909, %v911
  %v913 = vrot.slane %v597, 2
  %v914 = vsel %vm905, %v911, %v913
  %v915 = vrot.slane %v598, 2
  %v916 = vsel %vm905, %v913, %v915
  %v917 = vrot.slane %v599, 2
  %v918 = vsel %vm905, %v915, %v917
  %v919 = vrot.slane %v600, 2
  %v920 = vsel %vm905, %v917, %v919
  %v921 = vrot.slane %v601, 2
  %v922 = vsel %vm905, %v919, %v921
  %v923 = vsel %vm637, %v908, 0
  %v925 = vsel %vm637, %v910, 0
  %v927 = vsel %vm637, %v912, 0
  %v929 = vsel %vm637, %v914, 0
  %v931 = vsel %vm637, %v916, 0
  %v933 = vsel %vm637, %v918, 0
  %v935 = vsel %vm637, %v920, 0
  %v937 = vsel %vm637, %v922, 0
  %v939 = vsel %vm637, %v921, 0
  %v942 = vsel %vm656, %v904, 0
  %944 = vmatprep.subr.mxu0 0.0
  %945 = vmatpush1.msra.mxu0 %v902
  %946 = vmatprep.subr.mxu0 0.0
  %947 = vmatpush1.msra.mxu0 %v903
  %948 = vmatprep.subr.mxu0 0.0
  %949 = vmatpush1.msra.mxu0 %v942
  %950 = vmatprep.subr.mxu0 0.0
  %951 = vmatpush1.msra.mxu0 0.0
  %952 = vmatprep.subr.mxu0 0.0
  %953 = vmatpush1.msra.mxu0 0.0
  %954 = vmatprep.subr.mxu0 0.0
  %955 = vmatpush1.msra.mxu0 0.0
  %956 = vmatprep.subr.mxu0 0.0
  %957 = vmatpush1.msra.mxu0 0.0
  %958 = vmatprep.subr.mxu0 0.0
  %959 = vmatpush1.msra.mxu0 0.0
  %960 = vmatprep.subr.mxu0 0.0
  %961 = vmatpush1.msra.mxu0 0.0
  %962 = vmatprep.subr.mxu0 0.0
  %963 = vmatpush1.msra.mxu0 0.0
  %964 = vmatprep.subr.mxu0 0.0
  %965 = vmatpush1.msra.mxu0 0.0
  %966 = vmatprep.subr.mxu0 0.0
  %967 = vmatpush1.msra.mxu0 0.0
  %968 = vmatprep.subr.mxu0 0.0
  %969 = vmatpush1.msra.mxu0 0.0
  %970 = vmatprep.subr.mxu0 0.0
  %971 = vmatpush1.msra.mxu0 0.0
  %972 = vmatprep.subr.mxu0 0.0
  %973 = vmatpush1.msra.mxu0 0.0
  %974 = vmatprep.subr.mxu0 0.0
  %975 = vmatpush1.msra.mxu0 0.0
  %976 = vmatprep.subr.mxu0 0.0
  %977 = vmatpush1.msra.mxu0 0.0
  %978 = vmatprep.subr.mxu0 0.0
  %979 = vmatpush1.msra.mxu0 0.0
  %980 = vmatprep.subr.mxu0 0.0
  %981 = vmatpush1.msra.mxu0 0.0
  %982 = vmatprep.subr.mxu0 0.0
  %983 = vmatpush1.msra.mxu0 0.0
  %984 = vmatprep.subr.mxu0 0.0
  %985 = vmatpush1.msra.mxu0 0.0
  %986 = vmatprep.subr.mxu0 0.0
  %987 = vmatpush1.msra.mxu0 0.0
  %988 = vmatprep.subr.mxu0 0.0
  %989 = vmatpush1.msra.mxu0 0.0
  %990 = vmatprep.subr.mxu0 0.0
  %991 = vmatpush1.msra.mxu0 0.0
  %992 = vmatprep.subr.mxu0 0.0
  %993 = vmatpush1.msra.mxu0 0.0
  %994 = vmatprep.subr.mxu0 0.0
  %995 = vmatpush1.msra.mxu0 0.0
  %996 = vmatprep.subr.mxu0 0.0
  %997 = vmatpush1.msra.mxu0 0.0
  %998 = vmatprep.subr.mxu0 0.0
  %999 = vmatpush1.msra.mxu0 0.0
  %1000 = vmatprep.subr.mxu0 0.0
  %1001 = vmatpush1.msra.mxu0 0.0
  %1002 = vmatprep.subr.mxu0 0.0
  %1003 = vmatpush1.msra.mxu0 0.0
  %1004 = vmatprep.subr.mxu0 0.0
  %1005 = vmatpush1.msra.mxu0 0.0
  %1006 = vmatprep.subr.mxu0 0.0
  %1007 = vmatpush1.msra.mxu0 0.0
  %1008 = vmatprep.mubr.f32.mxu0 0.0
  %1009 = vmatmul.mubr.f32.gmra.mrb[0].mxu0 %v923
  %v1010 = vpop.f32.mrb[0].mxu0
  %v1011 = vadd.f32 0.0, %v1010
  %v1012 = vpop.f32.mrb[0].mxu0
  %1013 = vmatprep.mubr.f32.mxu0 0.0
  %1014 = vmatmul.mubr.f32.gmra.mrb[0].mxu0 %v925
  %v1015 = vpop.f32.mrb[0].mxu0
  %v1016 = vadd.f32 0.0, %v1015
  %v1017 = vpop.f32.mrb[0].mxu0
  %1018 = vmatprep.mubr.f32.mxu0 0.0
  %1019 = vmatmul.mubr.f32.gmra.mrb[0].mxu0 %v927
  %v1020 = vpop.f32.mrb[0].mxu0
  %v1021 = vadd.f32 0.0, %v1020
  %v1022 = vpop.f32.mrb[0].mxu0
  %1023 = vmatprep.mubr.f32.mxu0 0.0
  %1024 = vmatmul.mubr.f32.gmra.mrb[0].mxu0 %v929
  %v1025 = vpop.f32.mrb[0].mxu0
  %v1026 = vadd.f32 0.0, %v1025
  %v1027 = vpop.f32.mrb[0].mxu0
  %1028 = vmatprep.mubr.f32.mxu0 0.0
  %1029 = vmatmul.mubr.f32.gmra.mrb[0].mxu0 %v931
  %v1030 = vpop.f32.mrb[0].mxu0
  %v1031 = vadd.f32 0.0, %v1030
  %v1032 = vpop.f32.mrb[0].mxu0
  %1033 = vmatprep.mubr.f32.mxu0 0.0
  %1034 = vmatmul.mubr.f32.gmra.mrb[0].mxu0 %v933
  %v1035 = vpop.f32.mrb[0].mxu0
  %v1036 = vadd.f32 0.0, %v1035
  %v1037 = vpop.f32.mrb[0].mxu0
  %1038 = vmatprep.mubr.f32.mxu0 0.0
  %1039 = vmatmul.mubr.f32.gmra.mrb[0].mxu0 %v935
  %v1040 = vpop.f32.mrb[0].mxu0
  %v1041 = vadd.f32 0.0, %v1040
  %v1042 = vpop.f32.mrb[0].mxu0
  %1043 = vmatprep.mubr.f32.mxu0 0.0
  %1044 = vmatmul.mubr.f32.gmra.mrb[0].mxu0 %v937
  %v1045 = vpop.f32.mrb[0].mxu0
  %v1046 = vadd.f32 0.0, %v1045
  %v1047 = vpop.f32.mrb[0].mxu0
  %1048 = vmatprep.mubr.f32.mxu0 0.0
  %1049 = vmatmul.mubr.f32.gmra.mrb[0].mxu0 %v939
  %v1050 = vpop.f32.mrb[0].mxu0
  %v1051 = vadd.f32 0.0, %v1050
  %v1052 = vpop.f32.mrb[0].mxu0
  %1053 = vdwg.mxu0
  %v1054 = vadd.f32 %v858, %v1011
  %v1055 = vadd.f32 %v863, %v1016
  %v1056 = vadd.f32 %v868, %v1021
  %v1057 = vadd.f32 %v873, %v1026
  %v1058 = vadd.f32 %v878, %v1031
  %v1059 = vadd.f32 %v883, %v1036
  %v1060 = vadd.f32 %v888, %v1041
  %v1061 = vadd.f32 %v893, %v1046
  %v1062 = vadd.f32 %v898, %v1051
  %s1063 = scalar_lea.vmem %s1, 72
  %v1064 = vld [vmem:[%s1063] sm:$0xff]
  %v1065 = vld [vmem:[%s1063 + $0x8] sm:$0xff]
  %v1066 = vld [vmem:[%s1063 + $0x10] sm:$0x1f]
  %v1067 = vrot.slane %v593, 3
  %v1068 = vrot.slane %v594, 3
  %v1069 = vsel %vm656, %v1067, %v1068
  %v1070 = vrot.slane %v595, 3
  %v1071 = vsel %vm656, %v1068, %v1070
  %v1072 = vrot.slane %v596, 3
  %v1073 = vsel %vm656, %v1070, %v1072
  %v1074 = vrot.slane %v597, 3
  %v1075 = vsel %vm656, %v1072, %v1074
  %v1076 = vrot.slane %v598, 3
  %v1077 = vsel %vm656, %v1074, %v1076
  %v1078 = vrot.slane %v599, 3
  %v1079 = vsel %vm656, %v1076, %v1078
  %v1080 = vrot.slane %v600, 3
  %v1081 = vsel %vm656, %v1078, %v1080
  %v1082 = vrot.slane %v601, 3
  %v1083 = vsel %vm656, %v1080, %v1082
  %v1084 = vsel %vm637, %v1069, 0
  %v1086 = vsel %vm637, %v1071, 0
  %v1088 = vsel %vm637, %v1073, 0
  %v1090 = vsel %vm637, %v1075, 0
  %v1092 = vsel %vm637, %v1077, 0
  %v1094 = vsel %vm637, %v1079, 0
  %v1096 = vsel %vm637, %v1081, 0
  %v1098 = vsel %vm637, %v1083, 0
  %v1100 = vsel %vm637, %v1082, 0
  %v1103 = vsel %vm656, %v1066, 0
  %1105 = vmatprep.subr.mxu0 0.0
  %1106 = vmatpush1.msra.mxu0 %v1064
  %1107 = vmatprep.subr.mxu0 0.0
  %1108 = vmatpush1.msra.mxu0 %v1065
  %1109 = vmatprep.subr.mxu0 0.0
  %1110 = vmatpush1.msra.mxu0 %v1103
  %1111 = vmatprep.subr.mxu0 0.0
  %1112 = vmatpush1.msra.mxu0 0.0
  %1113 = vmatprep.subr.mxu0 0.0
  %1114 = vmatpush1.msra.mxu0 0.0
  %1115 = vmatprep.subr.mxu0 0.0
  %1116 = vmatpush1.msra.mxu0 0.0
  %1117 = vmatprep.subr.mxu0 0.0
  %1118 = vmatpush1.msra.mxu0 0.0
  %1119 = vmatprep.subr.mxu0 0.0
  %1120 = vmatpush1.msra.mxu0 0.0
  %1121 = vmatprep.subr.mxu0 0.0
  %1122 = vmatpush1.msra.mxu0 0.0
  %1123 = vmatprep.subr.mxu0 0.0
  %1124 = vmatpush1.msra.mxu0 0.0
  %1125 = vmatprep.subr.mxu0 0.0
  %1126 = vmatpush1.msra.mxu0 0.0
  %1127 = vmatprep.subr.mxu0 0.0
  %1128 = vmatpush1.msra.mxu0 0.0
  %1129 = vmatprep.subr.mxu0 0.0
  %1130 = vmatpush1.msra.mxu0 0.0
  %1131 = vmatprep.subr.mxu0 0.0
  %1132 = vmatpush1.msra.mxu0 0.0
  %1133 = vmatprep.subr.mxu0 0.0
  %1134 = vmatpush1.msra.mxu0 0.0
  %1135 = vmatprep.subr.mxu0 0.0
  %1136 = vmatpush1.msra.mxu0 0.0
  %1137 = vmatprep.subr.mxu0 0.0
  %1138 = vmatpush1.msra.mxu0 0.0
  %1139 = vmatprep.subr.mxu0 0.0
  %1140 = vmatpush1.msra.mxu0 0.0
  %1141 = vmatprep.subr.mxu0 0.0
  %1142 = vmatpush1.msra.mxu0 0.0
  %1143 = vmatprep.subr.mxu0 0.0
  %1144 = vmatpush1.msra.mxu0 0.0
  %1145 = vmatprep.subr.mxu0 0.0
  %1146 = vmatpush1.msra.mxu0 0.0
  %1147 = vmatprep.subr.mxu0 0.0
  %1148 = vmatpush1.msra.mxu0 0.0
  %1149 = vmatprep.subr.mxu0 0.0
  %1150 = vmatpush1.msra.mxu0 0.0
  %1151 = vmatprep.subr.mxu0 0.0
  %1152 = vmatpush1.msra.mxu0 0.0
  %1153 = vmatprep.subr.mxu0 0.0
  %1154 = vmatpush1.msra.mxu0 0.0
  %1155 = vmatprep.subr.mxu0 0.0
  %1156 = vmatpush1.msra.mxu0 0.0
  %1157 = vmatprep.subr.mxu0 0.0
  %1158 = vmatpush1.msra.mxu0 0.0
  %1159 = vmatprep.subr.mxu0 0.0
  %1160 = vmatpush1.msra.mxu0 0.0
  %1161 = vmatprep.subr.mxu0 0.0
  %1162 = vmatpush1.msra.mxu0 0.0
  %1163 = vmatprep.subr.mxu0 0.0
  %1164 = vmatpush1.msra.mxu0 0.0
  %1165 = vmatprep.subr.mxu0 0.0
  %1166 = vmatpush1.msra.mxu0 0.0
  %1167 = vmatprep.subr.mxu0 0.0
  %1168 = vmatpush1.msra.mxu0 0.0
  %1169 = vmatprep.mubr.f32.mxu0 0.0
  %1170 = vmatmul.mubr.f32.gmra.mrb[0].mxu0 %v1084
  %v1171 = vpop.f32.mrb[0].mxu0
  %v1172 = vadd.f32 0.0, %v1171
  %v1173 = vpop.f32.mrb[0].mxu0
  %1174 = vmatprep.mubr.f32.mxu0 0.0
  %1175 = vmatmul.mubr.f32.gmra.mrb[0].mxu0 %v1086
  %v1176 = vpop.f32.mrb[0].mxu0
  %v1177 = vadd.f32 0.0, %v1176
  %v1178 = vpop.f32.mrb[0].mxu0
  %1179 = vmatprep.mubr.f32.mxu0 0.0
  %1180 = vmatmul.mubr.f32.gmra.mrb[0].mxu0 %v1088
  %v1181 = vpop.f32.mrb[0].mxu0
  %v1182 = vadd.f32 0.0, %v1181
  %v1183 = vpop.f32.mrb[0].mxu0
  %1184 = vmatprep.mubr.f32.mxu0 0.0
  %1185 = vmatmul.mubr.f32.gmra.mrb[0].mxu0 %v1090
  %v1186 = vpop.f32.mrb[0].mxu0
  %v1187 = vadd.f32 0.0, %v1186
  %v1188 = vpop.f32.mrb[0].mxu0
  %1189 = vmatprep.mubr.f32.mxu0 0.0
  %1190 = vmatmul.mubr.f32.gmra.mrb[0].mxu0 %v1092
  %v1191 = vpop.f32.mrb[0].mxu0
  %v1192 = vadd.f32 0.0, %v1191
  %v1193 = vpop.f32.mrb[0].mxu0
  %1194 = vmatprep.mubr.f32.mxu0 0.0
  %1195 = vmatmul.mubr.f32.gmra.mrb[0].mxu0 %v1094
  %v1196 = vpop.f32.mrb[0].mxu0
  %v1197 = vadd.f32 0.0, %v1196
  %v1198 = vpop.f32.mrb[0].mxu0
  %1199 = vmatprep.mubr.f32.mxu0 0.0
  %1200 = vmatmul.mubr.f32.gmra.mrb[0].mxu0 %v1096
  %v1201 = vpop.f32.mrb[0].mxu0
  %v1202 = vadd.f32 0.0, %v1201
  %v1203 = vpop.f32.mrb[0].mxu0
  %1204 = vmatprep.mubr.f32.mxu0 0.0
  %1205 = vmatmul.mubr.f32.gmra.mrb[0].mxu0 %v1098
  %v1206 = vpop.f32.mrb[0].mxu0
  %v1207 = vadd.f32 0.0, %v1206
  %v1208 = vpop.f32.mrb[0].mxu0
  %1209 = vmatprep.mubr.f32.mxu0 0.0
  %1210 = vmatmul.mubr.f32.gmra.mrb[0].mxu0 %v1100
  %v1211 = vpop.f32.mrb[0].mxu0
  %v1212 = vadd.f32 0.0, %v1211
  %v1213 = vpop.f32.mrb[0].mxu0
  %1214 = vdwg.mxu0
  %v1215 = vadd.f32 %v1054, %v1172
  %v1216 = vadd.f32 %v1055, %v1177
  %v1217 = vadd.f32 %v1056, %v1182
  %v1218 = vadd.f32 %v1057, %v1187
  %v1219 = vadd.f32 %v1058, %v1192
  %v1220 = vadd.f32 %v1059, %v1197
  %v1221 = vadd.f32 %v1060, %v1202
  %v1222 = vadd.f32 %v1061, %v1207
  %v1223 = vadd.f32 %v1062, %v1212
  %s1224 = scalar_lea.vmem %s1, 96
  %v1225 = vld [vmem:[%s1224] sm:$0xff]
  %v1226 = vld [vmem:[%s1224 + $0x8] sm:$0xff]
  %v1227 = vld [vmem:[%s1224 + $0x10] sm:$0x1f]
  %vm1228 = vcmask 1043456
  %v1229 = vrot.slane %v593, 4
  %v1230 = vrot.slane %v594, 4
  %v1231 = vsel %vm1228, %v1229, %v1230
  %v1232 = vrot.slane %v595, 4
  %v1233 = vsel %vm1228, %v1230, %v1232
  %v1234 = vrot.slane %v596, 4
  %v1235 = vsel %vm1228, %v1232, %v1234
  %v1236 = vrot.slane %v597, 4
  %v1237 = vsel %vm1228, %v1234, %v1236
  %v1238 = vrot.slane %v598, 4
  %v1239 = vsel %vm1228, %v1236, %v1238
  %v1240 = vrot.slane %v599, 4
  %v1241 = vsel %vm1228, %v1238, %v1240
  %v1242 = vrot.slane %v600, 4
  %v1243 = vsel %vm1228, %v1240, %v1242
  %v1244 = vrot.slane %v601, 4
  %v1245 = vsel %vm1228, %v1242, %v1244
  %v1246 = vsel %vm637, %v1231, 0
  %v1248 = vsel %vm637, %v1233, 0
  %v1250 = vsel %vm637, %v1235, 0
  %v1252 = vsel %vm637, %v1237, 0
  %v1254 = vsel %vm637, %v1239, 0
  %v1256 = vsel %vm637, %v1241, 0
  %v1258 = vsel %vm637, %v1243, 0
  %v1260 = vsel %vm637, %v1245, 0
  %v1262 = vsel %vm637, %v1244, 0
  %v1265 = vsel %vm656, %v1227, 0
  %1267 = vmatprep.subr.mxu0 0.0
  %1268 = vmatpush1.msra.mxu0 %v1225
  %1269 = vmatprep.subr.mxu0 0.0
  %1270 = vmatpush1.msra.mxu0 %v1226
  %1271 = vmatprep.subr.mxu0 0.0
  %1272 = vmatpush1.msra.mxu0 %v1265
  %1273 = vmatprep.subr.mxu0 0.0
  %1274 = vmatpush1.msra.mxu0 0.0
  %1275 = vmatprep.subr.mxu0 0.0
  %1276 = vmatpush1.msra.mxu0 0.0
  %1277 = vmatprep.subr.mxu0 0.0
  %1278 = vmatpush1.msra.mxu0 0.0
  %1279 = vmatprep.subr.mxu0 0.0
  %1280 = vmatpush1.msra.mxu0 0.0
  %1281 = vmatprep.subr.mxu0 0.0
  %1282 = vmatpush1.msra.mxu0 0.0
  %1283 = vmatprep.subr.mxu0 0.0
  %1284 = vmatpush1.msra.mxu0 0.0
  %1285 = vmatprep.subr.mxu0 0.0
  %1286 = vmatpush1.msra.mxu0 0.0
  %1287 = vmatprep.subr.mxu0 0.0
  %1288 = vmatpush1.msra.mxu0 0.0
  %1289 = vmatprep.subr.mxu0 0.0
  %1290 = vmatpush1.msra.mxu0 0.0
  %1291 = vmatprep.subr.mxu0 0.0
  %1292 = vmatpush1.msra.mxu0 0.0
  %1293 = vmatprep.subr.mxu0 0.0
  %1294 = vmatpush1.msra.mxu0 0.0
  %1295 = vmatprep.subr.mxu0 0.0
  %1296 = vmatpush1.msra.mxu0 0.0
  %1297 = vmatprep.subr.mxu0 0.0
  %1298 = vmatpush1.msra.mxu0 0.0
  %1299 = vmatprep.subr.mxu0 0.0
  %1300 = vmatpush1.msra.mxu0 0.0
  %1301 = vmatprep.subr.mxu0 0.0
  %1302 = vmatpush1.msra.mxu0 0.0
  %1303 = vmatprep.subr.mxu0 0.0
  %1304 = vmatpush1.msra.mxu0 0.0
  %1305 = vmatprep.subr.mxu0 0.0
  %1306 = vmatpush1.msra.mxu0 0.0
  %1307 = vmatprep.subr.mxu0 0.0
  %1308 = vmatpush1.msra.mxu0 0.0
  %1309 = vmatprep.subr.mxu0 0.0
  %1310 = vmatpush1.msra.mxu0 0.0
  %1311 = vmatprep.subr.mxu0 0.0
  %1312 = vmatpush1.msra.mxu0 0.0
  %1313 = vmatprep.subr.mxu0 0.0
  %1314 = vmatpush1.msra.mxu0 0.0
  %1315 = vmatprep.subr.mxu0 0.0
  %1316 = vmatpush1.msra.mxu0 0.0
  %1317 = vmatprep.subr.mxu0 0.0
  %1318 = vmatpush1.msra.mxu0 0.0
  %1319 = vmatprep.subr.mxu0 0.0
  %1320 = vmatpush1.msra.mxu0 0.0
  %1321 = vmatprep.subr.mxu0 0.0
  %1322 = vmatpush1.msra.mxu0 0.0
  %1323 = vmatprep.subr.mxu0 0.0
  %1324 = vmatpush1.msra.mxu0 0.0
  %1325 = vmatprep.subr.mxu0 0.0
  %1326 = vmatpush1.msra.mxu0 0.0
  %1327 = vmatprep.subr.mxu0 0.0
  %1328 = vmatpush1.msra.mxu0 0.0
  %1329 = vmatprep.subr.mxu0 0.0
  %1330 = vmatpush1.msra.mxu0 0.0
  %1331 = vmatprep.mubr.f32.mxu0 0.0
  %1332 = vmatmul.mubr.f32.gmra.mrb[0].mxu0 %v1246
  %v1333 = vpop.f32.mrb[0].mxu0
  %v1334 = vadd.f32 0.0, %v1333
  %v1335 = vpop.f32.mrb[0].mxu0
  %1336 = vmatprep.mubr.f32.mxu0 0.0
  %1337 = vmatmul.mubr.f32.gmra.mrb[0].mxu0 %v1248
  %v1338 = vpop.f32.mrb[0].mxu0
  %v1339 = vadd.f32 0.0, %v1338
  %v1340 = vpop.f32.mrb[0].mxu0
  %1341 = vmatprep.mubr.f32.mxu0 0.0
  %1342 = vmatmul.mubr.f32.gmra.mrb[0].mxu0 %v1250
  %v1343 = vpop.f32.mrb[0].mxu0
  %v1344 = vadd.f32 0.0, %v1343
  %v1345 = vpop.f32.mrb[0].mxu0
  %1346 = vmatprep.mubr.f32.mxu0 0.0
  %1347 = vmatmul.mubr.f32.gmra.mrb[0].mxu0 %v1252
  %v1348 = vpop.f32.mrb[0].mxu0
  %v1349 = vadd.f32 0.0, %v1348
  %v1350 = vpop.f32.mrb[0].mxu0
  %1351 = vmatprep.mubr.f32.mxu0 0.0
  %1352 = vmatmul.mubr.f32.gmra.mrb[0].mxu0 %v1254
  %v1353 = vpop.f32.mrb[0].mxu0
  %v1354 = vadd.f32 0.0, %v1353
  %v1355 = vpop.f32.mrb[0].mxu0
  %1356 = vmatprep.mubr.f32.mxu0 0.0
  %1357 = vmatmul.mubr.f32.gmra.mrb[0].mxu0 %v1256
  %v1358 = vpop.f32.mrb[0].mxu0
  %v1359 = vadd.f32 0.0, %v1358
  %v1360 = vpop.f32.mrb[0].mxu0
  %1361 = vmatprep.mubr.f32.mxu0 0.0
  %1362 = vmatmul.mubr.f32.gmra.mrb[0].mxu0 %v1258
  %v1363 = vpop.f32.mrb[0].mxu0
  %v1364 = vadd.f32 0.0, %v1363
  %v1365 = vpop.f32.mrb[0].mxu0
  %1366 = vmatprep.mubr.f32.mxu0 0.0
  %1367 = vmatmul.mubr.f32.gmra.mrb[0].mxu0 %v1260
  %v1368 = vpop.f32.mrb[0].mxu0
  %v1369 = vadd.f32 0.0, %v1368
  %v1370 = vpop.f32.mrb[0].mxu0
  %1371 = vmatprep.mubr.f32.mxu0 0.0
  %1372 = vmatmul.mubr.f32.gmra.mrb[0].mxu0 %v1262
  %v1373 = vpop.f32.mrb[0].mxu0
  %v1374 = vadd.f32 0.0, %v1373
  %v1375 = vpop.f32.mrb[0].mxu0
  %1376 = vdwg.mxu0
  %v1377 = vadd.f32 %v1215, %v1334
  %v1378 = vadd.f32 %v1216, %v1339
  %v1379 = vadd.f32 %v1217, %v1344
  %v1380 = vadd.f32 %v1218, %v1349
  %v1381 = vadd.f32 %v1219, %v1354
  %v1382 = vadd.f32 %v1220, %v1359
  %v1383 = vadd.f32 %v1221, %v1364
  %v1384 = vadd.f32 %v1222, %v1369
  %v1385 = vadd.f32 %v1223, %v1374
  %s1386 = scalar_lea.vmem %s1, 120
  %v1387 = vld [vmem:[%s1386] sm:$0xff]
  %v1388 = vld [vmem:[%s1386 + $0x8] sm:$0xff]
  %v1389 = vld [vmem:[%s1386 + $0x10] sm:$0x1f]
  %vm1390 = vcmask 1042432
  %v1391 = vrot.slane %v593, 5
  %v1392 = vrot.slane %v594, 5
  %v1393 = vsel %vm1390, %v1391, %v1392
  %v1394 = vrot.slane %v595, 5
  %v1395 = vsel %vm1390, %v1392, %v1394
  %v1396 = vrot.slane %v596, 5
  %v1397 = vsel %vm1390, %v1394, %v1396
  %v1398 = vrot.slane %v597, 5
  %v1399 = vsel %vm1390, %v1396, %v1398
  %v1400 = vrot.slane %v598, 5
  %v1401 = vsel %vm1390, %v1398, %v1400
  %v1402 = vrot.slane %v599, 5
  %v1403 = vsel %vm1390, %v1400, %v1402
  %v1404 = vrot.slane %v600, 5
  %v1405 = vsel %vm1390, %v1402, %v1404
  %v1406 = vrot.slane %v601, 5
  %v1407 = vsel %vm1390, %v1404, %v1406
  %v1408 = vsel %vm637, %v1393, 0
  %v1410 = vsel %vm637, %v1395, 0
  %v1412 = vsel %vm637, %v1397, 0
  %v1414 = vsel %vm637, %v1399, 0
  %v1416 = vsel %vm637, %v1401, 0
  %v1418 = vsel %vm637, %v1403, 0
  %v1420 = vsel %vm637, %v1405, 0
  %v1422 = vsel %vm637, %v1407, 0
  %v1424 = vsel %vm637, %v1406, 0
  %v1427 = vsel %vm656, %v1389, 0
  %1429 = vmatprep.subr.mxu0 0.0
  %1430 = vmatpush1.msra.mxu0 %v1387
  %1431 = vmatprep.subr.mxu0 0.0
  %1432 = vmatpush1.msra.mxu0 %v1388
  %1433 = vmatprep.subr.mxu0 0.0
  %1434 = vmatpush1.msra.mxu0 %v1427
  %1435 = vmatprep.subr.mxu0 0.0
  %1436 = vmatpush1.msra.mxu0 0.0
  %1437 = vmatprep.subr.mxu0 0.0
  %1438 = vmatpush1.msra.mxu0 0.0
  %1439 = vmatprep.subr.mxu0 0.0
  %1440 = vmatpush1.msra.mxu0 0.0
  %1441 = vmatprep.subr.mxu0 0.0
  %1442 = vmatpush1.msra.mxu0 0.0
  %1443 = vmatprep.subr.mxu0 0.0
  %1444 = vmatpush1.msra.mxu0 0.0
  %1445 = vmatprep.subr.mxu0 0.0
  %1446 = vmatpush1.msra.mxu0 0.0
  %1447 = vmatprep.subr.mxu0 0.0
  %1448 = vmatpush1.msra.mxu0 0.0
  %1449 = vmatprep.subr.mxu0 0.0
  %1450 = vmatpush1.msra.mxu0 0.0
  %1451 = vmatprep.subr.mxu0 0.0
  %1452 = vmatpush1.msra.mxu0 0.0
  %1453 = vmatprep.subr.mxu0 0.0
  %1454 = vmatpush1.msra.mxu0 0.0
  %1455 = vmatprep.subr.mxu0 0.0
  %1456 = vmatpush1.msra.mxu0 0.0
  %1457 = vmatprep.subr.mxu0 0.0
  %1458 = vmatpush1.msra.mxu0 0.0
  %1459 = vmatprep.subr.mxu0 0.0
  %1460 = vmatpush1.msra.mxu0 0.0
  %1461 = vmatprep.subr.mxu0 0.0
  %1462 = vmatpush1.msra.mxu0 0.0
  %1463 = vmatprep.subr.mxu0 0.0
  %1464 = vmatpush1.msra.mxu0 0.0
  %1465 = vmatprep.subr.mxu0 0.0
  %1466 = vmatpush1.msra.mxu0 0.0
  %1467 = vmatprep.subr.mxu0 0.0
  %1468 = vmatpush1.msra.mxu0 0.0
  %1469 = vmatprep.subr.mxu0 0.0
  %1470 = vmatpush1.msra.mxu0 0.0
  %1471 = vmatprep.subr.mxu0 0.0
  %1472 = vmatpush1.msra.mxu0 0.0
  %1473 = vmatprep.subr.mxu0 0.0
  %1474 = vmatpush1.msra.mxu0 0.0
  %1475 = vmatprep.subr.mxu0 0.0
  %1476 = vmatpush1.msra.mxu0 0.0
  %1477 = vmatprep.subr.mxu0 0.0
  %1478 = vmatpush1.msra.mxu0 0.0
  %1479 = vmatprep.subr.mxu0 0.0
  %1480 = vmatpush1.msra.mxu0 0.0
  %1481 = vmatprep.subr.mxu0 0.0
  %1482 = vmatpush1.msra.mxu0 0.0
  %1483 = vmatprep.subr.mxu0 0.0
  %1484 = vmatpush1.msra.mxu0 0.0
  %1485 = vmatprep.subr.mxu0 0.0
  %1486 = vmatpush1.msra.mxu0 0.0
  %1487 = vmatprep.subr.mxu0 0.0
  %1488 = vmatpush1.msra.mxu0 0.0
  %1489 = vmatprep.subr.mxu0 0.0
  %1490 = vmatpush1.msra.mxu0 0.0
  %1491 = vmatprep.subr.mxu0 0.0
  %1492 = vmatpush1.msra.mxu0 0.0
  %1493 = vmatprep.mubr.f32.mxu0 0.0
  %1494 = vmatmul.mubr.f32.gmra.mrb[0].mxu0 %v1408
  %v1495 = vpop.f32.mrb[0].mxu0
  %v1496 = vadd.f32 0.0, %v1495
  %v1497 = vpop.f32.mrb[0].mxu0
  %1498 = vmatprep.mubr.f32.mxu0 0.0
  %1499 = vmatmul.mubr.f32.gmra.mrb[0].mxu0 %v1410
  %v1500 = vpop.f32.mrb[0].mxu0
  %v1501 = vadd.f32 0.0, %v1500
  %v1502 = vpop.f32.mrb[0].mxu0
  %1503 = vmatprep.mubr.f32.mxu0 0.0
  %1504 = vmatmul.mubr.f32.gmra.mrb[0].mxu0 %v1412
  %v1505 = vpop.f32.mrb[0].mxu0
  %v1506 = vadd.f32 0.0, %v1505
  %v1507 = vpop.f32.mrb[0].mxu0
  %1508 = vmatprep.mubr.f32.mxu0 0.0
  %1509 = vmatmul.mubr.f32.gmra.mrb[0].mxu0 %v1414
  %v1510 = vpop.f32.mrb[0].mxu0
  %v1511 = vadd.f32 0.0, %v1510
  %v1512 = vpop.f32.mrb[0].mxu0
  %1513 = vmatprep.mubr.f32.mxu0 0.0
  %1514 = vmatmul.mubr.f32.gmra.mrb[0].mxu0 %v1416
  %v1515 = vpop.f32.mrb[0].mxu0
  %v1516 = vadd.f32 0.0, %v1515
  %v1517 = vpop.f32.mrb[0].mxu0
  %1518 = vmatprep.mubr.f32.mxu0 0.0
  %1519 = vmatmul.mubr.f32.gmra.mrb[0].mxu0 %v1418
  %v1520 = vpop.f32.mrb[0].mxu0
  %v1521 = vadd.f32 0.0, %v1520
  %v1522 = vpop.f32.mrb[0].mxu0
  %1523 = vmatprep.mubr.f32.mxu0 0.0
  %1524 = vmatmul.mubr.f32.gmra.mrb[0].mxu0 %v1420
  %v1525 = vpop.f32.mrb[0].mxu0
  %v1526 = vadd.f32 0.0, %v1525
  %v1527 = vpop.f32.mrb[0].mxu0
  %1528 = vmatprep.mubr.f32.mxu0 0.0
  %1529 = vmatmul.mubr.f32.gmra.mrb[0].mxu0 %v1422
  %v1530 = vpop.f32.mrb[0].mxu0
  %v1531 = vadd.f32 0.0, %v1530
  %v1532 = vpop.f32.mrb[0].mxu0
  %1533 = vmatprep.mubr.f32.mxu0 0.0
  %1534 = vmatmul.mubr.f32.gmra.mrb[0].mxu0 %v1424
  %v1535 = vpop.f32.mrb[0].mxu0
  %v1536 = vadd.f32 0.0, %v1535
  %v1537 = vpop.f32.mrb[0].mxu0
  %1538 = vdwg.mxu0
  %v1539 = vadd.f32 %v1377, %v1496
  %v1540 = vadd.f32 %v1378, %v1501
  %v1541 = vadd.f32 %v1379, %v1506
  %v1542 = vadd.f32 %v1380, %v1511
  %v1543 = vadd.f32 %v1381, %v1516
  %v1544 = vadd.f32 %v1382, %v1521
  %v1545 = vadd.f32 %v1383, %v1526
  %v1546 = vadd.f32 %v1384, %v1531
  %v1547 = vadd.f32 %v1385, %v1536
  %s1548 = scalar_lea.vmem %s1, 144
  %v1549 = vld [vmem:[%s1548] sm:$0xff]
  %v1550 = vld [vmem:[%s1548 + $0x8] sm:$0xff]
  %v1551 = vld [vmem:[%s1548 + $0x10] sm:$0x1f]
  %vm1553 = vcmask 1041408
  %v1554 = vrot.slane %v593, 6
  %v1555 = vrot.slane %v594, 6
  %v1556 = vsel %vm1553, %v1554, %v1555
  %v1557 = vrot.slane %v595, 6
  %v1558 = vsel %vm1553, %v1555, %v1557
  %v1559 = vrot.slane %v596, 6
  %v1560 = vsel %vm1553, %v1557, %v1559
  %v1561 = vrot.slane %v597, 6
  %v1562 = vsel %vm1553, %v1559, %v1561
  %v1563 = vrot.slane %v598, 6
  %v1564 = vsel %vm1553, %v1561, %v1563
  %v1565 = vrot.slane %v599, 6
  %v1566 = vsel %vm1553, %v1563, %v1565
  %v1567 = vrot.slane %v600, 6
  %v1568 = vsel %vm1553, %v1565, %v1567
  %v1569 = vrot.slane %v601, 6
  %v1570 = vsel %vm1553, %v1567, %v1569
  %v1571 = vrot.slane %v602, 6
  %v1572 = vsel %vm1553, %v1569, %v1571
  %v1573 = vsel %vm637, %v1556, 0
  %v1575 = vsel %vm637, %v1558, 0
  %v1577 = vsel %vm637, %v1560, 0
  %v1579 = vsel %vm637, %v1562, 0
  %v1581 = vsel %vm637, %v1564, 0
  %v1583 = vsel %vm637, %v1566, 0
  %v1585 = vsel %vm637, %v1568, 0
  %v1587 = vsel %vm637, %v1570, 0
  %v1589 = vsel %vm637, %v1572, 0
  %v1592 = vsel %vm656, %v1551, 0
  %1594 = vmatprep.subr.mxu0 0.0
  %1595 = vmatpush1.msra.mxu0 %v1549
  %1596 = vmatprep.subr.mxu0 0.0
  %1597 = vmatpush1.msra.mxu0 %v1550
  %1598 = vmatprep.subr.mxu0 0.0
  %1599 = vmatpush1.msra.mxu0 %v1592
  %1600 = vmatprep.subr.mxu0 0.0
  %1601 = vmatpush1.msra.mxu0 0.0
  %1602 = vmatprep.subr.mxu0 0.0
  %1603 = vmatpush1.msra.mxu0 0.0
  %1604 = vmatprep.subr.mxu0 0.0
  %1605 = vmatpush1.msra.mxu0 0.0
  %1606 = vmatprep.subr.mxu0 0.0
  %1607 = vmatpush1.msra.mxu0 0.0
  %1608 = vmatprep.subr.mxu0 0.0
  %1609 = vmatpush1.msra.mxu0 0.0
  %1610 = vmatprep.subr.mxu0 0.0
  %1611 = vmatpush1.msra.mxu0 0.0
  %1612 = vmatprep.subr.mxu0 0.0
  %1613 = vmatpush1.msra.mxu0 0.0
  %1614 = vmatprep.subr.mxu0 0.0
  %1615 = vmatpush1.msra.mxu0 0.0
  %1616 = vmatprep.subr.mxu0 0.0
  %1617 = vmatpush1.msra.mxu0 0.0
  %1618 = vmatprep.subr.mxu0 0.0
  %1619 = vmatpush1.msra.mxu0 0.0
  %1620 = vmatprep.subr.mxu0 0.0
  %1621 = vmatpush1.msra.mxu0 0.0
  %1622 = vmatprep.subr.mxu0 0.0
  %1623 = vmatpush1.msra.mxu0 0.0
  %1624 = vmatprep.subr.mxu0 0.0
  %1625 = vmatpush1.msra.mxu0 0.0
  %1626 = vmatprep.subr.mxu0 0.0
  %1627 = vmatpush1.msra.mxu0 0.0
  %1628 = vmatprep.subr.mxu0 0.0
  %1629 = vmatpush1.msra.mxu0 0.0
  %1630 = vmatprep.subr.mxu0 0.0
  %1631 = vmatpush1.msra.mxu0 0.0
  %1632 = vmatprep.subr.mxu0 0.0
  %1633 = vmatpush1.msra.mxu0 0.0
  %1634 = vmatprep.subr.mxu0 0.0
  %1635 = vmatpush1.msra.mxu0 0.0
  %1636 = vmatprep.subr.mxu0 0.0
  %1637 = vmatpush1.msra.mxu0 0.0
  %1638 = vmatprep.subr.mxu0 0.0
  %1639 = vmatpush1.msra.mxu0 0.0
  %1640 = vmatprep.subr.mxu0 0.0
  %1641 = vmatpush1.msra.mxu0 0.0
  %1642 = vmatprep.subr.mxu0 0.0
  %1643 = vmatpush1.msra.mxu0 0.0
  %1644 = vmatprep.subr.mxu0 0.0
  %1645 = vmatpush1.msra.mxu0 0.0
  %1646 = vmatprep.subr.mxu0 0.0
  %1647 = vmatpush1.msra.mxu0 0.0
  %1648 = vmatprep.subr.mxu0 0.0
  %1649 = vmatpush1.msra.mxu0 0.0
  %1650 = vmatprep.subr.mxu0 0.0
  %1651 = vmatpush1.msra.mxu0 0.0
  %1652 = vmatprep.subr.mxu0 0.0
  %1653 = vmatpush1.msra.mxu0 0.0
  %1654 = vmatprep.subr.mxu0 0.0
  %1655 = vmatpush1.msra.mxu0 0.0
  %1656 = vmatprep.subr.mxu0 0.0
  %1657 = vmatpush1.msra.mxu0 0.0
  %1658 = vmatprep.mubr.f32.mxu0 0.0
  %1659 = vmatmul.mubr.f32.gmra.mrb[0].mxu0 %v1573
  %v1660 = vpop.f32.mrb[0].mxu0
  %v1661 = vadd.f32 0.0, %v1660
  %v1662 = vpop.f32.mrb[0].mxu0
  %1663 = vmatprep.mubr.f32.mxu0 0.0
  %1664 = vmatmul.mubr.f32.gmra.mrb[0].mxu0 %v1575
  %v1665 = vpop.f32.mrb[0].mxu0
  %v1666 = vadd.f32 0.0, %v1665
  %v1667 = vpop.f32.mrb[0].mxu0
  %1668 = vmatprep.mubr.f32.mxu0 0.0
  %1669 = vmatmul.mubr.f32.gmra.mrb[0].mxu0 %v1577
  %v1670 = vpop.f32.mrb[0].mxu0
  %v1671 = vadd.f32 0.0, %v1670
  %v1672 = vpop.f32.mrb[0].mxu0
  %1673 = vmatprep.mubr.f32.mxu0 0.0
  %1674 = vmatmul.mubr.f32.gmra.mrb[0].mxu0 %v1579
  %v1675 = vpop.f32.mrb[0].mxu0
  %v1676 = vadd.f32 0.0, %v1675
  %v1677 = vpop.f32.mrb[0].mxu0
  %1678 = vmatprep.mubr.f32.mxu0 0.0
  %1679 = vmatmul.mubr.f32.gmra.mrb[0].mxu0 %v1581
  %v1680 = vpop.f32.mrb[0].mxu0
  %v1681 = vadd.f32 0.0, %v1680
  %v1682 = vpop.f32.mrb[0].mxu0
  %1683 = vmatprep.mubr.f32.mxu0 0.0
  %1684 = vmatmul.mubr.f32.gmra.mrb[0].mxu0 %v1583
  %v1685 = vpop.f32.mrb[0].mxu0
  %v1686 = vadd.f32 0.0, %v1685
  %v1687 = vpop.f32.mrb[0].mxu0
  %1688 = vmatprep.mubr.f32.mxu0 0.0
  %1689 = vmatmul.mubr.f32.gmra.mrb[0].mxu0 %v1585
  %v1690 = vpop.f32.mrb[0].mxu0
  %v1691 = vadd.f32 0.0, %v1690
  %v1692 = vpop.f32.mrb[0].mxu0
  %1693 = vmatprep.mubr.f32.mxu0 0.0
  %1694 = vmatmul.mubr.f32.gmra.mrb[0].mxu0 %v1587
  %v1695 = vpop.f32.mrb[0].mxu0
  %v1696 = vadd.f32 0.0, %v1695
  %v1697 = vpop.f32.mrb[0].mxu0
  %1698 = vmatprep.mubr.f32.mxu0 0.0
  %1699 = vmatmul.mubr.f32.gmra.mrb[0].mxu0 %v1589
  %v1700 = vpop.f32.mrb[0].mxu0
  %v1701 = vadd.f32 0.0, %v1700
  %v1702 = vpop.f32.mrb[0].mxu0
  %1703 = vdwg.mxu0
  %v1704 = vadd.f32 %v1539, %v1661
  %v1705 = vadd.f32 %v1540, %v1666
  %v1706 = vadd.f32 %v1541, %v1671
  %v1707 = vadd.f32 %v1542, %v1676
  %v1708 = vadd.f32 %v1543, %v1681
  %v1709 = vadd.f32 %v1544, %v1686
  %v1710 = vadd.f32 %v1545, %v1691
  %v1711 = vadd.f32 %v1546, %v1696
  %v1712 = vadd.f32 %v1547, %v1701
  %v1713 = vld [vmem:[%s2] sm:$0x1]
  %v1715 = vlaneseq
  %v1716 = vshrl.u32 %v1715, 7
  %v1717 = vsub.s32 0, %v1716
  %v1718 = vrot.slane %v1713, %v1717
  %v1720 = vadd.f32 %v1704, %v1718
  %v1721 = vadd.f32 %v1705, %v1718
  %v1722 = vadd.f32 %v1706, %v1718
  %v1723 = vadd.f32 %v1707, %v1718
  %v1724 = vadd.f32 %v1708, %v1718
  %v1725 = vadd.f32 %v1709, %v1718
  %v1726 = vadd.f32 %v1710, %v1718
  %v1727 = vadd.f32 %v1711, %v1718
  %v1728 = vadd.f32 %v1712, %v1718
  %v1729 = vtanh.pop %v1720
  %v1730 = vtanh.pop %v1721
  %v1731 = vtanh.pop %v1722
  %v1732 = vtanh.pop %v1723
  %v1733 = vtanh.pop %v1724
  %v1734 = vtanh.pop %v1725
  %v1735 = vtanh.pop %v1726
  %v1736 = vtanh.pop %v1727
  %v1737 = vtanh.pop %v1728
  %v1738 = vld [vmem:[%s3] sm:$0xff]
  %v1739 = vld [vmem:[%s3 + $0x8] sm:$0xff]
  %v1740 = vld [vmem:[%s3 + $0x10] sm:$0xff]
  %v1741 = vld [vmem:[%s3 + $0x18] sm:$0xff]
  %v1742 = vld [vmem:[%s3 + $0x20] sm:$0xff]
  %v1743 = vld [vmem:[%s3 + $0x28] sm:$0x1f]
  %s1744 = scalar_lea.vmem %s3, 48
  %v1745 = vld [vmem:[%s1744] sm:$0xff]
  %v1746 = vld [vmem:[%s1744 + $0x8] sm:$0xff]
  %v1747 = vld [vmem:[%s1744 + $0x10] sm:$0xff]
  %v1748 = vld [vmem:[%s1744 + $0x18] sm:$0xff]
  %v1749 = vld [vmem:[%s1744 + $0x20] sm:$0xff]
  %v1750 = vld [vmem:[%s1744 + $0x28] sm:$0x1f]
  %v1760 = vrot.slane %v1729, 1
  %v1761 = vrot.slane %v1730, 1
  %v1762 = vsel %vm619, %v1760, %v1761
  %v1763 = vrot.slane %v1731, 1
  %v1764 = vsel %vm619, %v1761, %v1763
  %v1765 = vrot.slane %v1732, 1
  %v1766 = vsel %vm619, %v1763, %v1765
  %v1767 = vrot.slane %v1733, 1
  %v1768 = vsel %vm619, %v1765, %v1767
  %v1769 = vrot.slane %v1734, 1
  %v1770 = vsel %vm619, %v1767, %v1769
  %v1771 = vrot.slane %v1735, 1
  %v1772 = vsel %vm619, %v1769, %v1771
  %v1773 = vrot.slane %v1736, 1
  %v1774 = vsel %vm619, %v1771, %v1773
  %v1775 = vrot.slane %v1737, 1
  %v1776 = vsel %vm619, %v1773, %v1775
  %vm1777 = vcmask 367616
  %v1778 = vsel %vm1777, %v1762, 0
  %v1780 = vsel %vm1777, %v1764, 0
  %v1782 = vsel %vm1777, %v1766, 0
  %v1784 = vsel %vm1777, %v1768, 0
  %v1786 = vsel %vm1777, %v1770, 0
  %v1788 = vsel %vm1777, %v1772, 0
  %v1790 = vsel %vm1777, %v1774, 0
  %v1792 = vsel %vm1777, %v1776, 0
  %v1794 = vsel %vm1777, %v1775, 0
  %v1797 = vsel %vm656, %v1750, 0
  %1799 = vmatprep.subr.mxu0 0.0
  %1800 = vmatpush1.msra.mxu0 %v1745
  %1801 = vmatprep.subr.mxu0 0.0
  %1802 = vmatpush1.msra.mxu0 %v1746
  %1803 = vmatprep.subr.mxu0 0.0
  %1804 = vmatpush1.msra.mxu0 %v1747
  %1805 = vmatprep.subr.mxu0 0.0
  %1806 = vmatpush1.msra.mxu0 %v1748
  %1807 = vmatprep.subr.mxu0 0.0
  %1808 = vmatpush1.msra.mxu0 %v1749
  %1809 = vmatprep.subr.mxu0 0.0
  %1810 = vmatpush1.msra.mxu0 %v1797
  %1811 = vmatprep.subr.mxu0 0.0
  %1812 = vmatpush1.msra.mxu0 0.0
  %1813 = vmatprep.subr.mxu0 0.0
  %1814 = vmatpush1.msra.mxu0 0.0
  %1815 = vmatprep.subr.mxu0 0.0
  %1816 = vmatpush1.msra.mxu0 0.0
  %1817 = vmatprep.subr.mxu0 0.0
  %1818 = vmatpush1.msra.mxu0 0.0
  %1819 = vmatprep.subr.mxu0 0.0
  %1820 = vmatpush1.msra.mxu0 0.0
  %1821 = vmatprep.subr.mxu0 0.0
  %1822 = vmatpush1.msra.mxu0 0.0
  %1823 = vmatprep.subr.mxu0 0.0
  %1824 = vmatpush1.msra.mxu0 0.0
  %1825 = vmatprep.subr.mxu0 0.0
  %1826 = vmatpush1.msra.mxu0 0.0
  %1827 = vmatprep.subr.mxu0 0.0
  %1828 = vmatpush1.msra.mxu0 0.0
  %1829 = vmatprep.subr.mxu0 0.0
  %1830 = vmatpush1.msra.mxu0 0.0
  %1831 = vmatprep.subr.mxu0 0.0
  %1832 = vmatpush1.msra.mxu0 0.0
  %1833 = vmatprep.subr.mxu0 0.0
  %1834 = vmatpush1.msra.mxu0 0.0
  %1835 = vmatprep.subr.mxu0 0.0
  %1836 = vmatpush1.msra.mxu0 0.0
  %1837 = vmatprep.subr.mxu0 0.0
  %1838 = vmatpush1.msra.mxu0 0.0
  %1839 = vmatprep.subr.mxu0 0.0
  %1840 = vmatpush1.msra.mxu0 0.0
  %1841 = vmatprep.subr.mxu0 0.0
  %1842 = vmatpush1.msra.mxu0 0.0
  %1843 = vmatprep.subr.mxu0 0.0
  %1844 = vmatpush1.msra.mxu0 0.0
  %1845 = vmatprep.subr.mxu0 0.0
  %1846 = vmatpush1.msra.mxu0 0.0
  %1847 = vmatprep.subr.mxu0 0.0
  %1848 = vmatpush1.msra.mxu0 0.0
  %1849 = vmatprep.subr.mxu0 0.0
  %1850 = vmatpush1.msra.mxu0 0.0
  %1851 = vmatprep.subr.mxu0 0.0
  %1852 = vmatpush1.msra.mxu0 0.0
  %1853 = vmatprep.subr.mxu0 0.0
  %1854 = vmatpush1.msra.mxu0 0.0
  %1855 = vmatprep.subr.mxu0 0.0
  %1856 = vmatpush1.msra.mxu0 0.0
  %1857 = vmatprep.subr.mxu0 0.0
  %1858 = vmatpush1.msra.mxu0 0.0
  %1859 = vmatprep.subr.mxu0 0.0
  %1860 = vmatpush1.msra.mxu0 0.0
  %1861 = vmatprep.subr.mxu0 0.0
  %1862 = vmatpush1.msra.mxu0 0.0
  %1863 = vmatprep.mubr.f32.mxu0 0.0
  %1864 = vmatmul.mubr.f32.gmra.mrb[0].mxu0 %v1778
  %v1865 = vpop.f32.mrb[0].mxu0
  %v1866 = vadd.f32 0.0, %v1865
  %v1867 = vpop.f32.mrb[0].mxu0
  %1868 = vmatprep.mubr.f32.mxu0 0.0
  %1869 = vmatmul.mubr.f32.gmra.mrb[0].mxu0 %v1780
  %v1870 = vpop.f32.mrb[0].mxu0
  %v1871 = vadd.f32 0.0, %v1870
  %v1872 = vpop.f32.mrb[0].mxu0
  %1873 = vmatprep.mubr.f32.mxu0 0.0
  %1874 = vmatmul.mubr.f32.gmra.mrb[0].mxu0 %v1782
  %v1875 = vpop.f32.mrb[0].mxu0
  %v1876 = vadd.f32 0.0, %v1875
  %v1877 = vpop.f32.mrb[0].mxu0
  %1878 = vmatprep.mubr.f32.mxu0 0.0
  %1879 = vmatmul.mubr.f32.gmra.mrb[0].mxu0 %v1784
  %v1880 = vpop.f32.mrb[0].mxu0
  %v1881 = vadd.f32 0.0, %v1880
  %v1882 = vpop.f32.mrb[0].mxu0
  %1883 = vmatprep.mubr.f32.mxu0 0.0
  %1884 = vmatmul.mubr.f32.gmra.mrb[0].mxu0 %v1786
  %v1885 = vpop.f32.mrb[0].mxu0
  %v1886 = vadd.f32 0.0, %v1885
  %v1887 = vpop.f32.mrb[0].mxu0
  %1888 = vmatprep.mubr.f32.mxu0 0.0
  %1889 = vmatmul.mubr.f32.gmra.mrb[0].mxu0 %v1788
  %v1890 = vpop.f32.mrb[0].mxu0
  %v1891 = vadd.f32 0.0, %v1890
  %v1892 = vpop.f32.mrb[0].mxu0
  %1893 = vmatprep.mubr.f32.mxu0 0.0
  %1894 = vmatmul.mubr.f32.gmra.mrb[0].mxu0 %v1790
  %v1895 = vpop.f32.mrb[0].mxu0
  %v1896 = vadd.f32 0.0, %v1895
  %v1897 = vpop.f32.mrb[0].mxu0
  %1898 = vmatprep.mubr.f32.mxu0 0.0
  %1899 = vmatmul.mubr.f32.gmra.mrb[0].mxu0 %v1792
  %v1900 = vpop.f32.mrb[0].mxu0
  %v1901 = vadd.f32 0.0, %v1900
  %v1902 = vpop.f32.mrb[0].mxu0
  %1903 = vmatprep.mubr.f32.mxu0 0.0
  %1904 = vmatmul.mubr.f32.gmra.mrb[0].mxu0 %v1794
  %v1905 = vpop.f32.mrb[0].mxu0
  %v1906 = vadd.f32 0.0, %v1905
  %v1907 = vpop.f32.mrb[0].mxu0
  %1908 = vdwg.mxu0
  %v1909 = vsel %vm1777, %v1729, 0
  %v1911 = vsel %vm1777, %v1730, 0
  %v1913 = vsel %vm1777, %v1731, 0
  %v1915 = vsel %vm1777, %v1732, 0
  %v1917 = vsel %vm1777, %v1733, 0
  %v1919 = vsel %vm1777, %v1734, 0
  %v1921 = vsel %vm1777, %v1735, 0
  %v1923 = vsel %vm1777, %v1736, 0
  %v1925 = vsel %vm1777, %v1737, 0
  %v1928 = vsel %vm656, %v1743, 0
  %1930 = vmatprep.subr.mxu0 0.0
  %1931 = vmatpush1.msra.mxu0 %v1738
  %1932 = vmatprep.subr.mxu0 0.0
  %1933 = vmatpush1.msra.mxu0 %v1739
  %1934 = vmatprep.subr.mxu0 0.0
  %1935 = vmatpush1.msra.mxu0 %v1740
  %1936 = vmatprep.subr.mxu0 0.0
  %1937 = vmatpush1.msra.mxu0 %v1741
  %1938 = vmatprep.subr.mxu0 0.0
  %1939 = vmatpush1.msra.mxu0 %v1742
  %1940 = vmatprep.subr.mxu0 0.0
  %1941 = vmatpush1.msra.mxu0 %v1928
  %1942 = vmatprep.subr.mxu0 0.0
  %1943 = vmatpush1.msra.mxu0 0.0
  %1944 = vmatprep.subr.mxu0 0.0
  %1945 = vmatpush1.msra.mxu0 0.0
  %1946 = vmatprep.subr.mxu0 0.0
  %1947 = vmatpush1.msra.mxu0 0.0
  %1948 = vmatprep.subr.mxu0 0.0
  %1949 = vmatpush1.msra.mxu0 0.0
  %1950 = vmatprep.subr.mxu0 0.0
  %1951 = vmatpush1.msra.mxu0 0.0
  %1952 = vmatprep.subr.mxu0 0.0
  %1953 = vmatpush1.msra.mxu0 0.0
  %1954 = vmatprep.subr.mxu0 0.0
  %1955 = vmatpush1.msra.mxu0 0.0
  %1956 = vmatprep.subr.mxu0 0.0
  %1957 = vmatpush1.msra.mxu0 0.0
  %1958 = vmatprep.subr.mxu0 0.0
  %1959 = vmatpush1.msra.mxu0 0.0
  %1960 = vmatprep.subr.mxu0 0.0
  %1961 = vmatpush1.msra.mxu0 0.0
  %1962 = vmatprep.subr.mxu0 0.0
  %1963 = vmatpush1.msra.mxu0 0.0
  %1964 = vmatprep.subr.mxu0 0.0
  %1965 = vmatpush1.msra.mxu0 0.0
  %1966 = vmatprep.subr.mxu0 0.0
  %1967 = vmatpush1.msra.mxu0 0.0
  %1968 = vmatprep.subr.mxu0 0.0
  %1969 = vmatpush1.msra.mxu0 0.0
  %1970 = vmatprep.subr.mxu0 0.0
  %1971 = vmatpush1.msra.mxu0 0.0
  %1972 = vmatprep.subr.mxu0 0.0
  %1973 = vmatpush1.msra.mxu0 0.0
  %1974 = vmatprep.subr.mxu0 0.0
  %1975 = vmatpush1.msra.mxu0 0.0
  %1976 = vmatprep.subr.mxu0 0.0
  %1977 = vmatpush1.msra.mxu0 0.0
  %1978 = vmatprep.subr.mxu0 0.0
  %1979 = vmatpush1.msra.mxu0 0.0
  %1980 = vmatprep.subr.mxu0 0.0
  %1981 = vmatpush1.msra.mxu0 0.0
  %1982 = vmatprep.subr.mxu0 0.0
  %1983 = vmatpush1.msra.mxu0 0.0
  %1984 = vmatprep.subr.mxu0 0.0
  %1985 = vmatpush1.msra.mxu0 0.0
  %1986 = vmatprep.subr.mxu0 0.0
  %1987 = vmatpush1.msra.mxu0 0.0
  %1988 = vmatprep.subr.mxu0 0.0
  %1989 = vmatpush1.msra.mxu0 0.0
  %1990 = vmatprep.subr.mxu0 0.0
  %1991 = vmatpush1.msra.mxu0 0.0
  %1992 = vmatprep.subr.mxu0 0.0
  %1993 = vmatpush1.msra.mxu0 0.0
  %1994 = vmatprep.mubr.f32.mxu0 0.0
  %1995 = vmatmul.mubr.f32.gmra.mrb[0].mxu0 %v1909
  %v1996 = vpop.f32.mrb[0].mxu0
  %v1997 = vadd.f32 %v1866, %v1996
  %v1998 = vpop.f32.mrb[0].mxu0
  %1999 = vmatprep.mubr.f32.mxu0 0.0
  %2000 = vmatmul.mubr.f32.gmra.mrb[0].mxu0 %v1911
  %v2001 = vpop.f32.mrb[0].mxu0
  %v2002 = vadd.f32 %v1871, %v2001
  %v2003 = vpop.f32.mrb[0].mxu0
  %2004 = vmatprep.mubr.f32.mxu0 0.0
  %2005 = vmatmul.mubr.f32.gmra.mrb[0].mxu0 %v1913
  %v2006 = vpop.f32.mrb[0].mxu0
  %v2007 = vadd.f32 %v1876, %v2006
  %v2008 = vpop.f32.mrb[0].mxu0
  %2009 = vmatprep.mubr.f32.mxu0 0.0
  %2010 = vmatmul.mubr.f32.gmra.mrb[0].mxu0 %v1915
  %v2011 = vpop.f32.mrb[0].mxu0
  %v2012 = vadd.f32 %v1881, %v2011
  %v2013 = vpop.f32.mrb[0].mxu0
  %2014 = vmatprep.mubr.f32.mxu0 0.0
  %2015 = vmatmul.mubr.f32.gmra.mrb[0].mxu0 %v1917
  %v2016 = vpop.f32.mrb[0].mxu0
  %v2017 = vadd.f32 %v1886, %v2016
  %v2018 = vpop.f32.mrb[0].mxu0
  %2019 = vmatprep.mubr.f32.mxu0 0.0
  %2020 = vmatmul.mubr.f32.gmra.mrb[0].mxu0 %v1919
  %v2021 = vpop.f32.mrb[0].mxu0
  %v2022 = vadd.f32 %v1891, %v2021
  %v2023 = vpop.f32.mrb[0].mxu0
  %2024 = vmatprep.mubr.f32.mxu0 0.0
  %2025 = vmatmul.mubr.f32.gmra.mrb[0].mxu0 %v1921
  %v2026 = vpop.f32.mrb[0].mxu0
  %v2027 = vadd.f32 %v1896, %v2026
  %v2028 = vpop.f32.mrb[0].mxu0
  %2029 = vmatprep.mubr.f32.mxu0 0.0
  %2030 = vmatmul.mubr.f32.gmra.mrb[0].mxu0 %v1923
  %v2031 = vpop.f32.mrb[0].mxu0
  %v2032 = vadd.f32 %v1901, %v2031
  %v2033 = vpop.f32.mrb[0].mxu0
  %2034 = vmatprep.mubr.f32.mxu0 0.0
  %2035 = vmatmul.mubr.f32.gmra.mrb[0].mxu0 %v1925
  %v2036 = vpop.f32.mrb[0].mxu0
  %v2037 = vadd.f32 %v1906, %v2036
  %v2038 = vpop.f32.mrb[0].mxu0
  %2039 = vdwg.mxu0
  %s2040 = scalar_lea.vmem %s3, 96
  %v2041 = vld [vmem:[%s2040] sm:$0xff]
  %v2042 = vld [vmem:[%s2040 + $0x8] sm:$0xff]
  %v2043 = vld [vmem:[%s2040 + $0x10] sm:$0xff]
  %v2044 = vld [vmem:[%s2040 + $0x18] sm:$0xff]
  %v2045 = vld [vmem:[%s2040 + $0x20] sm:$0xff]
  %v2046 = vld [vmem:[%s2040 + $0x28] sm:$0x1f]
  %v2047 = vrot.slane %v1729, 2
  %v2048 = vrot.slane %v1730, 2
  %v2049 = vsel %vm905, %v2047, %v2048
  %v2050 = vrot.slane %v1731, 2
  %v2051 = vsel %vm905, %v2048, %v2050
  %v2052 = vrot.slane %v1732, 2
  %v2053 = vsel %vm905, %v2050, %v2052
  %v2054 = vrot.slane %v1733, 2
  %v2055 = vsel %vm905, %v2052, %v2054
  %v2056 = vrot.slane %v1734, 2
  %v2057 = vsel %vm905, %v2054, %v2056
  %v2058 = vrot.slane %v1735, 2
  %v2059 = vsel %vm905, %v2056, %v2058
  %v2060 = vrot.slane %v1736, 2
  %v2061 = vsel %vm905, %v2058, %v2060
  %v2062 = vrot.slane %v1737, 2
  %v2063 = vsel %vm905, %v2060, %v2062
  %v2064 = vsel %vm1777, %v2049, 0
  %v2066 = vsel %vm1777, %v2051, 0
  %v2068 = vsel %vm1777, %v2053, 0
  %v2070 = vsel %vm1777, %v2055, 0
  %v2072 = vsel %vm1777, %v2057, 0
  %v2074 = vsel %vm1777, %v2059, 0
  %v2076 = vsel %vm1777, %v2061, 0
  %v2078 = vsel %vm1777, %v2063, 0
  %v2080 = vsel %vm1777, %v2062, 0
  %v2083 = vsel %vm656, %v2046, 0
  %2085 = vmatprep.subr.mxu0 0.0
  %2086 = vmatpush1.msra.mxu0 %v2041
  %2087 = vmatprep.subr.mxu0 0.0
  %2088 = vmatpush1.msra.mxu0 %v2042
  %2089 = vmatprep.subr.mxu0 0.0
  %2090 = vmatpush1.msra.mxu0 %v2043
  %2091 = vmatprep.subr.mxu0 0.0
  %2092 = vmatpush1.msra.mxu0 %v2044
  %2093 = vmatprep.subr.mxu0 0.0
  %2094 = vmatpush1.msra.mxu0 %v2045
  %2095 = vmatprep.subr.mxu0 0.0
  %2096 = vmatpush1.msra.mxu0 %v2083
  %2097 = vmatprep.subr.mxu0 0.0
  %2098 = vmatpush1.msra.mxu0 0.0
  %2099 = vmatprep.subr.mxu0 0.0
  %2100 = vmatpush1.msra.mxu0 0.0
  %2101 = vmatprep.subr.mxu0 0.0
  %2102 = vmatpush1.msra.mxu0 0.0
  %2103 = vmatprep.subr.mxu0 0.0
  %2104 = vmatpush1.msra.mxu0 0.0
  %2105 = vmatprep.subr.mxu0 0.0
  %2106 = vmatpush1.msra.mxu0 0.0
  %2107 = vmatprep.subr.mxu0 0.0
  %2108 = vmatpush1.msra.mxu0 0.0
  %2109 = vmatprep.subr.mxu0 0.0
  %2110 = vmatpush1.msra.mxu0 0.0
  %2111 = vmatprep.subr.mxu0 0.0
  %2112 = vmatpush1.msra.mxu0 0.0
  %2113 = vmatprep.subr.mxu0 0.0
  %2114 = vmatpush1.msra.mxu0 0.0
  %2115 = vmatprep.subr.mxu0 0.0
  %2116 = vmatpush1.msra.mxu0 0.0
  %2117 = vmatprep.subr.mxu0 0.0
  %2118 = vmatpush1.msra.mxu0 0.0
  %2119 = vmatprep.subr.mxu0 0.0
  %2120 = vmatpush1.msra.mxu0 0.0
  %2121 = vmatprep.subr.mxu0 0.0
  %2122 = vmatpush1.msra.mxu0 0.0
  %2123 = vmatprep.subr.mxu0 0.0
  %2124 = vmatpush1.msra.mxu0 0.0
  %2125 = vmatprep.subr.mxu0 0.0
  %2126 = vmatpush1.msra.mxu0 0.0
  %2127 = vmatprep.subr.mxu0 0.0
  %2128 = vmatpush1.msra.mxu0 0.0
  %2129 = vmatprep.subr.mxu0 0.0
  %2130 = vmatpush1.msra.mxu0 0.0
  %2131 = vmatprep.subr.mxu0 0.0
  %2132 = vmatpush1.msra.mxu0 0.0
  %2133 = vmatprep.subr.mxu0 0.0
  %2134 = vmatpush1.msra.mxu0 0.0
  %2135 = vmatprep.subr.mxu0 0.0
  %2136 = vmatpush1.msra.mxu0 0.0
  %2137 = vmatprep.subr.mxu0 0.0
  %2138 = vmatpush1.msra.mxu0 0.0
  %2139 = vmatprep.subr.mxu0 0.0
  %2140 = vmatpush1.msra.mxu0 0.0
  %2141 = vmatprep.subr.mxu0 0.0
  %2142 = vmatpush1.msra.mxu0 0.0
  %2143 = vmatprep.subr.mxu0 0.0
  %2144 = vmatpush1.msra.mxu0 0.0
  %2145 = vmatprep.subr.mxu0 0.0
  %2146 = vmatpush1.msra.mxu0 0.0
  %2147 = vmatprep.subr.mxu0 0.0
  %2148 = vmatpush1.msra.mxu0 0.0
  %2149 = vmatprep.mubr.f32.mxu0 0.0
  %2150 = vmatmul.mubr.f32.gmra.mrb[0].mxu0 %v2064
  %v2151 = vpop.f32.mrb[0].mxu0
  %v2152 = vadd.f32 0.0, %v2151
  %v2153 = vpop.f32.mrb[0].mxu0
  %2154 = vmatprep.mubr.f32.mxu0 0.0
  %2155 = vmatmul.mubr.f32.gmra.mrb[0].mxu0 %v2066
  %v2156 = vpop.f32.mrb[0].mxu0
  %v2157 = vadd.f32 0.0, %v2156
  %v2158 = vpop.f32.mrb[0].mxu0
  %2159 = vmatprep.mubr.f32.mxu0 0.0
  %2160 = vmatmul.mubr.f32.gmra.mrb[0].mxu0 %v2068
  %v2161 = vpop.f32.mrb[0].mxu0
  %v2162 = vadd.f32 0.0, %v2161
  %v2163 = vpop.f32.mrb[0].mxu0
  %2164 = vmatprep.mubr.f32.mxu0 0.0
  %2165 = vmatmul.mubr.f32.gmra.mrb[0].mxu0 %v2070
  %v2166 = vpop.f32.mrb[0].mxu0
  %v2167 = vadd.f32 0.0, %v2166
  %v2168 = vpop.f32.mrb[0].mxu0
  %2169 = vmatprep.mubr.f32.mxu0 0.0
  %2170 = vmatmul.mubr.f32.gmra.mrb[0].mxu0 %v2072
  %v2171 = vpop.f32.mrb[0].mxu0
  %v2172 = vadd.f32 0.0, %v2171
  %v2173 = vpop.f32.mrb[0].mxu0
  %2174 = vmatprep.mubr.f32.mxu0 0.0
  %2175 = vmatmul.mubr.f32.gmra.mrb[0].mxu0 %v2074
  %v2176 = vpop.f32.mrb[0].mxu0
  %v2177 = vadd.f32 0.0, %v2176
  %v2178 = vpop.f32.mrb[0].mxu0
  %2179 = vmatprep.mubr.f32.mxu0 0.0
  %2180 = vmatmul.mubr.f32.gmra.mrb[0].mxu0 %v2076
  %v2181 = vpop.f32.mrb[0].mxu0
  %v2182 = vadd.f32 0.0, %v2181
  %v2183 = vpop.f32.mrb[0].mxu0
  %2184 = vmatprep.mubr.f32.mxu0 0.0
  %2185 = vmatmul.mubr.f32.gmra.mrb[0].mxu0 %v2078
  %v2186 = vpop.f32.mrb[0].mxu0
  %v2187 = vadd.f32 0.0, %v2186
  %v2188 = vpop.f32.mrb[0].mxu0
  %2189 = vmatprep.mubr.f32.mxu0 0.0
  %2190 = vmatmul.mubr.f32.gmra.mrb[0].mxu0 %v2080
  %v2191 = vpop.f32.mrb[0].mxu0
  %v2192 = vadd.f32 0.0, %v2191
  %v2193 = vpop.f32.mrb[0].mxu0
  %2194 = vdwg.mxu0
  %v2195 = vadd.f32 %v1997, %v2152
  %v2196 = vadd.f32 %v2002, %v2157
  %v2197 = vadd.f32 %v2007, %v2162
  %v2198 = vadd.f32 %v2012, %v2167
  %v2199 = vadd.f32 %v2017, %v2172
  %v2200 = vadd.f32 %v2022, %v2177
  %v2201 = vadd.f32 %v2027, %v2182
  %v2202 = vadd.f32 %v2032, %v2187
  %v2203 = vadd.f32 %v2037, %v2192
  %v2204 = vld [vmem:[%s4] sm:$0x1]
  %v2206 = vlaneseq
  %v2207 = vshrl.u32 %v2206, 7
  %v2208 = vsub.s32 0, %v2207
  %v2209 = vrot.slane %v2204, %v2208
  %v2211 = vadd.f32 %v2195, %v2209
  %v2212 = vadd.f32 %v2196, %v2209
  %v2213 = vadd.f32 %v2197, %v2209
  %v2214 = vadd.f32 %v2198, %v2209
  %v2215 = vadd.f32 %v2199, %v2209
  %v2216 = vadd.f32 %v2200, %v2209
  %v2217 = vadd.f32 %v2201, %v2209
  %v2218 = vadd.f32 %v2202, %v2209
  %v2219 = vadd.f32 %v2203, %v2209
  %v2220 = vtanh.pop %v2211
  %v2221 = vtanh.pop %v2212
  %v2222 = vtanh.pop %v2213
  %v2223 = vtanh.pop %v2214
  %v2224 = vtanh.pop %v2215
  %v2225 = vtanh.pop %v2216
  %v2226 = vtanh.pop %v2217
  %v2227 = vtanh.pop %v2218
  %v2228 = vtanh.pop %v2219
  %v2229 = vld [vmem:[%s5] sm:$0xff]
  %v2230 = vld [vmem:[%s5 + $0x8] sm:$0xff]
  %v2231 = vld [vmem:[%s5 + $0x10] sm:$0xff]
  %v2232 = vld [vmem:[%s5 + $0x18] sm:$0xff]
  %v2233 = vld [vmem:[%s5 + $0x20] sm:$0xff]
  %v2234 = vld [vmem:[%s5 + $0x28] sm:$0xff]
  %v2235 = vld [vmem:[%s5 + $0x30] sm:$0xff]
  %v2236 = vld [vmem:[%s5 + $0x38] sm:$0xff]
  %v2237 = vld [vmem:[%s5 + $0x40] sm:$0x1]
  %s2238 = scalar_lea.vmem %s5, 72
  %v2239 = vld [vmem:[%s2238] sm:$0xff]
  %v2240 = vld [vmem:[%s2238 + $0x8] sm:$0xff]
  %v2241 = vld [vmem:[%s2238 + $0x10] sm:$0xff]
  %v2242 = vld [vmem:[%s2238 + $0x18] sm:$0xff]
  %v2243 = vld [vmem:[%s2238 + $0x20] sm:$0xff]
  %v2244 = vld [vmem:[%s2238 + $0x28] sm:$0xff]
  %v2245 = vld [vmem:[%s2238 + $0x30] sm:$0xff]
  %v2246 = vld [vmem:[%s2238 + $0x38] sm:$0xff]
  %v2247 = vld [vmem:[%s2238 + $0x40] sm:$0x1]
  %v2257 = vrot.slane %v2220, 1
  %v2258 = vrot.slane %v2221, 1
  %v2259 = vsel %vm619, %v2257, %v2258
  %v2260 = vrot.slane %v2222, 1
  %v2261 = vsel %vm619, %v2258, %v2260
  %v2262 = vrot.slane %v2223, 1
  %v2263 = vsel %vm619, %v2260, %v2262
  %v2264 = vrot.slane %v2224, 1
  %v2265 = vsel %vm619, %v2262, %v2264
  %v2266 = vrot.slane %v2225, 1
  %v2267 = vsel %vm619, %v2264, %v2266
  %v2268 = vrot.slane %v2226, 1
  %v2269 = vsel %vm619, %v2266, %v2268
  %v2270 = vrot.slane %v2227, 1
  %v2271 = vsel %vm619, %v2268, %v2270
  %v2272 = vrot.slane %v2228, 1
  %v2273 = vsel %vm619, %v2270, %v2272
  %vm2274 = vcmask 531456
  %v2275 = vsel %vm2274, %v2259, 0
  %v2277 = vsel %vm2274, %v2261, 0
  %v2279 = vsel %vm2274, %v2263, 0
  %v2281 = vsel %vm2274, %v2265, 0
  %v2283 = vsel %vm2274, %v2267, 0
  %v2285 = vsel %vm2274, %v2269, 0
  %v2287 = vsel %vm2274, %v2271, 0
  %v2289 = vsel %vm2274, %v2273, 0
  %vm2291 = vcmask 1040384
  %v2293 = vsel %vm2291, %v2247, 0
  %2295 = vmatprep.subr.mxu0 0.0
  %2296 = vmatpush1.msra.mxu0 %v2239
  %2297 = vmatprep.subr.mxu0 0.0
  %2298 = vmatpush1.msra.mxu0 %v2240
  %2299 = vmatprep.subr.mxu0 0.0
  %2300 = vmatpush1.msra.mxu0 %v2241
  %2301 = vmatprep.subr.mxu0 0.0
  %2302 = vmatpush1.msra.mxu0 %v2242
  %2303 = vmatprep.subr.mxu0 0.0
  %2304 = vmatpush1.msra.mxu0 %v2243
  %2305 = vmatprep.subr.mxu0 0.0
  %2306 = vmatpush1.msra.mxu0 %v2244
  %2307 = vmatprep.subr.mxu0 0.0
  %2308 = vmatpush1.msra.mxu0 %v2245
  %2309 = vmatprep.subr.mxu0 0.0
  %2310 = vmatpush1.msra.mxu0 %v2246
  %2311 = vmatprep.subr.mxu0 0.0
  %2312 = vmatpush1.msra.mxu0 %v2293
  %2313 = vmatprep.subr.mxu0 0.0
  %2314 = vmatpush1.msra.mxu0 0.0
  %2315 = vmatprep.subr.mxu0 0.0
  %2316 = vmatpush1.msra.mxu0 0.0
  %2317 = vmatprep.subr.mxu0 0.0
  %2318 = vmatpush1.msra.mxu0 0.0
  %2319 = vmatprep.subr.mxu0 0.0
  %2320 = vmatpush1.msra.mxu0 0.0
  %2321 = vmatprep.subr.mxu0 0.0
  %2322 = vmatpush1.msra.mxu0 0.0
  %2323 = vmatprep.subr.mxu0 0.0
  %2324 = vmatpush1.msra.mxu0 0.0
  %2325 = vmatprep.subr.mxu0 0.0
  %2326 = vmatpush1.msra.mxu0 0.0
  %2327 = vmatprep.subr.mxu0 0.0
  %2328 = vmatpush1.msra.mxu0 0.0
  %2329 = vmatprep.subr.mxu0 0.0
  %2330 = vmatpush1.msra.mxu0 0.0
  %2331 = vmatprep.subr.mxu0 0.0
  %2332 = vmatpush1.msra.mxu0 0.0
  %2333 = vmatprep.subr.mxu0 0.0
  %2334 = vmatpush1.msra.mxu0 0.0
  %2335 = vmatprep.subr.mxu0 0.0
  %2336 = vmatpush1.msra.mxu0 0.0
  %2337 = vmatprep.subr.mxu0 0.0
  %2338 = vmatpush1.msra.mxu0 0.0
  %2339 = vmatprep.subr.mxu0 0.0
  %2340 = vmatpush1.msra.mxu0 0.0
  %2341 = vmatprep.subr.mxu0 0.0
  %2342 = vmatpush1.msra.mxu0 0.0
  %2343 = vmatprep.subr.mxu0 0.0
  %2344 = vmatpush1.msra.mxu0 0.0
  %2345 = vmatprep.subr.mxu0 0.0
  %2346 = vmatpush1.msra.mxu0 0.0
  %2347 = vmatprep.subr.mxu0 0.0
  %2348 = vmatpush1.msra.mxu0 0.0
  %2349 = vmatprep.subr.mxu0 0.0
  %2350 = vmatpush1.msra.mxu0 0.0
  %2351 = vmatprep.subr.mxu0 0.0
  %2352 = vmatpush1.msra.mxu0 0.0
  %2353 = vmatprep.subr.mxu0 0.0
  %2354 = vmatpush1.msra.mxu0 0.0
  %2355 = vmatprep.subr.mxu0 0.0
  %2356 = vmatpush1.msra.mxu0 0.0
  %2357 = vmatprep.subr.mxu0 0.0
  %2358 = vmatpush1.msra.mxu0 0.0
  %2359 = vmatprep.mubr.f32.mxu0 0.0
  %2360 = vmatmul.mubr.f32.gmra.mrb[0].mxu0 %v2275
  %v2361 = vpop.f32.mrb[0].mxu0
  %v2362 = vadd.f32 0.0, %v2361
  %v2363 = vpop.f32.mrb[0].mxu0
  %2364 = vmatprep.mubr.f32.mxu0 0.0
  %2365 = vmatmul.mubr.f32.gmra.mrb[0].mxu0 %v2277
  %v2366 = vpop.f32.mrb[0].mxu0
  %v2367 = vadd.f32 0.0, %v2366
  %v2368 = vpop.f32.mrb[0].mxu0
  %2369 = vmatprep.mubr.f32.mxu0 0.0
  %2370 = vmatmul.mubr.f32.gmra.mrb[0].mxu0 %v2279
  %v2371 = vpop.f32.mrb[0].mxu0
  %v2372 = vadd.f32 0.0, %v2371
  %v2373 = vpop.f32.mrb[0].mxu0
  %2374 = vmatprep.mubr.f32.mxu0 0.0
  %2375 = vmatmul.mubr.f32.gmra.mrb[0].mxu0 %v2281
  %v2376 = vpop.f32.mrb[0].mxu0
  %v2377 = vadd.f32 0.0, %v2376
  %v2378 = vpop.f32.mrb[0].mxu0
  %2379 = vmatprep.mubr.f32.mxu0 0.0
  %2380 = vmatmul.mubr.f32.gmra.mrb[0].mxu0 %v2283
  %v2381 = vpop.f32.mrb[0].mxu0
  %v2382 = vadd.f32 0.0, %v2381
  %v2383 = vpop.f32.mrb[0].mxu0
  %2384 = vmatprep.mubr.f32.mxu0 0.0
  %2385 = vmatmul.mubr.f32.gmra.mrb[0].mxu0 %v2285
  %v2386 = vpop.f32.mrb[0].mxu0
  %v2387 = vadd.f32 0.0, %v2386
  %v2388 = vpop.f32.mrb[0].mxu0
  %2389 = vmatprep.mubr.f32.mxu0 0.0
  %2390 = vmatmul.mubr.f32.gmra.mrb[0].mxu0 %v2287
  %v2391 = vpop.f32.mrb[0].mxu0
  %v2392 = vadd.f32 0.0, %v2391
  %v2393 = vpop.f32.mrb[0].mxu0
  %2394 = vmatprep.mubr.f32.mxu0 0.0
  %2395 = vmatmul.mubr.f32.gmra.mrb[0].mxu0 %v2289
  %v2396 = vpop.f32.mrb[0].mxu0
  %v2397 = vadd.f32 0.0, %v2396
  %v2398 = vpop.f32.mrb[0].mxu0
  %2399 = vdwg.mxu0
  %v2400 = vsel %vm2274, %v2220, 0
  %v2402 = vsel %vm2274, %v2221, 0
  %v2404 = vsel %vm2274, %v2222, 0
  %v2406 = vsel %vm2274, %v2223, 0
  %v2408 = vsel %vm2274, %v2224, 0
  %v2410 = vsel %vm2274, %v2225, 0
  %v2412 = vsel %vm2274, %v2226, 0
  %v2414 = vsel %vm2274, %v2227, 0
  %v2417 = vsel %vm2291, %v2237, 0
  %2419 = vmatprep.subr.mxu0 0.0
  %2420 = vmatpush1.msra.mxu0 %v2229
  %2421 = vmatprep.subr.mxu0 0.0
  %2422 = vmatpush1.msra.mxu0 %v2230
  %2423 = vmatprep.subr.mxu0 0.0
  %2424 = vmatpush1.msra.mxu0 %v2231
  %2425 = vmatprep.subr.mxu0 0.0
  %2426 = vmatpush1.msra.mxu0 %v2232
  %2427 = vmatprep.subr.mxu0 0.0
  %2428 = vmatpush1.msra.mxu0 %v2233
  %2429 = vmatprep.subr.mxu0 0.0
  %2430 = vmatpush1.msra.mxu0 %v2234
  %2431 = vmatprep.subr.mxu0 0.0
  %2432 = vmatpush1.msra.mxu0 %v2235
  %2433 = vmatprep.subr.mxu0 0.0
  %2434 = vmatpush1.msra.mxu0 %v2236
  %2435 = vmatprep.subr.mxu0 0.0
  %2436 = vmatpush1.msra.mxu0 %v2417
  %2437 = vmatprep.subr.mxu0 0.0
  %2438 = vmatpush1.msra.mxu0 0.0
  %2439 = vmatprep.subr.mxu0 0.0
  %2440 = vmatpush1.msra.mxu0 0.0
  %2441 = vmatprep.subr.mxu0 0.0
  %2442 = vmatpush1.msra.mxu0 0.0
  %2443 = vmatprep.subr.mxu0 0.0
  %2444 = vmatpush1.msra.mxu0 0.0
  %2445 = vmatprep.subr.mxu0 0.0
  %2446 = vmatpush1.msra.mxu0 0.0
  %2447 = vmatprep.subr.mxu0 0.0
  %2448 = vmatpush1.msra.mxu0 0.0
  %2449 = vmatprep.subr.mxu0 0.0
  %2450 = vmatpush1.msra.mxu0 0.0
  %2451 = vmatprep.subr.mxu0 0.0
  %2452 = vmatpush1.msra.mxu0 0.0
  %2453 = vmatprep.subr.mxu0 0.0
  %2454 = vmatpush1.msra.mxu0 0.0
  %2455 = vmatprep.subr.mxu0 0.0
  %2456 = vmatpush1.msra.mxu0 0.0
  %2457 = vmatprep.subr.mxu0 0.0
  %2458 = vmatpush1.msra.mxu0 0.0
  %2459 = vmatprep.subr.mxu0 0.0
  %2460 = vmatpush1.msra.mxu0 0.0
  %2461 = vmatprep.subr.mxu0 0.0
  %2462 = vmatpush1.msra.mxu0 0.0
  %2463 = vmatprep.subr.mxu0 0.0
  %2464 = vmatpush1.msra.mxu0 0.0
  %2465 = vmatprep.subr.mxu0 0.0
  %2466 = vmatpush1.msra.mxu0 0.0
  %2467 = vmatprep.subr.mxu0 0.0
  %2468 = vmatpush1.msra.mxu0 0.0
  %2469 = vmatprep.subr.mxu0 0.0
  %2470 = vmatpush1.msra.mxu0 0.0
  %2471 = vmatprep.subr.mxu0 0.0
  %2472 = vmatpush1.msra.mxu0 0.0
  %2473 = vmatprep.subr.mxu0 0.0
  %2474 = vmatpush1.msra.mxu0 0.0
  %2475 = vmatprep.subr.mxu0 0.0
  %2476 = vmatpush1.msra.mxu0 0.0
  %2477 = vmatprep.subr.mxu0 0.0
  %2478 = vmatpush1.msra.mxu0 0.0
  %2479 = vmatprep.subr.mxu0 0.0
  %2480 = vmatpush1.msra.mxu0 0.0
  %2481 = vmatprep.subr.mxu0 0.0
  %2482 = vmatpush1.msra.mxu0 0.0
  %2483 = vmatprep.mubr.f32.mxu0 0.0
  %2484 = vmatmul.mubr.f32.gmra.mrb[0].mxu0 %v2400
  %v2485 = vpop.f32.mrb[0].mxu0
  %v2486 = vadd.f32 %v2362, %v2485
  %v2487 = vpop.f32.mrb[0].mxu0
  %2488 = vmatprep.mubr.f32.mxu0 0.0
  %2489 = vmatmul.mubr.f32.gmra.mrb[0].mxu0 %v2402
  %v2490 = vpop.f32.mrb[0].mxu0
  %v2491 = vadd.f32 %v2367, %v2490
  %v2492 = vpop.f32.mrb[0].mxu0
  %2493 = vmatprep.mubr.f32.mxu0 0.0
  %2494 = vmatmul.mubr.f32.gmra.mrb[0].mxu0 %v2404
  %v2495 = vpop.f32.mrb[0].mxu0
  %v2496 = vadd.f32 %v2372, %v2495
  %v2497 = vpop.f32.mrb[0].mxu0
  %2498 = vmatprep.mubr.f32.mxu0 0.0
  %2499 = vmatmul.mubr.f32.gmra.mrb[0].mxu0 %v2406
  %v2500 = vpop.f32.mrb[0].mxu0
  %v2501 = vadd.f32 %v2377, %v2500
  %v2502 = vpop.f32.mrb[0].mxu0
  %2503 = vmatprep.mubr.f32.mxu0 0.0
  %2504 = vmatmul.mubr.f32.gmra.mrb[0].mxu0 %v2408
  %v2505 = vpop.f32.mrb[0].mxu0
  %v2506 = vadd.f32 %v2382, %v2505
  %v2507 = vpop.f32.mrb[0].mxu0
  %2508 = vmatprep.mubr.f32.mxu0 0.0
  %2509 = vmatmul.mubr.f32.gmra.mrb[0].mxu0 %v2410
  %v2510 = vpop.f32.mrb[0].mxu0
  %v2511 = vadd.f32 %v2387, %v2510
  %v2512 = vpop.f32.mrb[0].mxu0
  %2513 = vmatprep.mubr.f32.mxu0 0.0
  %2514 = vmatmul.mubr.f32.gmra.mrb[0].mxu0 %v2412
  %v2515 = vpop.f32.mrb[0].mxu0
  %v2516 = vadd.f32 %v2392, %v2515
  %v2517 = vpop.f32.mrb[0].mxu0
  %2518 = vmatprep.mubr.f32.mxu0 0.0
  %2519 = vmatmul.mubr.f32.gmra.mrb[0].mxu0 %v2414
  %v2520 = vpop.f32.mrb[0].mxu0
  %v2521 = vadd.f32 %v2397, %v2520
  %v2522 = vpop.f32.mrb[0].mxu0
  %2523 = vdwg.mxu0
  %v2524 = vld [vmem:[%s6] sm:$0x1]
  %v2526 = vlaneseq
  %v2527 = vshrl.u32 %v2526, 7
  %v2528 = vsub.s32 0, %v2527
  %v2529 = vrot.slane %v2524, %v2528
  %v2531 = vadd.f32 %v2486, %v2529
  %v2532 = vadd.f32 %v2491, %v2529
  %v2533 = vadd.f32 %v2496, %v2529
  %v2534 = vadd.f32 %v2501, %v2529
  %v2535 = vadd.f32 %v2506, %v2529
  %v2536 = vadd.f32 %v2511, %v2529
  %v2537 = vadd.f32 %v2516, %v2529
  %v2538 = vadd.f32 %v2521, %v2529
  %v2539 = vtanh.pop %v2531
  %v2540 = vtanh.pop %v2532
  %v2541 = vtanh.pop %v2533
  %v2542 = vtanh.pop %v2534
  %v2543 = vtanh.pop %v2535
  %v2544 = vtanh.pop %v2536
  %v2545 = vtanh.pop %v2537
  %v2546 = vtanh.pop %v2538
  %v2547 = vld [vmem:[%s9] sm:$0xff]
  %v2548 = vld [vmem:[%s9 + $0x8] sm:$0xff]
  %v2549 = vld [vmem:[%s9 + $0x10] sm:$0xff]
  %v2550 = vld [vmem:[%s9 + $0x18] sm:$0xff]
  %v2551 = vld [vmem:[%s9 + $0x20] sm:$0xff]
  %v2552 = vld [vmem:[%s9 + $0x28] sm:$0xff]
  %v2553 = vld [vmem:[%s9 + $0x30] sm:$0xff]
  %v2554 = vld [vmem:[%s9 + $0x38] sm:$0xff]
  %2556 = vset.pattern.permute.xlu0 0
  %2557 = vperm.xlu0 %2556, %v2547
  %v2558 = vpop.permute.xlu0 %2557
  %2561 = vset.pattern.permute.xlu0 0
  %2562 = vperm.xlu0 %2561, %v2548
  %v2563 = vpop.permute.xlu0 %2562
  %2566 = vset.pattern.permute.xlu0 0
  %2567 = vperm.xlu0 %2566, %v2549
  %v2568 = vpop.permute.xlu0 %2567
  %2571 = vset.pattern.permute.xlu0 0
  %2572 = vperm.xlu0 %2571, %v2550
  %v2573 = vpop.permute.xlu0 %2572
  %2576 = vset.pattern.permute.xlu0 0
  %2577 = vperm.xlu0 %2576, %v2551
  %v2578 = vpop.permute.xlu0 %2577
  %2581 = vset.pattern.permute.xlu0 0
  %2582 = vperm.xlu0 %2581, %v2552
  %v2583 = vpop.permute.xlu0 %2582
  %2586 = vset.pattern.permute.xlu0 0
  %2587 = vperm.xlu0 %2586, %v2553
  %v2588 = vpop.permute.xlu0 %2587
  %2591 = vset.pattern.permute.xlu0 0
  %2592 = vperm.xlu0 %2591, %v2554
  %v2593 = vpop.permute.xlu0 %2592
  %v2595 = vmul.f32 %v2539, %v2558
  %v2596 = vmul.f32 %v2540, %v2563
  %v2597 = vmul.f32 %v2541, %v2568
  %v2598 = vmul.f32 %v2542, %v2573
  %v2599 = vmul.f32 %v2543, %v2578
  %v2600 = vmul.f32 %v2544, %v2583
  %v2601 = vmul.f32 %v2545, %v2588
  %v2602 = vmul.f32 %v2546, %v2593
  %s2603 = smul.u32 3, 84
  %s2604 = smul.u32 %s2603, 1
  %s2605 = sshll.u32 %s2604, 4
  %2606 = dma.done [#allocation4], %s2605
  %v2607 = vld [vmem:[#allocation2] sm:$0xff]
  %v2608 = vld [vmem:[#allocation2 + $0x8] sm:$0xff]
  %v2609 = vld [vmem:[#allocation2 + $0x10] sm:$0xff]
  %v2610 = vld [vmem:[#allocation2 + $0x18] sm:$0xff]
  %v2611 = vld [vmem:[#allocation2 + $0x20] sm:$0xff]
  %v2612 = vld [vmem:[#allocation2 + $0x28] sm:$0xff]
  %v2613 = vld [vmem:[#allocation2 + $0x30] sm:$0xff]
  %v2614 = vld [vmem:[#allocation2 + $0x38] sm:$0xff]
  %v2615 = vld [vmem:[#allocation2 + $0x40] sm:$0xff]
  %v2616 = vld [vmem:[#allocation2 + $0x48] sm:$0xff]
  %v2617 = vld [vmem:[#allocation2 + $0x50] sm:$0xf]
  %s2618 = scalar_lea.vmem [#allocation2], 88
  %v2619 = vld [vmem:[%s2618] sm:$0xff]
  %v2620 = vld [vmem:[%s2618 + $0x8] sm:$0xff]
  %v2621 = vld [vmem:[%s2618 + $0x10] sm:$0xff]
  %v2622 = vld [vmem:[%s2618 + $0x18] sm:$0xff]
  %v2623 = vld [vmem:[%s2618 + $0x20] sm:$0xff]
  %v2624 = vld [vmem:[%s2618 + $0x28] sm:$0xff]
  %v2625 = vld [vmem:[%s2618 + $0x30] sm:$0xff]
  %v2626 = vld [vmem:[%s2618 + $0x38] sm:$0xff]
  %v2627 = vld [vmem:[%s2618 + $0x40] sm:$0xff]
  %v2628 = vld [vmem:[%s2618 + $0x48] sm:$0xff]
  %v2629 = vld [vmem:[%s2618 + $0x50] sm:$0xf]
  %v2638 = vrot.slane %v2595, 1
  %v2639 = vrot.slane %v2596, 1
  %v2640 = vsel %vm619, %v2638, %v2639
  %v2641 = vrot.slane %v2597, 1
  %v2642 = vsel %vm619, %v2639, %v2641
  %v2643 = vrot.slane %v2598, 1
  %v2644 = vsel %vm619, %v2641, %v2643
  %v2645 = vrot.slane %v2599, 1
  %v2646 = vsel %vm619, %v2643, %v2645
  %v2647 = vrot.slane %v2600, 1
  %v2648 = vsel %vm619, %v2645, %v2647
  %v2649 = vrot.slane %v2601, 1
  %v2650 = vsel %vm619, %v2647, %v2649
  %v2651 = vrot.slane %v2602, 1
  %v2652 = vsel %vm619, %v2649, %v2651
  %vm2653 = vcmask 687104
  %v2654 = vsel %vm2653, %v2640, 0
  %v2656 = vsel %vm2653, %v2642, 0
  %v2658 = vsel %vm2653, %v2644, 0
  %v2660 = vsel %vm2653, %v2646, 0
  %v2662 = vsel %vm2653, %v2648, 0
  %v2664 = vsel %vm2653, %v2650, 0
  %v2666 = vsel %vm2653, %v2652, 0
  %v2668 = vsel %vm2653, %v2651, 0
  %v2671 = vsel %vm1228, %v2629, 0
  %2673 = vmatprep.subr.mxu0 0.0
  %2674 = vmatpush1.msra.mxu0 %v2619
  %2675 = vmatprep.subr.mxu0 0.0
  %2676 = vmatpush1.msra.mxu0 %v2620
  %2677 = vmatprep.subr.mxu0 0.0
  %2678 = vmatpush1.msra.mxu0 %v2621
  %2679 = vmatprep.subr.mxu0 0.0
  %2680 = vmatpush1.msra.mxu0 %v2622
  %2681 = vmatprep.subr.mxu0 0.0
  %2682 = vmatpush1.msra.mxu0 %v2623
  %2683 = vmatprep.subr.mxu0 0.0
  %2684 = vmatpush1.msra.mxu0 %v2624
  %2685 = vmatprep.subr.mxu0 0.0
  %2686 = vmatpush1.msra.mxu0 %v2625
  %2687 = vmatprep.subr.mxu0 0.0
  %2688 = vmatpush1.msra.mxu0 %v2626
  %2689 = vmatprep.subr.mxu0 0.0
  %2690 = vmatpush1.msra.mxu0 %v2627
  %2691 = vmatprep.subr.mxu0 0.0
  %2692 = vmatpush1.msra.mxu0 %v2628
  %2693 = vmatprep.subr.mxu0 0.0
  %2694 = vmatpush1.msra.mxu0 %v2671
  %2695 = vmatprep.subr.mxu0 0.0
  %2696 = vmatpush1.msra.mxu0 0.0
  %2697 = vmatprep.subr.mxu0 0.0
  %2698 = vmatpush1.msra.mxu0 0.0
  %2699 = vmatprep.subr.mxu0 0.0
  %2700 = vmatpush1.msra.mxu0 0.0
  %2701 = vmatprep.subr.mxu0 0.0
  %2702 = vmatpush1.msra.mxu0 0.0
  %2703 = vmatprep.subr.mxu0 0.0
  %2704 = vmatpush1.msra.mxu0 0.0
  %2705 = vmatprep.subr.mxu0 0.0
  %2706 = vmatpush1.msra.mxu0 0.0
  %2707 = vmatprep.subr.mxu0 0.0
  %2708 = vmatpush1.msra.mxu0 0.0
  %2709 = vmatprep.subr.mxu0 0.0
  %2710 = vmatpush1.msra.mxu0 0.0
  %2711 = vmatprep.subr.mxu0 0.0
  %2712 = vmatpush1.msra.mxu0 0.0
  %2713 = vmatprep.subr.mxu0 0.0
  %2714 = vmatpush1.msra.mxu0 0.0
  %2715 = vmatprep.subr.mxu0 0.0
  %2716 = vmatpush1.msra.mxu0 0.0
  %2717 = vmatprep.subr.mxu0 0.0
  %2718 = vmatpush1.msra.mxu0 0.0
  %2719 = vmatprep.subr.mxu0 0.0
  %2720 = vmatpush1.msra.mxu0 0.0
  %2721 = vmatprep.subr.mxu0 0.0
  %2722 = vmatpush1.msra.mxu0 0.0
  %2723 = vmatprep.subr.mxu0 0.0
  %2724 = vmatpush1.msra.mxu0 0.0
  %2725 = vmatprep.subr.mxu0 0.0
  %2726 = vmatpush1.msra.mxu0 0.0
  %2727 = vmatprep.subr.mxu0 0.0
  %2728 = vmatpush1.msra.mxu0 0.0
  %2729 = vmatprep.subr.mxu0 0.0
  %2730 = vmatpush1.msra.mxu0 0.0
  %2731 = vmatprep.subr.mxu0 0.0
  %2732 = vmatpush1.msra.mxu0 0.0
  %2733 = vmatprep.subr.mxu0 0.0
  %2734 = vmatpush1.msra.mxu0 0.0
  %2735 = vmatprep.subr.mxu0 0.0
  %2736 = vmatpush1.msra.mxu0 0.0
  %2737 = vmatprep.mubr.f32.mxu0 0.0
  %2738 = vmatmul.mubr.f32.gmra.mrb[0].mxu0 %v2654
  %v2739 = vpop.f32.mrb[0].mxu0
  %v2740 = vadd.f32 0.0, %v2739
  %v2741 = vpop.f32.mrb[0].mxu0
  %2742 = vmatprep.mubr.f32.mxu0 0.0
  %2743 = vmatmul.mubr.f32.gmra.mrb[0].mxu0 %v2656
  %v2744 = vpop.f32.mrb[0].mxu0
  %v2745 = vadd.f32 0.0, %v2744
  %v2746 = vpop.f32.mrb[0].mxu0
  %2747 = vmatprep.mubr.f32.mxu0 0.0
  %2748 = vmatmul.mubr.f32.gmra.mrb[0].mxu0 %v2658
  %v2749 = vpop.f32.mrb[0].mxu0
  %v2750 = vadd.f32 0.0, %v2749
  %v2751 = vpop.f32.mrb[0].mxu0
  %2752 = vmatprep.mubr.f32.mxu0 0.0
  %2753 = vmatmul.mubr.f32.gmra.mrb[0].mxu0 %v2660
  %v2754 = vpop.f32.mrb[0].mxu0
  %v2755 = vadd.f32 0.0, %v2754
  %v2756 = vpop.f32.mrb[0].mxu0
  %2757 = vmatprep.mubr.f32.mxu0 0.0
  %2758 = vmatmul.mubr.f32.gmra.mrb[0].mxu0 %v2662
  %v2759 = vpop.f32.mrb[0].mxu0
  %v2760 = vadd.f32 0.0, %v2759
  %v2761 = vpop.f32.mrb[0].mxu0
  %2762 = vmatprep.mubr.f32.mxu0 0.0
  %2763 = vmatmul.mubr.f32.gmra.mrb[0].mxu0 %v2664
  %v2764 = vpop.f32.mrb[0].mxu0
  %v2765 = vadd.f32 0.0, %v2764
  %v2766 = vpop.f32.mrb[0].mxu0
  %2767 = vmatprep.mubr.f32.mxu0 0.0
  %2768 = vmatmul.mubr.f32.gmra.mrb[0].mxu0 %v2666
  %v2769 = vpop.f32.mrb[0].mxu0
  %v2770 = vadd.f32 0.0, %v2769
  %v2771 = vpop.f32.mrb[0].mxu0
  %2772 = vmatprep.mubr.f32.mxu0 0.0
  %2773 = vmatmul.mubr.f32.gmra.mrb[0].mxu0 %v2668
  %v2774 = vpop.f32.mrb[0].mxu0
  %v2775 = vadd.f32 0.0, %v2774
  %v2776 = vpop.f32.mrb[0].mxu0
  %2777 = vdwg.mxu0
  %v2778 = vsel %vm2653, %v2595, 0
  %v2780 = vsel %vm2653, %v2596, 0
  %v2782 = vsel %vm2653, %v2597, 0
  %v2784 = vsel %vm2653, %v2598, 0
  %v2786 = vsel %vm2653, %v2599, 0
  %v2788 = vsel %vm2653, %v2600, 0
  %v2790 = vsel %vm2653, %v2601, 0
  %v2792 = vsel %vm2653, %v2602, 0
  %v2795 = vsel %vm1228, %v2617, 0
  %2797 = vmatprep.subr.mxu0 0.0
  %2798 = vmatpush1.msra.mxu0 %v2607
  %2799 = vmatprep.subr.mxu0 0.0
  %2800 = vmatpush1.msra.mxu0 %v2608
  %2801 = vmatprep.subr.mxu0 0.0
  %2802 = vmatpush1.msra.mxu0 %v2609
  %2803 = vmatprep.subr.mxu0 0.0
  %2804 = vmatpush1.msra.mxu0 %v2610
  %2805 = vmatprep.subr.mxu0 0.0
  %2806 = vmatpush1.msra.mxu0 %v2611
  %2807 = vmatprep.subr.mxu0 0.0
  %2808 = vmatpush1.msra.mxu0 %v2612
  %2809 = vmatprep.subr.mxu0 0.0
  %2810 = vmatpush1.msra.mxu0 %v2613
  %2811 = vmatprep.subr.mxu0 0.0
  %2812 = vmatpush1.msra.mxu0 %v2614
  %2813 = vmatprep.subr.mxu0 0.0
  %2814 = vmatpush1.msra.mxu0 %v2615
  %2815 = vmatprep.subr.mxu0 0.0
  %2816 = vmatpush1.msra.mxu0 %v2616
  %2817 = vmatprep.subr.mxu0 0.0
  %2818 = vmatpush1.msra.mxu0 %v2795
  %2819 = vmatprep.subr.mxu0 0.0
  %2820 = vmatpush1.msra.mxu0 0.0
  %2821 = vmatprep.subr.mxu0 0.0
  %2822 = vmatpush1.msra.mxu0 0.0
  %2823 = vmatprep.subr.mxu0 0.0
  %2824 = vmatpush1.msra.mxu0 0.0
  %2825 = vmatprep.subr.mxu0 0.0
  %2826 = vmatpush1.msra.mxu0 0.0
  %2827 = vmatprep.subr.mxu0 0.0
  %2828 = vmatpush1.msra.mxu0 0.0
  %2829 = vmatprep.subr.mxu0 0.0
  %2830 = vmatpush1.msra.mxu0 0.0
  %2831 = vmatprep.subr.mxu0 0.0
  %2832 = vmatpush1.msra.mxu0 0.0
  %2833 = vmatprep.subr.mxu0 0.0
  %2834 = vmatpush1.msra.mxu0 0.0
  %2835 = vmatprep.subr.mxu0 0.0
  %2836 = vmatpush1.msra.mxu0 0.0
  %2837 = vmatprep.subr.mxu0 0.0
  %2838 = vmatpush1.msra.mxu0 0.0
  %2839 = vmatprep.subr.mxu0 0.0
  %2840 = vmatpush1.msra.mxu0 0.0
  %2841 = vmatprep.subr.mxu0 0.0
  %2842 = vmatpush1.msra.mxu0 0.0
  %2843 = vmatprep.subr.mxu0 0.0
  %2844 = vmatpush1.msra.mxu0 0.0
  %2845 = vmatprep.subr.mxu0 0.0
  %2846 = vmatpush1.msra.mxu0 0.0
  %2847 = vmatprep.subr.mxu0 0.0
  %2848 = vmatpush1.msra.mxu0 0.0
  %2849 = vmatprep.subr.mxu0 0.0
  %2850 = vmatpush1.msra.mxu0 0.0
  %2851 = vmatprep.subr.mxu0 0.0
  %2852 = vmatpush1.msra.mxu0 0.0
  %2853 = vmatprep.subr.mxu0 0.0
  %2854 = vmatpush1.msra.mxu0 0.0
  %2855 = vmatprep.subr.mxu0 0.0
  %2856 = vmatpush1.msra.mxu0 0.0
  %2857 = vmatprep.subr.mxu0 0.0
  %2858 = vmatpush1.msra.mxu0 0.0
  %2859 = vmatprep.subr.mxu0 0.0
  %2860 = vmatpush1.msra.mxu0 0.0
  %2861 = vmatprep.mubr.f32.mxu0 0.0
  %2862 = vmatmul.mubr.f32.gmra.mrb[0].mxu0 %v2778
  %v2863 = vpop.f32.mrb[0].mxu0
  %v2864 = vadd.f32 %v2740, %v2863
  %v2865 = vpop.f32.mrb[0].mxu0
  %2866 = vmatprep.mubr.f32.mxu0 0.0
  %2867 = vmatmul.mubr.f32.gmra.mrb[0].mxu0 %v2780
  %v2868 = vpop.f32.mrb[0].mxu0
  %v2869 = vadd.f32 %v2745, %v2868
  %v2870 = vpop.f32.mrb[0].mxu0
  %2871 = vmatprep.mubr.f32.mxu0 0.0
  %2872 = vmatmul.mubr.f32.gmra.mrb[0].mxu0 %v2782
  %v2873 = vpop.f32.mrb[0].mxu0
  %v2874 = vadd.f32 %v2750, %v2873
  %v2875 = vpop.f32.mrb[0].mxu0
  %2876 = vmatprep.mubr.f32.mxu0 0.0
  %2877 = vmatmul.mubr.f32.gmra.mrb[0].mxu0 %v2784
  %v2878 = vpop.f32.mrb[0].mxu0
  %v2879 = vadd.f32 %v2755, %v2878
  %v2880 = vpop.f32.mrb[0].mxu0
  %2881 = vmatprep.mubr.f32.mxu0 0.0
  %2882 = vmatmul.mubr.f32.gmra.mrb[0].mxu0 %v2786
  %v2883 = vpop.f32.mrb[0].mxu0
  %v2884 = vadd.f32 %v2760, %v2883
  %v2885 = vpop.f32.mrb[0].mxu0
  %2886 = vmatprep.mubr.f32.mxu0 0.0
  %2887 = vmatmul.mubr.f32.gmra.mrb[0].mxu0 %v2788
  %v2888 = vpop.f32.mrb[0].mxu0
  %v2889 = vadd.f32 %v2765, %v2888
  %v2890 = vpop.f32.mrb[0].mxu0
  %2891 = vmatprep.mubr.f32.mxu0 0.0
  %2892 = vmatmul.mubr.f32.gmra.mrb[0].mxu0 %v2790
  %v2893 = vpop.f32.mrb[0].mxu0
  %v2894 = vadd.f32 %v2770, %v2893
  %v2895 = vpop.f32.mrb[0].mxu0
  %2896 = vmatprep.mubr.f32.mxu0 0.0
  %2897 = vmatmul.mubr.f32.gmra.mrb[0].mxu0 %v2792
  %v2898 = vpop.f32.mrb[0].mxu0
  %v2899 = vadd.f32 %v2775, %v2898
  %v2900 = vpop.f32.mrb[0].mxu0
  %2901 = vdwg.mxu0
  %s2902 = scalar_lea.vmem [#allocation2], 176
  %v2903 = vld [vmem:[%s2902] sm:$0xff]
  %v2904 = vld [vmem:[%s2902 + $0x8] sm:$0xff]
  %v2905 = vld [vmem:[%s2902 + $0x10] sm:$0xff]
  %v2906 = vld [vmem:[%s2902 + $0x18] sm:$0xff]
  %v2907 = vld [vmem:[%s2902 + $0x20] sm:$0xff]
  %v2908 = vld [vmem:[%s2902 + $0x28] sm:$0xff]
  %v2909 = vld [vmem:[%s2902 + $0x30] sm:$0xff]
  %v2910 = vld [vmem:[%s2902 + $0x38] sm:$0xff]
  %v2911 = vld [vmem:[%s2902 + $0x40] sm:$0xff]
  %v2912 = vld [vmem:[%s2902 + $0x48] sm:$0xff]
  %v2913 = vld [vmem:[%s2902 + $0x50] sm:$0xf]
  %v2914 = vrot.slane %v2595, 2
  %v2915 = vrot.slane %v2596, 2
  %v2916 = vsel %vm905, %v2914, %v2915
  %v2917 = vrot.slane %v2597, 2
  %v2918 = vsel %vm905, %v2915, %v2917
  %v2919 = vrot.slane %v2598, 2
  %v2920 = vsel %vm905, %v2917, %v2919
  %v2921 = vrot.slane %v2599, 2
  %v2922 = vsel %vm905, %v2919, %v2921
  %v2923 = vrot.slane %v2600, 2
  %v2924 = vsel %vm905, %v2921, %v2923
  %v2925 = vrot.slane %v2601, 2
  %v2926 = vsel %vm905, %v2923, %v2925
  %v2927 = vrot.slane %v2602, 2
  %v2928 = vsel %vm905, %v2925, %v2927
  %v2929 = vsel %vm2653, %v2916, 0
  %v2931 = vsel %vm2653, %v2918, 0
  %v2933 = vsel %vm2653, %v2920, 0
  %v2935 = vsel %vm2653, %v2922, 0
  %v2937 = vsel %vm2653, %v2924, 0
  %v2939 = vsel %vm2653, %v2926, 0
  %v2941 = vsel %vm2653, %v2928, 0
  %v2943 = vsel %vm2653, %v2927, 0
  %v2946 = vsel %vm1228, %v2913, 0
  %2948 = vmatprep.subr.mxu0 0.0
  %2949 = vmatpush1.msra.mxu0 %v2903
  %2950 = vmatprep.subr.mxu0 0.0
  %2951 = vmatpush1.msra.mxu0 %v2904
  %2952 = vmatprep.subr.mxu0 0.0
  %2953 = vmatpush1.msra.mxu0 %v2905
  %2954 = vmatprep.subr.mxu0 0.0
  %2955 = vmatpush1.msra.mxu0 %v2906
  %2956 = vmatprep.subr.mxu0 0.0
  %2957 = vmatpush1.msra.mxu0 %v2907
  %2958 = vmatprep.subr.mxu0 0.0
  %2959 = vmatpush1.msra.mxu0 %v2908
  %2960 = vmatprep.subr.mxu0 0.0
  %2961 = vmatpush1.msra.mxu0 %v2909
  %2962 = vmatprep.subr.mxu0 0.0
  %2963 = vmatpush1.msra.mxu0 %v2910
  %2964 = vmatprep.subr.mxu0 0.0
  %2965 = vmatpush1.msra.mxu0 %v2911
  %2966 = vmatprep.subr.mxu0 0.0
  %2967 = vmatpush1.msra.mxu0 %v2912
  %2968 = vmatprep.subr.mxu0 0.0
  %2969 = vmatpush1.msra.mxu0 %v2946
  %2970 = vmatprep.subr.mxu0 0.0
  %2971 = vmatpush1.msra.mxu0 0.0
  %2972 = vmatprep.subr.mxu0 0.0
  %2973 = vmatpush1.msra.mxu0 0.0
  %2974 = vmatprep.subr.mxu0 0.0
  %2975 = vmatpush1.msra.mxu0 0.0
  %2976 = vmatprep.subr.mxu0 0.0
  %2977 = vmatpush1.msra.mxu0 0.0
  %2978 = vmatprep.subr.mxu0 0.0
  %2979 = vmatpush1.msra.mxu0 0.0
  %2980 = vmatprep.subr.mxu0 0.0
  %2981 = vmatpush1.msra.mxu0 0.0
  %2982 = vmatprep.subr.mxu0 0.0
  %2983 = vmatpush1.msra.mxu0 0.0
  %2984 = vmatprep.subr.mxu0 0.0
  %2985 = vmatpush1.msra.mxu0 0.0
  %2986 = vmatprep.subr.mxu0 0.0
  %2987 = vmatpush1.msra.mxu0 0.0
  %2988 = vmatprep.subr.mxu0 0.0
  %2989 = vmatpush1.msra.mxu0 0.0
  %2990 = vmatprep.subr.mxu0 0.0
  %2991 = vmatpush1.msra.mxu0 0.0
  %2992 = vmatprep.subr.mxu0 0.0
  %2993 = vmatpush1.msra.mxu0 0.0
  %2994 = vmatprep.subr.mxu0 0.0
  %2995 = vmatpush1.msra.mxu0 0.0
  %2996 = vmatprep.subr.mxu0 0.0
  %2997 = vmatpush1.msra.mxu0 0.0
  %2998 = vmatprep.subr.mxu0 0.0
  %2999 = vmatpush1.msra.mxu0 0.0
  %3000 = vmatprep.subr.mxu0 0.0
  %3001 = vmatpush1.msra.mxu0 0.0
  %3002 = vmatprep.subr.mxu0 0.0
  %3003 = vmatpush1.msra.mxu0 0.0
  %3004 = vmatprep.subr.mxu0 0.0
  %3005 = vmatpush1.msra.mxu0 0.0
  %3006 = vmatprep.subr.mxu0 0.0
  %3007 = vmatpush1.msra.mxu0 0.0
  %3008 = vmatprep.subr.mxu0 0.0
  %3009 = vmatpush1.msra.mxu0 0.0
  %3010 = vmatprep.subr.mxu0 0.0
  %3011 = vmatpush1.msra.mxu0 0.0
  %3012 = vmatprep.mubr.f32.mxu0 0.0
  %3013 = vmatmul.mubr.f32.gmra.mrb[0].mxu0 %v2929
  %v3014 = vpop.f32.mrb[0].mxu0
  %v3015 = vadd.f32 0.0, %v3014
  %v3016 = vpop.f32.mrb[0].mxu0
  %3017 = vmatprep.mubr.f32.mxu0 0.0
  %3018 = vmatmul.mubr.f32.gmra.mrb[0].mxu0 %v2931
  %v3019 = vpop.f32.mrb[0].mxu0
  %v3020 = vadd.f32 0.0, %v3019
  %v3021 = vpop.f32.mrb[0].mxu0
  %3022 = vmatprep.mubr.f32.mxu0 0.0
  %3023 = vmatmul.mubr.f32.gmra.mrb[0].mxu0 %v2933
  %v3024 = vpop.f32.mrb[0].mxu0
  %v3025 = vadd.f32 0.0, %v3024
  %v3026 = vpop.f32.mrb[0].mxu0
  %3027 = vmatprep.mubr.f32.mxu0 0.0
  %3028 = vmatmul.mubr.f32.gmra.mrb[0].mxu0 %v2935
  %v3029 = vpop.f32.mrb[0].mxu0
  %v3030 = vadd.f32 0.0, %v3029
  %v3031 = vpop.f32.mrb[0].mxu0
  %3032 = vmatprep.mubr.f32.mxu0 0.0
  %3033 = vmatmul.mubr.f32.gmra.mrb[0].mxu0 %v2937
  %v3034 = vpop.f32.mrb[0].mxu0
  %v3035 = vadd.f32 0.0, %v3034
  %v3036 = vpop.f32.mrb[0].mxu0
  %3037 = vmatprep.mubr.f32.mxu0 0.0
  %3038 = vmatmul.mubr.f32.gmra.mrb[0].mxu0 %v2939
  %v3039 = vpop.f32.mrb[0].mxu0
  %v3040 = vadd.f32 0.0, %v3039
  %v3041 = vpop.f32.mrb[0].mxu0
  %3042 = vmatprep.mubr.f32.mxu0 0.0
  %3043 = vmatmul.mubr.f32.gmra.mrb[0].mxu0 %v2941
  %v3044 = vpop.f32.mrb[0].mxu0
  %v3045 = vadd.f32 0.0, %v3044
  %v3046 = vpop.f32.mrb[0].mxu0
  %3047 = vmatprep.mubr.f32.mxu0 0.0
  %3048 = vmatmul.mubr.f32.gmra.mrb[0].mxu0 %v2943
  %v3049 = vpop.f32.mrb[0].mxu0
  %v3050 = vadd.f32 0.0, %v3049
  %v3051 = vpop.f32.mrb[0].mxu0
  %3052 = vdwg.mxu0
  %v3053 = vadd.f32 %v2864, %v3015
  %v3054 = vadd.f32 %v2869, %v3020
  %v3055 = vadd.f32 %v2874, %v3025
  %v3056 = vadd.f32 %v2879, %v3030
  %v3057 = vadd.f32 %v2884, %v3035
  %v3058 = vadd.f32 %v2889, %v3040
  %v3059 = vadd.f32 %v2894, %v3045
  %v3060 = vadd.f32 %v2899, %v3050
  %v3061 = vld [vmem:[%s7] sm:$0x1]
  %v3063 = vlaneseq
  %v3064 = vshrl.u32 %v3063, 7
  %v3065 = vsub.s32 0, %v3064
  %v3066 = vrot.slane %v3061, %v3065
  %v3068 = vadd.f32 %v3053, %v3066
  %v3069 = vadd.f32 %v3054, %v3066
  %v3070 = vadd.f32 %v3055, %v3066
  %v3071 = vadd.f32 %v3056, %v3066
  %v3072 = vadd.f32 %v3057, %v3066
  %v3073 = vadd.f32 %v3058, %v3066
  %v3074 = vadd.f32 %v3059, %v3066
  %v3075 = vadd.f32 %v3060, %v3066
  %v3076 = vtanh.pop %v3068
  %v3077 = vtanh.pop %v3069
  %v3078 = vtanh.pop %v3070
  %v3079 = vtanh.pop %v3071
  %v3080 = vtanh.pop %v3072
  %v3081 = vtanh.pop %v3073
  %v3082 = vtanh.pop %v3074
  %v3083 = vtanh.pop %v3075
  %v3084 = vld [vmem:[%s10] sm:$0xff]
  %v3085 = vld [vmem:[%s10 + $0x8] sm:$0xff]
  %v3086 = vld [vmem:[%s10 + $0x10] sm:$0xff]
  %v3087 = vld [vmem:[%s10 + $0x18] sm:$0xff]
  %v3088 = vld [vmem:[%s10 + $0x20] sm:$0xff]
  %v3089 = vld [vmem:[%s10 + $0x28] sm:$0xff]
  %v3090 = vld [vmem:[%s10 + $0x30] sm:$0xff]
  %v3091 = vld [vmem:[%s10 + $0x38] sm:$0x3f]
  %3093 = vset.pattern.permute.xlu0 0
  %3094 = vperm.xlu0 %3093, %v3084
  %v3095 = vpop.permute.xlu0 %3094
  %3098 = vset.pattern.permute.xlu0 0
  %3099 = vperm.xlu0 %3098, %v3085
  %v3100 = vpop.permute.xlu0 %3099
  %3103 = vset.pattern.permute.xlu0 0
  %3104 = vperm.xlu0 %3103, %v3086
  %v3105 = vpop.permute.xlu0 %3104
  %3108 = vset.pattern.permute.xlu0 0
  %3109 = vperm.xlu0 %3108, %v3087
  %v3110 = vpop.permute.xlu0 %3109
  %3113 = vset.pattern.permute.xlu0 0
  %3114 = vperm.xlu0 %3113, %v3088
  %v3115 = vpop.permute.xlu0 %3114
  %3118 = vset.pattern.permute.xlu0 0
  %3119 = vperm.xlu0 %3118, %v3089
  %v3120 = vpop.permute.xlu0 %3119
  %3123 = vset.pattern.permute.xlu0 0
  %3124 = vperm.xlu0 %3123, %v3090
  %v3125 = vpop.permute.xlu0 %3124
  %3128 = vset.pattern.permute.xlu0 0
  %3129 = vperm.xlu0 %3128, %v3091
  %v3130 = vpop.permute.xlu0 %3129
  %v3132 = vmul.f32 %v3076, %v3095
  %v3133 = vmul.f32 %v3077, %v3100
  %v3134 = vmul.f32 %v3078, %v3105
  %v3135 = vmul.f32 %v3079, %v3110
  %v3136 = vmul.f32 %v3080, %v3115
  %v3137 = vmul.f32 %v3081, %v3120
  %v3138 = vmul.f32 %v3082, %v3125
  %v3139 = vmul.f32 %v3083, %v3130
  %s3140 = smul.u32 8, 7
  %s3141 = smul.u32 %s3140, 14
  %s3142 = smul.u32 %s3141, 2
  %s3143 = sshll.u32 %s3142, 4
  %3144 = dma.done %s160, %s3143
  %v3145 = vld [vmem:[#allocation3] sm:$0xff]
  %v3146 = vld [vmem:[#allocation3 + $0x8] sm:$0xff]
  %v3147 = vld [vmem:[#allocation3 + $0x10] sm:$0xff]
  %v3148 = vld [vmem:[#allocation3 + $0x18] sm:$0xff]
  %v3149 = vld [vmem:[#allocation3 + $0x20] sm:$0xff]
  %v3150 = vld [vmem:[#allocation3 + $0x28] sm:$0xff]
  %v3151 = vld [vmem:[#allocation3 + $0x30] sm:$0xff]
  %v3152 = vld [vmem:[#allocation3 + $0x38] sm:$0xff]
  %v3153 = vld [vmem:[#allocation3 + $0x40] sm:$0xff]
  %v3154 = vld [vmem:[#allocation3 + $0x48] sm:$0xff]
  %v3155 = vld [vmem:[#allocation3 + $0x50] sm:$0xff]
  %v3156 = vld [vmem:[#allocation3 + $0x58] sm:$0xff]
  %v3157 = vld [vmem:[#allocation3 + $0x60] sm:$0xff]
  %v3158 = vld [vmem:[#allocation3 + $0x68] sm:$0xff]
  %v3159 = vld [vmem:[#allocation3 + $0x70] sm:$0xff]
  %v3160 = vld [vmem:[#allocation3 + $0x78] sm:$0xff]
  %v3161 = vld [vmem:[#allocation3 + $0x80] sm:$0xff]
  %v3162 = vld [vmem:[#allocation3 + $0x88] sm:$0xff]
  %v3163 = vld [vmem:[#allocation3 + $0x90] sm:$0xff]
  %v3164 = vld [vmem:[#allocation3 + $0x98] sm:$0xff]
  %v3165 = vld [vmem:[#allocation3 + $0xa0] sm:$0xff]
  %v3166 = vld [vmem:[#allocation3 + $0xa8] sm:$0xff]
  %v3167 = vld [vmem:[#allocation3 + $0xb0] sm:$0xff]
  %v3168 = vld [vmem:[#allocation3 + $0xb8] sm:$0xff]
  %v3169 = vld [vmem:[#allocation3 + $0xc0] sm:$0xff]
  %v3170 = vld [vmem:[#allocation3 + $0xc8] sm:$0xff]
  %v3171 = vld [vmem:[#allocation3 + $0xd0] sm:$0xf]
  %v3172 = vld [vmem:[#allocation3 + $0xd8] sm:$0xf]
  %s3173 = scalar_lea.vmem [#allocation3], 224
  %v3174 = vld [vmem:[%s3173] sm:$0xff]
  %v3175 = vld [vmem:[%s3173 + $0x8] sm:$0xff]
  %v3176 = vld [vmem:[%s3173 + $0x10] sm:$0xff]
  %v3177 = vld [vmem:[%s3173 + $0x18] sm:$0xff]
  %v3178 = vld [vmem:[%s3173 + $0x20] sm:$0xff]
  %v3179 = vld [vmem:[%s3173 + $0x28] sm:$0xff]
  %v3180 = vld [vmem:[%s3173 + $0x30] sm:$0xff]
  %v3181 = vld [vmem:[%s3173 + $0x38] sm:$0xff]
  %v3182 = vld [vmem:[%s3173 + $0x40] sm:$0xff]
  %v3183 = vld [vmem:[%s3173 + $0x48] sm:$0xff]
  %v3184 = vld [vmem:[%s3173 + $0x50] sm:$0xff]
  %v3185 = vld [vmem:[%s3173 + $0x58] sm:$0xff]
  %v3186 = vld [vmem:[%s3173 + $0x60] sm:$0xff]
  %v3187 = vld [vmem:[%s3173 + $0x68] sm:$0xff]
  %v3188 = vld [vmem:[%s3173 + $0x70] sm:$0xff]
  %v3189 = vld [vmem:[%s3173 + $0x78] sm:$0xff]
  %v3190 = vld [vmem:[%s3173 + $0x80] sm:$0xff]
  %v3191 = vld [vmem:[%s3173 + $0x88] sm:$0xff]
  %v3192 = vld [vmem:[%s3173 + $0x90] sm:$0xff]
  %v3193 = vld [vmem:[%s3173 + $0x98] sm:$0xff]
  %v3194 = vld [vmem:[%s3173 + $0xa0] sm:$0xff]
  %v3195 = vld [vmem:[%s3173 + $0xa8] sm:$0xff]
  %v3196 = vld [vmem:[%s3173 + $0xb0] sm:$0xff]
  %v3197 = vld [vmem:[%s3173 + $0xb8] sm:$0xff]
  %v3198 = vld [vmem:[%s3173 + $0xc0] sm:$0xff]
  %v3199 = vld [vmem:[%s3173 + $0xc8] sm:$0xff]
  %v3200 = vld [vmem:[%s3173 + $0xd0] sm:$0xf]
  %v3201 = vld [vmem:[%s3173 + $0xd8] sm:$0xf]
  %v3210 = vrot.slane %v3132, 1
  %v3211 = vrot.slane %v3133, 1
  %v3212 = vsel %vm619, %v3210, %v3211
  %v3213 = vrot.slane %v3134, 1
  %v3214 = vsel %vm619, %v3211, %v3213
  %v3215 = vrot.slane %v3135, 1
  %v3216 = vsel %vm619, %v3213, %v3215
  %v3217 = vrot.slane %v3136, 1
  %v3218 = vsel %vm619, %v3215, %v3217
  %v3219 = vrot.slane %v3137, 1
  %v3220 = vsel %vm619, %v3217, %v3219
  %v3221 = vrot.slane %v3138, 1
  %v3222 = vsel %vm619, %v3219, %v3221
  %v3223 = vrot.slane %v3139, 1
  %v3224 = vsel %vm619, %v3221, %v3223
  %vm3225 = vcmask 883712
  %v3226 = vsel %vm3225, %v3212, 0
  %v3228 = vsel %vm3225, %v3214, 0
  %v3230 = vsel %vm3225, %v3216, 0
  %v3232 = vsel %vm3225, %v3218, 0
  %v3234 = vsel %vm3225, %v3220, 0
  %v3236 = vsel %vm3225, %v3222, 0
  %v3238 = vsel %vm3225, %v3224, 0
  %v3241 = vsel %vm1228, %v3200, 0
  %v3244 = vsel %vm1228, %v3201, 0
  %3246 = vmatprep.subr.mxu0 %v3175
  %3247 = vmatpush1.msra.mxu0 %v3174
  %3248 = vmatprep.subr.mxu0 %v3177
  %3249 = vmatpush1.msra.mxu0 %v3176
  %3250 = vmatprep.subr.mxu0 %v3179
  %3251 = vmatpush1.msra.mxu0 %v3178
  %3252 = vmatprep.subr.mxu0 %v3181
  %3253 = vmatpush1.msra.mxu0 %v3180
  %3254 = vmatprep.subr.mxu0 %v3183
  %3255 = vmatpush1.msra.mxu0 %v3182
  %3256 = vmatprep.subr.mxu0 %v3185
  %3257 = vmatpush1.msra.mxu0 %v3184
  %3258 = vmatprep.subr.mxu0 %v3187
  %3259 = vmatpush1.msra.mxu0 %v3186
  %3260 = vmatprep.subr.mxu0 %v3189
  %3261 = vmatpush1.msra.mxu0 %v3188
  %3262 = vmatprep.subr.mxu0 %v3191
  %3263 = vmatpush1.msra.mxu0 %v3190
  %3264 = vmatprep.subr.mxu0 %v3193
  %3265 = vmatpush1.msra.mxu0 %v3192
  %3266 = vmatprep.subr.mxu0 %v3195
  %3267 = vmatpush1.msra.mxu0 %v3194
  %3268 = vmatprep.subr.mxu0 %v3197
  %3269 = vmatpush1.msra.mxu0 %v3196
  %3270 = vmatprep.subr.mxu0 %v3199
  %3271 = vmatpush1.msra.mxu0 %v3198
  %3272 = vmatprep.subr.mxu0 %v3244
  %3273 = vmatpush1.msra.mxu0 %v3241
  %3274 = vmatprep.subr.mxu0 0.0
  %3275 = vmatpush1.msra.mxu0 0.0
  %3276 = vmatprep.subr.mxu0 0.0
  %3277 = vmatpush1.msra.mxu0 0.0
  %3278 = vmatprep.subr.mxu0 0.0
  %3279 = vmatpush1.msra.mxu0 0.0
  %3280 = vmatprep.subr.mxu0 0.0
  %3281 = vmatpush1.msra.mxu0 0.0
  %3282 = vmatprep.subr.mxu0 0.0
  %3283 = vmatpush1.msra.mxu0 0.0
  %3284 = vmatprep.subr.mxu0 0.0
  %3285 = vmatpush1.msra.mxu0 0.0
  %3286 = vmatprep.subr.mxu0 0.0
  %3287 = vmatpush1.msra.mxu0 0.0
  %3288 = vmatprep.subr.mxu0 0.0
  %3289 = vmatpush1.msra.mxu0 0.0
  %3290 = vmatprep.subr.mxu0 0.0
  %3291 = vmatpush1.msra.mxu0 0.0
  %3292 = vmatprep.subr.mxu0 0.0
  %3293 = vmatpush1.msra.mxu0 0.0
  %3294 = vmatprep.subr.mxu0 0.0
  %3295 = vmatpush1.msra.mxu0 0.0
  %3296 = vmatprep.subr.mxu0 0.0
  %3297 = vmatpush1.msra.mxu0 0.0
  %3298 = vmatprep.subr.mxu0 0.0
  %3299 = vmatpush1.msra.mxu0 0.0
  %3300 = vmatprep.subr.mxu0 0.0
  %3301 = vmatpush1.msra.mxu0 0.0
  %3302 = vmatprep.subr.mxu0 0.0
  %3303 = vmatpush1.msra.mxu0 0.0
  %3304 = vmatprep.subr.mxu0 0.0
  %3305 = vmatpush1.msra.mxu0 0.0
  %3306 = vmatprep.subr.mxu0 0.0
  %3307 = vmatpush1.msra.mxu0 0.0
  %3308 = vmatprep.subr.mxu0 0.0
  %3309 = vmatpush1.msra.mxu0 0.0
  %3310 = vmatprep.mubr.f32.mxu0 0.0
  %3311 = vmatmul.mubr.f32.gmra.mrb[0].mxu0 %v3226
  %v3312 = vpop.f32.mrb[0].mxu0
  %v3313 = vadd.f32 0.0, %v3312
  %v3314 = vpop.f32.mrb[0].mxu0
  %v3315 = vadd.f32 0.0, %v3314
  %3316 = vmatprep.mubr.f32.mxu0 0.0
  %3317 = vmatmul.mubr.f32.gmra.mrb[0].mxu0 %v3228
  %v3318 = vpop.f32.mrb[0].mxu0
  %v3319 = vpop.f32.mrb[0].mxu0
  %3320 = vmatprep.mubr.f32.mxu0 0.0
  %3321 = vmatmul.mubr.f32.gmra.mrb[0].mxu0 %v3230
  %v3322 = vpop.f32.mrb[0].mxu0
  %v3323 = vpop.f32.mrb[0].mxu0
  %3324 = vmatprep.mubr.f32.mxu0 0.0
  %3325 = vmatmul.mubr.f32.gmra.mrb[0].mxu0 %v3232
  %v3326 = vpop.f32.mrb[0].mxu0
  %v3327 = vadd.f32 0.0, %v3326
  %v3328 = vpop.f32.mrb[0].mxu0
  %v3329 = vadd.f32 0.0, %v3328
  %3330 = vmatprep.mubr.f32.mxu0 0.0
  %3331 = vmatmul.mubr.f32.gmra.mrb[0].mxu0 %v3234
  %v3332 = vpop.f32.mrb[0].mxu0
  %v3333 = vpop.f32.mrb[0].mxu0
  %3334 = vmatprep.mubr.f32.mxu0 0.0
  %3335 = vmatmul.mubr.f32.gmra.mrb[0].mxu0 %v3236
  %v3336 = vpop.f32.mrb[0].mxu0
  %v3337 = vpop.f32.mrb[0].mxu0
  %3338 = vmatprep.mubr.f32.mxu0 0.0
  %3339 = vmatmul.mubr.f32.gmra.mrb[0].mxu0 %v3238
  %v3340 = vpop.f32.mrb[0].mxu0
  %v3341 = vadd.f32 0.0, %v3340
  %v3342 = vpop.f32.mrb[0].mxu0
  %v3343 = vadd.f32 0.0, %v3342
  %3344 = vdwg.mxu0
  %v3345 = vsel %vm3225, %v3132, 0
  %v3347 = vsel %vm3225, %v3133, 0
  %v3349 = vsel %vm3225, %v3134, 0
  %v3351 = vsel %vm3225, %v3135, 0
  %v3353 = vsel %vm3225, %v3136, 0
  %v3355 = vsel %vm3225, %v3137, 0
  %v3357 = vsel %vm3225, %v3138, 0
  %v3360 = vsel %vm1228, %v3171, 0
  %v3363 = vsel %vm1228, %v3172, 0
  %3365 = vmatprep.subr.mxu0 %v3146
  %3366 = vmatpush1.msra.mxu0 %v3145
  %3367 = vmatprep.subr.mxu0 %v3148
  %3368 = vmatpush1.msra.mxu0 %v3147
  %3369 = vmatprep.subr.mxu0 %v3150
  %3370 = vmatpush1.msra.mxu0 %v3149
  %3371 = vmatprep.subr.mxu0 %v3152
  %3372 = vmatpush1.msra.mxu0 %v3151
  %3373 = vmatprep.subr.mxu0 %v3154
  %3374 = vmatpush1.msra.mxu0 %v3153
  %3375 = vmatprep.subr.mxu0 %v3156
  %3376 = vmatpush1.msra.mxu0 %v3155
  %3377 = vmatprep.subr.mxu0 %v3158
  %3378 = vmatpush1.msra.mxu0 %v3157
  %3379 = vmatprep.subr.mxu0 %v3160
  %3380 = vmatpush1.msra.mxu0 %v3159
  %3381 = vmatprep.subr.mxu0 %v3162
  %3382 = vmatpush1.msra.mxu0 %v3161
  %3383 = vmatprep.subr.mxu0 %v3164
  %3384 = vmatpush1.msra.mxu0 %v3163
  %3385 = vmatprep.subr.mxu0 %v3166
  %3386 = vmatpush1.msra.mxu0 %v3165
  %3387 = vmatprep.subr.mxu0 %v3168
  %3388 = vmatpush1.msra.mxu0 %v3167
  %3389 = vmatprep.subr.mxu0 %v3170
  %3390 = vmatpush1.msra.mxu0 %v3169
  %3391 = vmatprep.subr.mxu0 %v3363
  %3392 = vmatpush1.msra.mxu0 %v3360
  %3393 = vmatprep.subr.mxu0 0.0
  %3394 = vmatpush1.msra.mxu0 0.0
  %3395 = vmatprep.subr.mxu0 0.0
  %3396 = vmatpush1.msra.mxu0 0.0
  %3397 = vmatprep.subr.mxu0 0.0
  %3398 = vmatpush1.msra.mxu0 0.0
  %3399 = vmatprep.subr.mxu0 0.0
  %3400 = vmatpush1.msra.mxu0 0.0
  %3401 = vmatprep.subr.mxu0 0.0
  %3402 = vmatpush1.msra.mxu0 0.0
  %3403 = vmatprep.subr.mxu0 0.0
  %3404 = vmatpush1.msra.mxu0 0.0
  %3405 = vmatprep.subr.mxu0 0.0
  %3406 = vmatpush1.msra.mxu0 0.0
  %3407 = vmatprep.subr.mxu0 0.0
  %3408 = vmatpush1.msra.mxu0 0.0
  %3409 = vmatprep.subr.mxu0 0.0
  %3410 = vmatpush1.msra.mxu0 0.0
  %3411 = vmatprep.subr.mxu0 0.0
  %3412 = vmatpush1.msra.mxu0 0.0
  %3413 = vmatprep.subr.mxu0 0.0
  %3414 = vmatpush1.msra.mxu0 0.0
  %3415 = vmatprep.subr.mxu0 0.0
  %3416 = vmatpush1.msra.mxu0 0.0
  %3417 = vmatprep.subr.mxu0 0.0
  %3418 = vmatpush1.msra.mxu0 0.0
  %3419 = vmatprep.subr.mxu0 0.0
  %3420 = vmatpush1.msra.mxu0 0.0
  %3421 = vmatprep.subr.mxu0 0.0
  %3422 = vmatpush1.msra.mxu0 0.0
  %3423 = vmatprep.subr.mxu0 0.0
  %3424 = vmatpush1.msra.mxu0 0.0
  %3425 = vmatprep.subr.mxu0 0.0
  %3426 = vmatpush1.msra.mxu0 0.0
  %3427 = vmatprep.subr.mxu0 0.0
  %3428 = vmatpush1.msra.mxu0 0.0
  %3429 = vmatprep.mubr.f32.mxu0 0.0
  %3430 = vmatmul.mubr.f32.gmra.mrb[0].mxu0 %v3345
  %v3431 = vpop.f32.mrb[0].mxu0
  %v3432 = vadd.f32 %v3313, %v3431
  %v3433 = vpop.f32.mrb[0].mxu0
  %v3434 = vadd.f32 %v3315, %v3433
  %3435 = vmatprep.mubr.f32.mxu0 0.0
  %3436 = vmatmul.mubr.f32.gmra.mrb[0].mxu0 %v3347
  %v3437 = vpop.f32.mrb[0].mxu0
  %v3438 = vpop.f32.mrb[0].mxu0
  %3439 = vmatprep.mubr.f32.mxu0 0.0
  %3440 = vmatmul.mubr.f32.gmra.mrb[0].mxu0 %v3349
  %v3441 = vpop.f32.mrb[0].mxu0
  %v3442 = vpop.f32.mrb[0].mxu0
  %3443 = vmatprep.mubr.f32.mxu0 0.0
  %3444 = vmatmul.mubr.f32.gmra.mrb[0].mxu0 %v3351
  %v3445 = vpop.f32.mrb[0].mxu0
  %v3446 = vadd.f32 %v3327, %v3445
  %v3447 = vpop.f32.mrb[0].mxu0
  %v3448 = vadd.f32 %v3329, %v3447
  %3449 = vmatprep.mubr.f32.mxu0 0.0
  %3450 = vmatmul.mubr.f32.gmra.mrb[0].mxu0 %v3353
  %v3451 = vpop.f32.mrb[0].mxu0
  %v3452 = vpop.f32.mrb[0].mxu0
  %3453 = vmatprep.mubr.f32.mxu0 0.0
  %3454 = vmatmul.mubr.f32.gmra.mrb[0].mxu0 %v3355
  %v3455 = vpop.f32.mrb[0].mxu0
  %v3456 = vpop.f32.mrb[0].mxu0
  %3457 = vmatprep.mubr.f32.mxu0 0.0
  %3458 = vmatmul.mubr.f32.gmra.mrb[0].mxu0 %v3357
  %v3459 = vpop.f32.mrb[0].mxu0
  %v3460 = vadd.f32 %v3341, %v3459
  %v3461 = vpop.f32.mrb[0].mxu0
  %v3462 = vadd.f32 %v3343, %v3461
  %3463 = vdwg.mxu0
  %s3464 = scalar_lea.vmem [#allocation3], 448
  %v3465 = vld [vmem:[%s3464] sm:$0xff]
  %v3466 = vld [vmem:[%s3464 + $0x8] sm:$0xff]
  %v3467 = vld [vmem:[%s3464 + $0x10] sm:$0xff]
  %v3468 = vld [vmem:[%s3464 + $0x18] sm:$0xff]
  %v3469 = vld [vmem:[%s3464 + $0x20] sm:$0xff]
  %v3470 = vld [vmem:[%s3464 + $0x28] sm:$0xff]
  %v3471 = vld [vmem:[%s3464 + $0x30] sm:$0xff]
  %v3472 = vld [vmem:[%s3464 + $0x38] sm:$0xff]
  %v3473 = vld [vmem:[%s3464 + $0x40] sm:$0xff]
  %v3474 = vld [vmem:[%s3464 + $0x48] sm:$0xff]
  %v3475 = vld [vmem:[%s3464 + $0x50] sm:$0xff]
  %v3476 = vld [vmem:[%s3464 + $0x58] sm:$0xff]
  %v3477 = vld [vmem:[%s3464 + $0x60] sm:$0xff]
  %v3478 = vld [vmem:[%s3464 + $0x68] sm:$0xff]
  %v3479 = vld [vmem:[%s3464 + $0x70] sm:$0xff]
  %v3480 = vld [vmem:[%s3464 + $0x78] sm:$0xff]
  %v3481 = vld [vmem:[%s3464 + $0x80] sm:$0xff]
  %v3482 = vld [vmem:[%s3464 + $0x88] sm:$0xff]
  %v3483 = vld [vmem:[%s3464 + $0x90] sm:$0xff]
  %v3484 = vld [vmem:[%s3464 + $0x98] sm:$0xff]
  %v3485 = vld [vmem:[%s3464 + $0xa0] sm:$0xff]
  %v3486 = vld [vmem:[%s3464 + $0xa8] sm:$0xff]
  %v3487 = vld [vmem:[%s3464 + $0xb0] sm:$0xff]
  %v3488 = vld [vmem:[%s3464 + $0xb8] sm:$0xff]
  %v3489 = vld [vmem:[%s3464 + $0xc0] sm:$0xff]
  %v3490 = vld [vmem:[%s3464 + $0xc8] sm:$0xff]
  %v3491 = vld [vmem:[%s3464 + $0xd0] sm:$0xf]
  %v3492 = vld [vmem:[%s3464 + $0xd8] sm:$0xf]
  %v3493 = vrot.slane %v3132, 2
  %v3494 = vrot.slane %v3133, 2
  %v3495 = vsel %vm905, %v3493, %v3494
  %v3496 = vrot.slane %v3134, 2
  %v3497 = vsel %vm905, %v3494, %v3496
  %v3498 = vrot.slane %v3135, 2
  %v3499 = vsel %vm905, %v3496, %v3498
  %v3500 = vrot.slane %v3136, 2
  %v3501 = vsel %vm905, %v3498, %v3500
  %v3502 = vrot.slane %v3137, 2
  %v3503 = vsel %vm905, %v3500, %v3502
  %v3504 = vrot.slane %v3138, 2
  %v3505 = vsel %vm905, %v3502, %v3504
  %v3506 = vrot.slane %v3139, 2
  %v3507 = vsel %vm905, %v3504, %v3506
  %v3508 = vsel %vm3225, %v3495, 0
  %v3510 = vsel %vm3225, %v3497, 0
  %v3512 = vsel %vm3225, %v3499, 0
  %v3514 = vsel %vm3225, %v3501, 0
  %v3516 = vsel %vm3225, %v3503, 0
  %v3518 = vsel %vm3225, %v3505, 0
  %v3520 = vsel %vm3225, %v3507, 0
  %v3523 = vsel %vm1228, %v3491, 0
  %v3526 = vsel %vm1228, %v3492, 0
  %3528 = vmatprep.subr.mxu0 %v3466
  %3529 = vmatpush1.msra.mxu0 %v3465
  %3530 = vmatprep.subr.mxu0 %v3468
  %3531 = vmatpush1.msra.mxu0 %v3467
  %3532 = vmatprep.subr.mxu0 %v3470
  %3533 = vmatpush1.msra.mxu0 %v3469
  %3534 = vmatprep.subr.mxu0 %v3472
  %3535 = vmatpush1.msra.mxu0 %v3471
  %3536 = vmatprep.subr.mxu0 %v3474
  %3537 = vmatpush1.msra.mxu0 %v3473
  %3538 = vmatprep.subr.mxu0 %v3476
  %3539 = vmatpush1.msra.mxu0 %v3475
  %3540 = vmatprep.subr.mxu0 %v3478
  %3541 = vmatpush1.msra.mxu0 %v3477
  %3542 = vmatprep.subr.mxu0 %v3480
  %3543 = vmatpush1.msra.mxu0 %v3479
  %3544 = vmatprep.subr.mxu0 %v3482
  %3545 = vmatpush1.msra.mxu0 %v3481
  %3546 = vmatprep.subr.mxu0 %v3484
  %3547 = vmatpush1.msra.mxu0 %v3483
  %3548 = vmatprep.subr.mxu0 %v3486
  %3549 = vmatpush1.msra.mxu0 %v3485
  %3550 = vmatprep.subr.mxu0 %v3488
  %3551 = vmatpush1.msra.mxu0 %v3487
  %3552 = vmatprep.subr.mxu0 %v3490
  %3553 = vmatpush1.msra.mxu0 %v3489
  %3554 = vmatprep.subr.mxu0 %v3526
  %3555 = vmatpush1.msra.mxu0 %v3523
  %3556 = vmatprep.subr.mxu0 0.0
  %3557 = vmatpush1.msra.mxu0 0.0
  %3558 = vmatprep.subr.mxu0 0.0
  %3559 = vmatpush1.msra.mxu0 0.0
  %3560 = vmatprep.subr.mxu0 0.0
  %3561 = vmatpush1.msra.mxu0 0.0
  %3562 = vmatprep.subr.mxu0 0.0
  %3563 = vmatpush1.msra.mxu0 0.0
  %3564 = vmatprep.subr.mxu0 0.0
  %3565 = vmatpush1.msra.mxu0 0.0
  %3566 = vmatprep.subr.mxu0 0.0
  %3567 = vmatpush1.msra.mxu0 0.0
  %3568 = vmatprep.subr.mxu0 0.0
  %3569 = vmatpush1.msra.mxu0 0.0
  %3570 = vmatprep.subr.mxu0 0.0
  %3571 = vmatpush1.msra.mxu0 0.0
  %3572 = vmatprep.subr.mxu0 0.0
  %3573 = vmatpush1.msra.mxu0 0.0
  %3574 = vmatprep.subr.mxu0 0.0
  %3575 = vmatpush1.msra.mxu0 0.0
  %3576 = vmatprep.subr.mxu0 0.0
  %3577 = vmatpush1.msra.mxu0 0.0
  %3578 = vmatprep.subr.mxu0 0.0
  %3579 = vmatpush1.msra.mxu0 0.0
  %3580 = vmatprep.subr.mxu0 0.0
  %3581 = vmatpush1.msra.mxu0 0.0
  %3582 = vmatprep.subr.mxu0 0.0
  %3583 = vmatpush1.msra.mxu0 0.0
  %3584 = vmatprep.subr.mxu0 0.0
  %3585 = vmatpush1.msra.mxu0 0.0
  %3586 = vmatprep.subr.mxu0 0.0
  %3587 = vmatpush1.msra.mxu0 0.0
  %3588 = vmatprep.subr.mxu0 0.0
  %3589 = vmatpush1.msra.mxu0 0.0
  %3590 = vmatprep.subr.mxu0 0.0
  %3591 = vmatpush1.msra.mxu0 0.0
  %3592 = vmatprep.mubr.f32.mxu0 0.0
  %3593 = vmatmul.mubr.f32.gmra.mrb[0].mxu0 %v3508
  %v3594 = vpop.f32.mrb[0].mxu0
  %v3595 = vadd.f32 0.0, %v3594
  %v3596 = vpop.f32.mrb[0].mxu0
  %v3597 = vadd.f32 0.0, %v3596
  %3598 = vmatprep.mubr.f32.mxu0 0.0
  %3599 = vmatmul.mubr.f32.gmra.mrb[0].mxu0 %v3510
  %v3600 = vpop.f32.mrb[0].mxu0
  %v3601 = vpop.f32.mrb[0].mxu0
  %3602 = vmatprep.mubr.f32.mxu0 0.0
  %3603 = vmatmul.mubr.f32.gmra.mrb[0].mxu0 %v3512
  %v3604 = vpop.f32.mrb[0].mxu0
  %v3605 = vpop.f32.mrb[0].mxu0
  %3606 = vmatprep.mubr.f32.mxu0 0.0
  %3607 = vmatmul.mubr.f32.gmra.mrb[0].mxu0 %v3514
  %v3608 = vpop.f32.mrb[0].mxu0
  %v3609 = vadd.f32 0.0, %v3608
  %v3610 = vpop.f32.mrb[0].mxu0
  %v3611 = vadd.f32 0.0, %v3610
  %3612 = vmatprep.mubr.f32.mxu0 0.0
  %3613 = vmatmul.mubr.f32.gmra.mrb[0].mxu0 %v3516
  %v3614 = vpop.f32.mrb[0].mxu0
  %v3615 = vpop.f32.mrb[0].mxu0
  %3616 = vmatprep.mubr.f32.mxu0 0.0
  %3617 = vmatmul.mubr.f32.gmra.mrb[0].mxu0 %v3518
  %v3618 = vpop.f32.mrb[0].mxu0
  %v3619 = vpop.f32.mrb[0].mxu0
  %3620 = vmatprep.mubr.f32.mxu0 0.0
  %3621 = vmatmul.mubr.f32.gmra.mrb[0].mxu0 %v3520
  %v3622 = vpop.f32.mrb[0].mxu0
  %v3623 = vadd.f32 0.0, %v3622
  %v3624 = vpop.f32.mrb[0].mxu0
  %v3625 = vadd.f32 0.0, %v3624
  %3626 = vdwg.mxu0
  %v3627 = vadd.f32 %v3432, %v3595
  %v3628 = vadd.f32 %v3434, %v3597
  %v3629 = vadd.f32 %v3446, %v3609
  %v3630 = vadd.f32 %v3448, %v3611
  %v3631 = vadd.f32 %v3460, %v3623
  %v3632 = vadd.f32 %v3462, %v3625
  %s3633 = scalar_lea.vmem [#allocation3], 672
  %v3634 = vld [vmem:[%s3633] sm:$0xff]
  %v3635 = vld [vmem:[%s3633 + $0x8] sm:$0xff]
  %v3636 = vld [vmem:[%s3633 + $0x10] sm:$0xff]
  %v3637 = vld [vmem:[%s3633 + $0x18] sm:$0xff]
  %v3638 = vld [vmem:[%s3633 + $0x20] sm:$0xff]
  %v3639 = vld [vmem:[%s3633 + $0x28] sm:$0xff]
  %v3640 = vld [vmem:[%s3633 + $0x30] sm:$0xff]
  %v3641 = vld [vmem:[%s3633 + $0x38] sm:$0xff]
  %v3642 = vld [vmem:[%s3633 + $0x40] sm:$0xff]
  %v3643 = vld [vmem:[%s3633 + $0x48] sm:$0xff]
  %v3644 = vld [vmem:[%s3633 + $0x50] sm:$0xff]
  %v3645 = vld [vmem:[%s3633 + $0x58] sm:$0xff]
  %v3646 = vld [vmem:[%s3633 + $0x60] sm:$0xff]
  %v3647 = vld [vmem:[%s3633 + $0x68] sm:$0xff]
  %v3648 = vld [vmem:[%s3633 + $0x70] sm:$0xff]
  %v3649 = vld [vmem:[%s3633 + $0x78] sm:$0xff]
  %v3650 = vld [vmem:[%s3633 + $0x80] sm:$0xff]
  %v3651 = vld [vmem:[%s3633 + $0x88] sm:$0xff]
  %v3652 = vld [vmem:[%s3633 + $0x90] sm:$0xff]
  %v3653 = vld [vmem:[%s3633 + $0x98] sm:$0xff]
  %v3654 = vld [vmem:[%s3633 + $0xa0] sm:$0xff]
  %v3655 = vld [vmem:[%s3633 + $0xa8] sm:$0xff]
  %v3656 = vld [vmem:[%s3633 + $0xb0] sm:$0xff]
  %v3657 = vld [vmem:[%s3633 + $0xb8] sm:$0xff]
  %v3658 = vld [vmem:[%s3633 + $0xc0] sm:$0xff]
  %v3659 = vld [vmem:[%s3633 + $0xc8] sm:$0xff]
  %v3660 = vld [vmem:[%s3633 + $0xd0] sm:$0xf]
  %v3661 = vld [vmem:[%s3633 + $0xd8] sm:$0xf]
  %v3662 = vrot.slane %v3132, 3
  %v3663 = vrot.slane %v3133, 3
  %v3664 = vsel %vm656, %v3662, %v3663
  %v3665 = vrot.slane %v3134, 3
  %v3666 = vsel %vm656, %v3663, %v3665
  %v3667 = vrot.slane %v3135, 3
  %v3668 = vsel %vm656, %v3665, %v3667
  %v3669 = vrot.slane %v3136, 3
  %v3670 = vsel %vm656, %v3667, %v3669
  %v3671 = vrot.slane %v3137, 3
  %v3672 = vsel %vm656, %v3669, %v3671
  %v3673 = vrot.slane %v3138, 3
  %v3674 = vsel %vm656, %v3671, %v3673
  %v3675 = vrot.slane %v3139, 3
  %v3676 = vsel %vm656, %v3673, %v3675
  %v3677 = vsel %vm3225, %v3664, 0
  %v3679 = vsel %vm3225, %v3666, 0
  %v3681 = vsel %vm3225, %v3668, 0
  %v3683 = vsel %vm3225, %v3670, 0
  %v3685 = vsel %vm3225, %v3672, 0
  %v3687 = vsel %vm3225, %v3674, 0
  %v3689 = vsel %vm3225, %v3676, 0
  %v3692 = vsel %vm1228, %v3660, 0
  %v3695 = vsel %vm1228, %v3661, 0
  %3697 = vmatprep.subr.mxu0 %v3635
  %3698 = vmatpush1.msra.mxu0 %v3634
  %3699 = vmatprep.subr.mxu0 %v3637
  %3700 = vmatpush1.msra.mxu0 %v3636
  %3701 = vmatprep.subr.mxu0 %v3639
  %3702 = vmatpush1.msra.mxu0 %v3638
  %3703 = vmatprep.subr.mxu0 %v3641
  %3704 = vmatpush1.msra.mxu0 %v3640
  %3705 = vmatprep.subr.mxu0 %v3643
  %3706 = vmatpush1.msra.mxu0 %v3642
  %3707 = vmatprep.subr.mxu0 %v3645
  %3708 = vmatpush1.msra.mxu0 %v3644
  %3709 = vmatprep.subr.mxu0 %v3647
  %3710 = vmatpush1.msra.mxu0 %v3646
  %3711 = vmatprep.subr.mxu0 %v3649
  %3712 = vmatpush1.msra.mxu0 %v3648
  %3713 = vmatprep.subr.mxu0 %v3651
  %3714 = vmatpush1.msra.mxu0 %v3650
  %3715 = vmatprep.subr.mxu0 %v3653
  %3716 = vmatpush1.msra.mxu0 %v3652
  %3717 = vmatprep.subr.mxu0 %v3655
  %3718 = vmatpush1.msra.mxu0 %v3654
  %3719 = vmatprep.subr.mxu0 %v3657
  %3720 = vmatpush1.msra.mxu0 %v3656
  %3721 = vmatprep.subr.mxu0 %v3659
  %3722 = vmatpush1.msra.mxu0 %v3658
  %3723 = vmatprep.subr.mxu0 %v3695
  %3724 = vmatpush1.msra.mxu0 %v3692
  %3725 = vmatprep.subr.mxu0 0.0
  %3726 = vmatpush1.msra.mxu0 0.0
  %3727 = vmatprep.subr.mxu0 0.0
  %3728 = vmatpush1.msra.mxu0 0.0
  %3729 = vmatprep.subr.mxu0 0.0
  %3730 = vmatpush1.msra.mxu0 0.0
  %3731 = vmatprep.subr.mxu0 0.0
  %3732 = vmatpush1.msra.mxu0 0.0
  %3733 = vmatprep.subr.mxu0 0.0
  %3734 = vmatpush1.msra.mxu0 0.0
  %3735 = vmatprep.subr.mxu0 0.0
  %3736 = vmatpush1.msra.mxu0 0.0
  %3737 = vmatprep.subr.mxu0 0.0
  %3738 = vmatpush1.msra.mxu0 0.0
  %3739 = vmatprep.subr.mxu0 0.0
  %3740 = vmatpush1.msra.mxu0 0.0
  %3741 = vmatprep.subr.mxu0 0.0
  %3742 = vmatpush1.msra.mxu0 0.0
  %3743 = vmatprep.subr.mxu0 0.0
  %3744 = vmatpush1.msra.mxu0 0.0
  %3745 = vmatprep.subr.mxu0 0.0
  %3746 = vmatpush1.msra.mxu0 0.0
  %3747 = vmatprep.subr.mxu0 0.0
  %3748 = vmatpush1.msra.mxu0 0.0
  %3749 = vmatprep.subr.mxu0 0.0
  %3750 = vmatpush1.msra.mxu0 0.0
  %3751 = vmatprep.subr.mxu0 0.0
  %3752 = vmatpush1.msra.mxu0 0.0
  %3753 = vmatprep.subr.mxu0 0.0
  %3754 = vmatpush1.msra.mxu0 0.0
  %3755 = vmatprep.subr.mxu0 0.0
  %3756 = vmatpush1.msra.mxu0 0.0
  %3757 = vmatprep.subr.mxu0 0.0
  %3758 = vmatpush1.msra.mxu0 0.0
  %3759 = vmatprep.subr.mxu0 0.0
  %3760 = vmatpush1.msra.mxu0 0.0
  %3761 = vmatprep.mubr.f32.mxu0 0.0
  %3762 = vmatmul.mubr.f32.gmra.mrb[0].mxu0 %v3677
  %v3763 = vpop.f32.mrb[0].mxu0
  %v3764 = vadd.f32 0.0, %v3763
  %v3765 = vpop.f32.mrb[0].mxu0
  %v3766 = vadd.f32 0.0, %v3765
  %3767 = vmatprep.mubr.f32.mxu0 0.0
  %3768 = vmatmul.mubr.f32.gmra.mrb[0].mxu0 %v3679
  %v3769 = vpop.f32.mrb[0].mxu0
  %v3770 = vpop.f32.mrb[0].mxu0
  %3771 = vmatprep.mubr.f32.mxu0 0.0
  %3772 = vmatmul.mubr.f32.gmra.mrb[0].mxu0 %v3681
  %v3773 = vpop.f32.mrb[0].mxu0
  %v3774 = vpop.f32.mrb[0].mxu0
  %3775 = vmatprep.mubr.f32.mxu0 0.0
  %3776 = vmatmul.mubr.f32.gmra.mrb[0].mxu0 %v3683
  %v3777 = vpop.f32.mrb[0].mxu0
  %v3778 = vadd.f32 0.0, %v3777
  %v3779 = vpop.f32.mrb[0].mxu0
  %v3780 = vadd.f32 0.0, %v3779
  %3781 = vmatprep.mubr.f32.mxu0 0.0
  %3782 = vmatmul.mubr.f32.gmra.mrb[0].mxu0 %v3685
  %v3783 = vpop.f32.mrb[0].mxu0
  %v3784 = vpop.f32.mrb[0].mxu0
  %3785 = vmatprep.mubr.f32.mxu0 0.0
  %3786 = vmatmul.mubr.f32.gmra.mrb[0].mxu0 %v3687
  %v3787 = vpop.f32.mrb[0].mxu0
  %v3788 = vpop.f32.mrb[0].mxu0
  %3789 = vmatprep.mubr.f32.mxu0 0.0
  %3790 = vmatmul.mubr.f32.gmra.mrb[0].mxu0 %v3689
  %v3791 = vpop.f32.mrb[0].mxu0
  %v3792 = vadd.f32 0.0, %v3791
  %v3793 = vpop.f32.mrb[0].mxu0
  %v3794 = vadd.f32 0.0, %v3793
  %3795 = vdwg.mxu0
  %v3796 = vadd.f32 %v3627, %v3764
  %v3797 = vadd.f32 %v3628, %v3766
  %v3798 = vadd.f32 %v3629, %v3778
  %v3799 = vadd.f32 %v3630, %v3780
  %v3800 = vadd.f32 %v3631, %v3792
  %v3801 = vadd.f32 %v3632, %v3794
  %s3802 = scalar_lea.vmem [#allocation3], 896
  %v3803 = vld [vmem:[%s3802] sm:$0xff]
  %v3804 = vld [vmem:[%s3802 + $0x8] sm:$0xff]
  %v3805 = vld [vmem:[%s3802 + $0x10] sm:$0xff]
  %v3806 = vld [vmem:[%s3802 + $0x18] sm:$0xff]
  %v3807 = vld [vmem:[%s3802 + $0x20] sm:$0xff]
  %v3808 = vld [vmem:[%s3802 + $0x28] sm:$0xff]
  %v3809 = vld [vmem:[%s3802 + $0x30] sm:$0xff]
  %v3810 = vld [vmem:[%s3802 + $0x38] sm:$0xff]
  %v3811 = vld [vmem:[%s3802 + $0x40] sm:$0xff]
  %v3812 = vld [vmem:[%s3802 + $0x48] sm:$0xff]
  %v3813 = vld [vmem:[%s3802 + $0x50] sm:$0xff]
  %v3814 = vld [vmem:[%s3802 + $0x58] sm:$0xff]
  %v3815 = vld [vmem:[%s3802 + $0x60] sm:$0xff]
  %v3816 = vld [vmem:[%s3802 + $0x68] sm:$0xff]
  %v3817 = vld [vmem:[%s3802 + $0x70] sm:$0xff]
  %v3818 = vld [vmem:[%s3802 + $0x78] sm:$0xff]
  %v3819 = vld [vmem:[%s3802 + $0x80] sm:$0xff]
  %v3820 = vld [vmem:[%s3802 + $0x88] sm:$0xff]
  %v3821 = vld [vmem:[%s3802 + $0x90] sm:$0xff]
  %v3822 = vld [vmem:[%s3802 + $0x98] sm:$0xff]
  %v3823 = vld [vmem:[%s3802 + $0xa0] sm:$0xff]
  %v3824 = vld [vmem:[%s3802 + $0xa8] sm:$0xff]
  %v3825 = vld [vmem:[%s3802 + $0xb0] sm:$0xff]
  %v3826 = vld [vmem:[%s3802 + $0xb8] sm:$0xff]
  %v3827 = vld [vmem:[%s3802 + $0xc0] sm:$0xff]
  %v3828 = vld [vmem:[%s3802 + $0xc8] sm:$0xff]
  %v3829 = vld [vmem:[%s3802 + $0xd0] sm:$0xf]
  %v3830 = vld [vmem:[%s3802 + $0xd8] sm:$0xf]
  %v3831 = vrot.slane %v3132, 4
  %v3832 = vrot.slane %v3133, 4
  %v3833 = vsel %vm1228, %v3831, %v3832
  %v3834 = vrot.slane %v3134, 4
  %v3835 = vsel %vm1228, %v3832, %v3834
  %v3836 = vrot.slane %v3135, 4
  %v3837 = vsel %vm1228, %v3834, %v3836
  %v3838 = vrot.slane %v3136, 4
  %v3839 = vsel %vm1228, %v3836, %v3838
  %v3840 = vrot.slane %v3137, 4
  %v3841 = vsel %vm1228, %v3838, %v3840
  %v3842 = vrot.slane %v3138, 4
  %v3843 = vsel %vm1228, %v3840, %v3842
  %v3844 = vrot.slane %v3139, 4
  %v3845 = vsel %vm1228, %v3842, %v3844
  %v3846 = vsel %vm3225, %v3833, 0
  %v3848 = vsel %vm3225, %v3835, 0
  %v3850 = vsel %vm3225, %v3837, 0
  %v3852 = vsel %vm3225, %v3839, 0
  %v3854 = vsel %vm3225, %v3841, 0
  %v3856 = vsel %vm3225, %v3843, 0
  %v3858 = vsel %vm3225, %v3845, 0
  %v3861 = vsel %vm1228, %v3829, 0
  %v3864 = vsel %vm1228, %v3830, 0
  %3866 = vmatprep.subr.mxu0 %v3804
  %3867 = vmatpush1.msra.mxu0 %v3803
  %3868 = vmatprep.subr.mxu0 %v3806
  %3869 = vmatpush1.msra.mxu0 %v3805
  %3870 = vmatprep.subr.mxu0 %v3808
  %3871 = vmatpush1.msra.mxu0 %v3807
  %3872 = vmatprep.subr.mxu0 %v3810
  %3873 = vmatpush1.msra.mxu0 %v3809
  %3874 = vmatprep.subr.mxu0 %v3812
  %3875 = vmatpush1.msra.mxu0 %v3811
  %3876 = vmatprep.subr.mxu0 %v3814
  %3877 = vmatpush1.msra.mxu0 %v3813
  %3878 = vmatprep.subr.mxu0 %v3816
  %3879 = vmatpush1.msra.mxu0 %v3815
  %3880 = vmatprep.subr.mxu0 %v3818
  %3881 = vmatpush1.msra.mxu0 %v3817
  %3882 = vmatprep.subr.mxu0 %v3820
  %3883 = vmatpush1.msra.mxu0 %v3819
  %3884 = vmatprep.subr.mxu0 %v3822
  %3885 = vmatpush1.msra.mxu0 %v3821
  %3886 = vmatprep.subr.mxu0 %v3824
  %3887 = vmatpush1.msra.mxu0 %v3823
  %3888 = vmatprep.subr.mxu0 %v3826
  %3889 = vmatpush1.msra.mxu0 %v3825
  %3890 = vmatprep.subr.mxu0 %v3828
  %3891 = vmatpush1.msra.mxu0 %v3827
  %3892 = vmatprep.subr.mxu0 %v3864
  %3893 = vmatpush1.msra.mxu0 %v3861
  %3894 = vmatprep.subr.mxu0 0.0
  %3895 = vmatpush1.msra.mxu0 0.0
  %3896 = vmatprep.subr.mxu0 0.0
  %3897 = vmatpush1.msra.mxu0 0.0
  %3898 = vmatprep.subr.mxu0 0.0
  %3899 = vmatpush1.msra.mxu0 0.0
  %3900 = vmatprep.subr.mxu0 0.0
  %3901 = vmatpush1.msra.mxu0 0.0
  %3902 = vmatprep.subr.mxu0 0.0
  %3903 = vmatpush1.msra.mxu0 0.0
  %3904 = vmatprep.subr.mxu0 0.0
  %3905 = vmatpush1.msra.mxu0 0.0
  %3906 = vmatprep.subr.mxu0 0.0
  %3907 = vmatpush1.msra.mxu0 0.0
  %3908 = vmatprep.subr.mxu0 0.0
  %3909 = vmatpush1.msra.mxu0 0.0
  %3910 = vmatprep.subr.mxu0 0.0
  %3911 = vmatpush1.msra.mxu0 0.0
  %3912 = vmatprep.subr.mxu0 0.0
  %3913 = vmatpush1.msra.mxu0 0.0
  %3914 = vmatprep.subr.mxu0 0.0
  %3915 = vmatpush1.msra.mxu0 0.0
  %3916 = vmatprep.subr.mxu0 0.0
  %3917 = vmatpush1.msra.mxu0 0.0
  %3918 = vmatprep.subr.mxu0 0.0
  %3919 = vmatpush1.msra.mxu0 0.0
  %3920 = vmatprep.subr.mxu0 0.0
  %3921 = vmatpush1.msra.mxu0 0.0
  %3922 = vmatprep.subr.mxu0 0.0
  %3923 = vmatpush1.msra.mxu0 0.0
  %3924 = vmatprep.subr.mxu0 0.0
  %3925 = vmatpush1.msra.mxu0 0.0
  %3926 = vmatprep.subr.mxu0 0.0
  %3927 = vmatpush1.msra.mxu0 0.0
  %3928 = vmatprep.subr.mxu0 0.0
  %3929 = vmatpush1.msra.mxu0 0.0
  %3930 = vmatprep.mubr.f32.mxu0 0.0
  %3931 = vmatmul.mubr.f32.gmra.mrb[0].mxu0 %v3846
  %v3932 = vpop.f32.mrb[0].mxu0
  %v3933 = vadd.f32 0.0, %v3932
  %v3934 = vpop.f32.mrb[0].mxu0
  %v3935 = vadd.f32 0.0, %v3934
  %3936 = vmatprep.mubr.f32.mxu0 0.0
  %3937 = vmatmul.mubr.f32.gmra.mrb[0].mxu0 %v3848
  %v3938 = vpop.f32.mrb[0].mxu0
  %v3939 = vpop.f32.mrb[0].mxu0
  %3940 = vmatprep.mubr.f32.mxu0 0.0
  %3941 = vmatmul.mubr.f32.gmra.mrb[0].mxu0 %v3850
  %v3942 = vpop.f32.mrb[0].mxu0
  %v3943 = vpop.f32.mrb[0].mxu0
  %3944 = vmatprep.mubr.f32.mxu0 0.0
  %3945 = vmatmul.mubr.f32.gmra.mrb[0].mxu0 %v3852
  %v3946 = vpop.f32.mrb[0].mxu0
  %v3947 = vadd.f32 0.0, %v3946
  %v3948 = vpop.f32.mrb[0].mxu0
  %v3949 = vadd.f32 0.0, %v3948
  %3950 = vmatprep.mubr.f32.mxu0 0.0
  %3951 = vmatmul.mubr.f32.gmra.mrb[0].mxu0 %v3854
  %v3952 = vpop.f32.mrb[0].mxu0
  %v3953 = vpop.f32.mrb[0].mxu0
  %3954 = vmatprep.mubr.f32.mxu0 0.0
  %3955 = vmatmul.mubr.f32.gmra.mrb[0].mxu0 %v3856
  %v3956 = vpop.f32.mrb[0].mxu0
  %v3957 = vpop.f32.mrb[0].mxu0
  %3958 = vmatprep.mubr.f32.mxu0 0.0
  %3959 = vmatmul.mubr.f32.gmra.mrb[0].mxu0 %v3858
  %v3960 = vpop.f32.mrb[0].mxu0
  %v3961 = vadd.f32 0.0, %v3960
  %v3962 = vpop.f32.mrb[0].mxu0
  %v3963 = vadd.f32 0.0, %v3962
  %3964 = vdwg.mxu0
  %v3965 = vadd.f32 %v3796, %v3933
  %v3966 = vadd.f32 %v3797, %v3935
  %v3967 = vadd.f32 %v3798, %v3947
  %v3968 = vadd.f32 %v3799, %v3949
  %v3969 = vadd.f32 %v3800, %v3961
  %v3970 = vadd.f32 %v3801, %v3963
  %s3971 = scalar_lea.vmem [#allocation3], 1120
  %v3972 = vld [vmem:[%s3971] sm:$0xff]
  %v3973 = vld [vmem:[%s3971 + $0x8] sm:$0xff]
  %v3974 = vld [vmem:[%s3971 + $0x10] sm:$0xff]
  %v3975 = vld [vmem:[%s3971 + $0x18] sm:$0xff]
  %v3976 = vld [vmem:[%s3971 + $0x20] sm:$0xff]
  %v3977 = vld [vmem:[%s3971 + $0x28] sm:$0xff]
  %v3978 = vld [vmem:[%s3971 + $0x30] sm:$0xff]
  %v3979 = vld [vmem:[%s3971 + $0x38] sm:$0xff]
  %v3980 = vld [vmem:[%s3971 + $0x40] sm:$0xff]
  %v3981 = vld [vmem:[%s3971 + $0x48] sm:$0xff]
  %v3982 = vld [vmem:[%s3971 + $0x50] sm:$0xff]
  %v3983 = vld [vmem:[%s3971 + $0x58] sm:$0xff]
  %v3984 = vld [vmem:[%s3971 + $0x60] sm:$0xff]
  %v3985 = vld [vmem:[%s3971 + $0x68] sm:$0xff]
  %v3986 = vld [vmem:[%s3971 + $0x70] sm:$0xff]
  %v3987 = vld [vmem:[%s3971 + $0x78] sm:$0xff]
  %v3988 = vld [vmem:[%s3971 + $0x80] sm:$0xff]
  %v3989 = vld [vmem:[%s3971 + $0x88] sm:$0xff]
  %v3990 = vld [vmem:[%s3971 + $0x90] sm:$0xff]
  %v3991 = vld [vmem:[%s3971 + $0x98] sm:$0xff]
  %v3992 = vld [vmem:[%s3971 + $0xa0] sm:$0xff]
  %v3993 = vld [vmem:[%s3971 + $0xa8] sm:$0xff]
  %v3994 = vld [vmem:[%s3971 + $0xb0] sm:$0xff]
  %v3995 = vld [vmem:[%s3971 + $0xb8] sm:$0xff]
  %v3996 = vld [vmem:[%s3971 + $0xc0] sm:$0xff]
  %v3997 = vld [vmem:[%s3971 + $0xc8] sm:$0xff]
  %v3998 = vld [vmem:[%s3971 + $0xd0] sm:$0xf]
  %v3999 = vld [vmem:[%s3971 + $0xd8] sm:$0xf]
  %v4000 = vrot.slane %v3132, 5
  %v4001 = vrot.slane %v3133, 5
  %v4002 = vsel %vm1390, %v4000, %v4001
  %v4003 = vrot.slane %v3134, 5
  %v4004 = vsel %vm1390, %v4001, %v4003
  %v4005 = vrot.slane %v3135, 5
  %v4006 = vsel %vm1390, %v4003, %v4005
  %v4007 = vrot.slane %v3136, 5
  %v4008 = vsel %vm1390, %v4005, %v4007
  %v4009 = vrot.slane %v3137, 5
  %v4010 = vsel %vm1390, %v4007, %v4009
  %v4011 = vrot.slane %v3138, 5
  %v4012 = vsel %vm1390, %v4009, %v4011
  %v4013 = vrot.slane %v3139, 5
  %v4014 = vsel %vm1390, %v4011, %v4013
  %v4015 = vsel %vm3225, %v4002, 0
  %v4017 = vsel %vm3225, %v4004, 0
  %v4019 = vsel %vm3225, %v4006, 0
  %v4021 = vsel %vm3225, %v4008, 0
  %v4023 = vsel %vm3225, %v4010, 0
  %v4025 = vsel %vm3225, %v4012, 0
  %v4027 = vsel %vm3225, %v4014, 0
  %v4030 = vsel %vm1228, %v3998, 0
  %v4033 = vsel %vm1228, %v3999, 0
  %4035 = vmatprep.subr.mxu0 %v3973
  %4036 = vmatpush1.msra.mxu0 %v3972
  %4037 = vmatprep.subr.mxu0 %v3975
  %4038 = vmatpush1.msra.mxu0 %v3974
  %4039 = vmatprep.subr.mxu0 %v3977
  %4040 = vmatpush1.msra.mxu0 %v3976
  %4041 = vmatprep.subr.mxu0 %v3979
  %4042 = vmatpush1.msra.mxu0 %v3978
  %4043 = vmatprep.subr.mxu0 %v3981
  %4044 = vmatpush1.msra.mxu0 %v3980
  %4045 = vmatprep.subr.mxu0 %v3983
  %4046 = vmatpush1.msra.mxu0 %v3982
  %4047 = vmatprep.subr.mxu0 %v3985
  %4048 = vmatpush1.msra.mxu0 %v3984
  %4049 = vmatprep.subr.mxu0 %v3987
  %4050 = vmatpush1.msra.mxu0 %v3986
  %4051 = vmatprep.subr.mxu0 %v3989
  %4052 = vmatpush1.msra.mxu0 %v3988
  %4053 = vmatprep.subr.mxu0 %v3991
  %4054 = vmatpush1.msra.mxu0 %v3990
  %4055 = vmatprep.subr.mxu0 %v3993
  %4056 = vmatpush1.msra.mxu0 %v3992
  %4057 = vmatprep.subr.mxu0 %v3995
  %4058 = vmatpush1.msra.mxu0 %v3994
  %4059 = vmatprep.subr.mxu0 %v3997
  %4060 = vmatpush1.msra.mxu0 %v3996
  %4061 = vmatprep.subr.mxu0 %v4033
  %4062 = vmatpush1.msra.mxu0 %v4030
  %4063 = vmatprep.subr.mxu0 0.0
  %4064 = vmatpush1.msra.mxu0 0.0
  %4065 = vmatprep.subr.mxu0 0.0
  %4066 = vmatpush1.msra.mxu0 0.0
  %4067 = vmatprep.subr.mxu0 0.0
  %4068 = vmatpush1.msra.mxu0 0.0
  %4069 = vmatprep.subr.mxu0 0.0
  %4070 = vmatpush1.msra.mxu0 0.0
  %4071 = vmatprep.subr.mxu0 0.0
  %4072 = vmatpush1.msra.mxu0 0.0
  %4073 = vmatprep.subr.mxu0 0.0
  %4074 = vmatpush1.msra.mxu0 0.0
  %4075 = vmatprep.subr.mxu0 0.0
  %4076 = vmatpush1.msra.mxu0 0.0
  %4077 = vmatprep.subr.mxu0 0.0
  %4078 = vmatpush1.msra.mxu0 0.0
  %4079 = vmatprep.subr.mxu0 0.0
  %4080 = vmatpush1.msra.mxu0 0.0
  %4081 = vmatprep.subr.mxu0 0.0
  %4082 = vmatpush1.msra.mxu0 0.0
  %4083 = vmatprep.subr.mxu0 0.0
  %4084 = vmatpush1.msra.mxu0 0.0
  %4085 = vmatprep.subr.mxu0 0.0
  %4086 = vmatpush1.msra.mxu0 0.0
  %4087 = vmatprep.subr.mxu0 0.0
  %4088 = vmatpush1.msra.mxu0 0.0
  %4089 = vmatprep.subr.mxu0 0.0
  %4090 = vmatpush1.msra.mxu0 0.0
  %4091 = vmatprep.subr.mxu0 0.0
  %4092 = vmatpush1.msra.mxu0 0.0
  %4093 = vmatprep.subr.mxu0 0.0
  %4094 = vmatpush1.msra.mxu0 0.0
  %4095 = vmatprep.subr.mxu0 0.0
  %4096 = vmatpush1.msra.mxu0 0.0
  %4097 = vmatprep.subr.mxu0 0.0
  %4098 = vmatpush1.msra.mxu0 0.0
  %4099 = vmatprep.mubr.f32.mxu0 0.0
  %4100 = vmatmul.mubr.f32.gmra.mrb[0].mxu0 %v4015
  %v4101 = vpop.f32.mrb[0].mxu0
  %v4102 = vadd.f32 0.0, %v4101
  %v4103 = vpop.f32.mrb[0].mxu0
  %v4104 = vadd.f32 0.0, %v4103
  %4105 = vmatprep.mubr.f32.mxu0 0.0
  %4106 = vmatmul.mubr.f32.gmra.mrb[0].mxu0 %v4017
  %v4107 = vpop.f32.mrb[0].mxu0
  %v4108 = vpop.f32.mrb[0].mxu0
  %4109 = vmatprep.mubr.f32.mxu0 0.0
  %4110 = vmatmul.mubr.f32.gmra.mrb[0].mxu0 %v4019
  %v4111 = vpop.f32.mrb[0].mxu0
  %v4112 = vpop.f32.mrb[0].mxu0
  %4113 = vmatprep.mubr.f32.mxu0 0.0
  %4114 = vmatmul.mubr.f32.gmra.mrb[0].mxu0 %v4021
  %v4115 = vpop.f32.mrb[0].mxu0
  %v4116 = vadd.f32 0.0, %v4115
  %v4117 = vpop.f32.mrb[0].mxu0
  %v4118 = vadd.f32 0.0, %v4117
  %4119 = vmatprep.mubr.f32.mxu0 0.0
  %4120 = vmatmul.mubr.f32.gmra.mrb[0].mxu0 %v4023
  %v4121 = vpop.f32.mrb[0].mxu0
  %v4122 = vpop.f32.mrb[0].mxu0
  %4123 = vmatprep.mubr.f32.mxu0 0.0
  %4124 = vmatmul.mubr.f32.gmra.mrb[0].mxu0 %v4025
  %v4125 = vpop.f32.mrb[0].mxu0
  %v4126 = vpop.f32.mrb[0].mxu0
  %4127 = vmatprep.mubr.f32.mxu0 0.0
  %4128 = vmatmul.mubr.f32.gmra.mrb[0].mxu0 %v4027
  %v4129 = vpop.f32.mrb[0].mxu0
  %v4130 = vadd.f32 0.0, %v4129
  %v4131 = vpop.f32.mrb[0].mxu0
  %v4132 = vadd.f32 0.0, %v4131
  %4133 = vdwg.mxu0
  %v4134 = vadd.f32 %v3965, %v4102
  %v4135 = vadd.f32 %v3966, %v4104
  %v4136 = vadd.f32 %v3967, %v4116
  %v4137 = vadd.f32 %v3968, %v4118
  %v4138 = vadd.f32 %v3969, %v4130
  %v4139 = vadd.f32 %v3970, %v4132
  %s4140 = scalar_lea.vmem [#allocation3], 1344
  %v4141 = vld [vmem:[%s4140] sm:$0xff]
  %v4142 = vld [vmem:[%s4140 + $0x8] sm:$0xff]
  %v4143 = vld [vmem:[%s4140 + $0x10] sm:$0xff]
  %v4144 = vld [vmem:[%s4140 + $0x18] sm:$0xff]
  %v4145 = vld [vmem:[%s4140 + $0x20] sm:$0xff]
  %v4146 = vld [vmem:[%s4140 + $0x28] sm:$0xff]
  %v4147 = vld [vmem:[%s4140 + $0x30] sm:$0xff]
  %v4148 = vld [vmem:[%s4140 + $0x38] sm:$0xff]
  %v4149 = vld [vmem:[%s4140 + $0x40] sm:$0xff]
  %v4150 = vld [vmem:[%s4140 + $0x48] sm:$0xff]
  %v4151 = vld [vmem:[%s4140 + $0x50] sm:$0xff]
  %v4152 = vld [vmem:[%s4140 + $0x58] sm:$0xff]
  %v4153 = vld [vmem:[%s4140 + $0x60] sm:$0xff]
  %v4154 = vld [vmem:[%s4140 + $0x68] sm:$0xff]
  %v4155 = vld [vmem:[%s4140 + $0x70] sm:$0xff]
  %v4156 = vld [vmem:[%s4140 + $0x78] sm:$0xff]
  %v4157 = vld [vmem:[%s4140 + $0x80] sm:$0xff]
  %v4158 = vld [vmem:[%s4140 + $0x88] sm:$0xff]
  %v4159 = vld [vmem:[%s4140 + $0x90] sm:$0xff]
  %v4160 = vld [vmem:[%s4140 + $0x98] sm:$0xff]
  %v4161 = vld [vmem:[%s4140 + $0xa0] sm:$0xff]
  %v4162 = vld [vmem:[%s4140 + $0xa8] sm:$0xff]
  %v4163 = vld [vmem:[%s4140 + $0xb0] sm:$0xff]
  %v4164 = vld [vmem:[%s4140 + $0xb8] sm:$0xff]
  %v4165 = vld [vmem:[%s4140 + $0xc0] sm:$0xff]
  %v4166 = vld [vmem:[%s4140 + $0xc8] sm:$0xff]
  %v4167 = vld [vmem:[%s4140 + $0xd0] sm:$0xf]
  %v4168 = vld [vmem:[%s4140 + $0xd8] sm:$0xf]
  %v4169 = vrot.slane %v3132, 6
  %v4170 = vrot.slane %v3133, 6
  %v4171 = vsel %vm1553, %v4169, %v4170
  %v4172 = vrot.slane %v3134, 6
  %v4173 = vsel %vm1553, %v4170, %v4172
  %v4174 = vrot.slane %v3135, 6
  %v4175 = vsel %vm1553, %v4172, %v4174
  %v4176 = vrot.slane %v3136, 6
  %v4177 = vsel %vm1553, %v4174, %v4176
  %v4178 = vrot.slane %v3137, 6
  %v4179 = vsel %vm1553, %v4176, %v4178
  %v4180 = vrot.slane %v3138, 6
  %v4181 = vsel %vm1553, %v4178, %v4180
  %v4182 = vrot.slane %v3139, 6
  %v4183 = vsel %vm1553, %v4180, %v4182
  %v4184 = vsel %vm3225, %v4171, 0
  %v4186 = vsel %vm3225, %v4173, 0
  %v4188 = vsel %vm3225, %v4175, 0
  %v4190 = vsel %vm3225, %v4177, 0
  %v4192 = vsel %vm3225, %v4179, 0
  %v4194 = vsel %vm3225, %v4181, 0
  %v4196 = vsel %vm3225, %v4183, 0
  %v4199 = vsel %vm1228, %v4167, 0
  %v4202 = vsel %vm1228, %v4168, 0
  %4204 = vmatprep.subr.mxu0 %v4142
  %4205 = vmatpush1.msra.mxu0 %v4141
  %4206 = vmatprep.subr.mxu0 %v4144
  %4207 = vmatpush1.msra.mxu0 %v4143
  %4208 = vmatprep.subr.mxu0 %v4146
  %4209 = vmatpush1.msra.mxu0 %v4145
  %4210 = vmatprep.subr.mxu0 %v4148
  %4211 = vmatpush1.msra.mxu0 %v4147
  %4212 = vmatprep.subr.mxu0 %v4150
  %4213 = vmatpush1.msra.mxu0 %v4149
  %4214 = vmatprep.subr.mxu0 %v4152
  %4215 = vmatpush1.msra.mxu0 %v4151
  %4216 = vmatprep.subr.mxu0 %v4154
  %4217 = vmatpush1.msra.mxu0 %v4153
  %4218 = vmatprep.subr.mxu0 %v4156
  %4219 = vmatpush1.msra.mxu0 %v4155
  %4220 = vmatprep.subr.mxu0 %v4158
  %4221 = vmatpush1.msra.mxu0 %v4157
  %4222 = vmatprep.subr.mxu0 %v4160
  %4223 = vmatpush1.msra.mxu0 %v4159
  %4224 = vmatprep.subr.mxu0 %v4162
  %4225 = vmatpush1.msra.mxu0 %v4161
  %4226 = vmatprep.subr.mxu0 %v4164
  %4227 = vmatpush1.msra.mxu0 %v4163
  %4228 = vmatprep.subr.mxu0 %v4166
  %4229 = vmatpush1.msra.mxu0 %v4165
  %4230 = vmatprep.subr.mxu0 %v4202
  %4231 = vmatpush1.msra.mxu0 %v4199
  %4232 = vmatprep.subr.mxu0 0.0
  %4233 = vmatpush1.msra.mxu0 0.0
  %4234 = vmatprep.subr.mxu0 0.0
  %4235 = vmatpush1.msra.mxu0 0.0
  %4236 = vmatprep.subr.mxu0 0.0
  %4237 = vmatpush1.msra.mxu0 0.0
  %4238 = vmatprep.subr.mxu0 0.0
  %4239 = vmatpush1.msra.mxu0 0.0
  %4240 = vmatprep.subr.mxu0 0.0
  %4241 = vmatpush1.msra.mxu0 0.0
  %4242 = vmatprep.subr.mxu0 0.0
  %4243 = vmatpush1.msra.mxu0 0.0
  %4244 = vmatprep.subr.mxu0 0.0
  %4245 = vmatpush1.msra.mxu0 0.0
  %4246 = vmatprep.subr.mxu0 0.0
  %4247 = vmatpush1.msra.mxu0 0.0
  %4248 = vmatprep.subr.mxu0 0.0
  %4249 = vmatpush1.msra.mxu0 0.0
  %4250 = vmatprep.subr.mxu0 0.0
  %4251 = vmatpush1.msra.mxu0 0.0
  %4252 = vmatprep.subr.mxu0 0.0
  %4253 = vmatpush1.msra.mxu0 0.0
  %4254 = vmatprep.subr.mxu0 0.0
  %4255 = vmatpush1.msra.mxu0 0.0
  %4256 = vmatprep.subr.mxu0 0.0
  %4257 = vmatpush1.msra.mxu0 0.0
  %4258 = vmatprep.subr.mxu0 0.0
  %4259 = vmatpush1.msra.mxu0 0.0
  %4260 = vmatprep.subr.mxu0 0.0
  %4261 = vmatpush1.msra.mxu0 0.0
  %4262 = vmatprep.subr.mxu0 0.0
  %4263 = vmatpush1.msra.mxu0 0.0
  %4264 = vmatprep.subr.mxu0 0.0
  %4265 = vmatpush1.msra.mxu0 0.0
  %4266 = vmatprep.subr.mxu0 0.0
  %4267 = vmatpush1.msra.mxu0 0.0
  %4268 = vmatprep.mubr.f32.mxu0 0.0
  %4269 = vmatmul.mubr.f32.gmra.mrb[0].mxu0 %v4184
  %v4270 = vpop.f32.mrb[0].mxu0
  %v4271 = vadd.f32 0.0, %v4270
  %v4272 = vpop.f32.mrb[0].mxu0
  %v4273 = vadd.f32 0.0, %v4272
  %4274 = vmatprep.mubr.f32.mxu0 0.0
  %4275 = vmatmul.mubr.f32.gmra.mrb[0].mxu0 %v4186
  %v4276 = vpop.f32.mrb[0].mxu0
  %v4277 = vpop.f32.mrb[0].mxu0
  %4278 = vmatprep.mubr.f32.mxu0 0.0
  %4279 = vmatmul.mubr.f32.gmra.mrb[0].mxu0 %v4188
  %v4280 = vpop.f32.mrb[0].mxu0
  %v4281 = vpop.f32.mrb[0].mxu0
  %4282 = vmatprep.mubr.f32.mxu0 0.0
  %4283 = vmatmul.mubr.f32.gmra.mrb[0].mxu0 %v4190
  %v4284 = vpop.f32.mrb[0].mxu0
  %v4285 = vadd.f32 0.0, %v4284
  %v4286 = vpop.f32.mrb[0].mxu0
  %v4287 = vadd.f32 0.0, %v4286
  %4288 = vmatprep.mubr.f32.mxu0 0.0
  %4289 = vmatmul.mubr.f32.gmra.mrb[0].mxu0 %v4192
  %v4290 = vpop.f32.mrb[0].mxu0
  %v4291 = vpop.f32.mrb[0].mxu0
  %4292 = vmatprep.mubr.f32.mxu0 0.0
  %4293 = vmatmul.mubr.f32.gmra.mrb[0].mxu0 %v4194
  %v4294 = vpop.f32.mrb[0].mxu0
  %v4295 = vpop.f32.mrb[0].mxu0
  %4296 = vmatprep.mubr.f32.mxu0 0.0
  %4297 = vmatmul.mubr.f32.gmra.mrb[0].mxu0 %v4196
  %v4298 = vpop.f32.mrb[0].mxu0
  %v4299 = vadd.f32 0.0, %v4298
  %v4300 = vpop.f32.mrb[0].mxu0
  %v4301 = vadd.f32 0.0, %v4300
  %4302 = vdwg.mxu0
  %v4303 = vadd.f32 %v4134, %v4271
  %v4304 = vadd.f32 %v4135, %v4273
  %v4305 = vadd.f32 %v4136, %v4285
  %v4306 = vadd.f32 %v4137, %v4287
  %v4307 = vadd.f32 %v4138, %v4299
  %v4308 = vadd.f32 %v4139, %v4301
  %v4309 = vld [vmem:[%s8] sm:$0x3]
  %v4311 = vlaneseq
  %v4312 = vshrl.u32 %v4311, 7
  %v4313 = vsub.s32 0, %v4312
  %v4314 = vrot.slane %v4309, %v4313
  %v4315 = vlaneseq
  %v4316 = vshrl.u32 %v4315, 7
  %v4317 = vsub.s32 1, %v4316
  %v4318 = vrot.slane %v4309, %v4317
  %v4321 = vadd.f32 %v4303, %v4314
  %v4322 = vadd.f32 %v4304, %v4318
  %v4323 = vadd.f32 %v4305, %v4314
  %v4324 = vadd.f32 %v4306, %v4318
  %v4325 = vadd.f32 %v4307, %v4314
  %v4326 = vadd.f32 %v4308, %v4318
  %4327 = vst [vmem:[%s13] sm:$0xff] %v4321
  %vm4328 = vcmask 31744
  %4329 = vst.msk [vmem:[%s13 + $0x8] sm:$0xff] %vm4328, %v4322
  %s4330 = scalar_lea.vmem %s13, 16
  %4331 = vst [vmem:[%s4330] sm:$0xff] %v4323
  %4332 = vst.msk [vmem:[%s4330 + $0x8] sm:$0xff] %vm4328, %v4324
  %s4333 = scalar_lea.vmem %s13, 32
  %4334 = vst [vmem:[%s4333] sm:$0xff] %v4325
  %4335 = vst.msk [vmem:[%s4333 + $0x8] sm:$0xff] %vm4328, %v4326
  // Predicated region
  $region117: #{model_tanh_forward.1} parent=0 // pred_check
    _
  $region118: #{model_tanh_forward.1} parent=0 // pred_check_branch
    %4337 = sbr.rel (0) target = $region120
  $region119: #{model_tanh_forward.1} parent=0 // pred_region
    _
  $region120: #{model_tanh_forward.1} parent=0 // pred_fallthru
    _
  // Predicated region
  $region121: #{model_tanh_forward.1} parent=0 // pred_check
    _
  $region122: #{model_tanh_forward.1} parent=0 // pred_check_branch
    %4339 = sbr.rel (0) target = $region124
  $region123: #{model_tanh_forward.1} parent=0 // pred_region
    _
  $region124: #{model_tanh_forward.1} parent=0 // pred_fallthru
    _
  %4340 = vsyncmov [#allocation4]
  %s4341 = vpop.sfrf %4340
  %p4342 = scmp.eq.s32.totalorder %s4341, 0
  %p4343 = pneg %p4342
  %4345 = shalt.err (%p4343)
  %s4346 = scalar_lea.sflag [#allocation4], 1
  %4347 = vsyncmov %s4346
  %s4348 = vpop.sfrf %4347
  %p4349 = scmp.eq.s32.totalorder %s4348, 0
  %p4350 = pneg %p4349
  %4352 = shalt.err (%p4350)

</llo_original>
